<compile_context>
chip_gen: v7x
topology: tpu7x:2x2x1
jax: 0.10.0
libtpu: 0.0.40
codegen_flags: <defaults>
</compile_context>

<pallas_src>
import functools

import jax
import jax.numpy as jnp
import numpy as np
from jax.experimental import pallas as pl
from jax.experimental.pallas import tpu as pltpu


# ----------------------------------------------------------------------------
# Fused DCR-block kernel (one batch element per grid step)
# ----------------------------------------------------------------------------
def _dcr_block_kernel(x_ref, w1_ref, b1_ref, w2_ref, b2_ref, w3_ref, b3_ref,
                      o_ref, xpad, o1pad, o2pad, slab, *, C, H, W):
    # x_ref : (1, C, H*W)            input, spatial flattened onto lanes
    # wK_ref: (CoutK, 9*CinK)        BN-scale-folded weight matrix, K-order
    #                                source-major then (tap, channel)
    # bK_ref: (CoutK, 1)             folded BN bias
    # o_ref : (1, C, H*W)
    # xpad/o1pad/o2pad : (cc, H+2, W+2) zero-padded staging scratch
    # slab  : (9*2*C, H*W)           shared im2col slab  [x | out1 | out2]
    HW = H * W
    Ch = C // 2

    def fill_slab(src_flat, pad_ref, cc, base):
        # Zero-pad `src_flat` (cc, HW) spatially via scratch, then write its
        # 9 shifted taps into slab rows [base, base + 9*cc).
        pad_ref[...] = jnp.zeros_like(pad_ref)
        pad_ref[:, 1:H + 1, 1:W + 1] = src_flat.reshape(cc, H, W)
        for t in range(9):
            dy, dx = t // 3, t % 3
            slab[base + t * cc: base + (t + 1) * cc, :] = (
                pad_ref[:, dy:dy + H, dx:dx + W].reshape(cc, HW))

    xf = x_ref[0].astype(jnp.float32)                       # (C, HW)
    fill_slab(xf, xpad, C, 0)

    # conv1 + BN + ReLU (BN scale pre-folded into w1 by the wrapper)
    out1 = jnp.maximum(
        jnp.dot(w1_ref[...], slab[0:9 * C, :],
                preferred_element_type=jnp.float32) + b1_ref[...], 0.0)
    fill_slab(out1, o1pad, Ch, 9 * C)

    # conv2 over conc1 = [x, out1]  -> contiguous slab prefix, single matmul
    out2 = jnp.maximum(
        jnp.dot(w2_ref[...], slab[0:9 * (C + Ch), :],
                preferred_element_type=jnp.float32) + b2_ref[...], 0.0)
    fill_slab(out2, o2pad, Ch, 9 * (C + Ch))

    # conv3 over conc2 = [x, out1, out2]  + fused residual
    out3 = jnp.maximum(
        jnp.dot(w3_ref[...], slab[...],
                preferred_element_type=jnp.float32) + b3_ref[...], 0.0) + xf
    o_ref[...] = out3[None].astype(o_ref.dtype)             # lane-dense store


# ----------------------------------------------------------------------------
# Wrapper: one fused pallas_call for the whole DCR block (NCHW in / NCHW out)
# ----------------------------------------------------------------------------
def dcr_block(x, kp):
    """x: (N, C, H, W) float32;  kp: kernel-ready params (see below)."""
    N, C, H, W = x.shape
    Ch = C // 2
    HW = H * W
    xf = x.reshape(N, C, HW)                                # free reshape

    flops = 2 * N * HW * 9 * (C * Ch + (C + Ch) * Ch + 2 * C * C)
    bytes_accessed = 4 * (2 * N * C * HW +
                          sum(int(np.prod(v.shape)) for v in kp.values()))

    out = pl.pallas_call(
        functools.partial(_dcr_block_kernel, C=C, H=H, W=W),
        out_shape=jax.ShapeDtypeStruct((N, C, HW), x.dtype),
        grid=(N,),
        in_specs=[
            pl.BlockSpec((1, C, HW), lambda n: (n, 0, 0)),
            pl.BlockSpec(kp["w1"].shape, lambda n: (0, 0)),
            pl.BlockSpec(kp["b1"].shape, lambda n: (0, 0)),
            pl.BlockSpec(kp["w2"].shape, lambda n: (0, 0)),
            pl.BlockSpec(kp["b2"].shape, lambda n: (0, 0)),
            pl.BlockSpec(kp["w3"].shape, lambda n: (0, 0)),
            pl.BlockSpec(kp["b3"].shape, lambda n: (0, 0)),
        ],
        out_specs=pl.BlockSpec((1, C, HW), lambda n: (n, 0, 0)),
        scratch_shapes=[
            pltpu.VMEM((C, H + 2, W + 2), jnp.float32),     # xpad
            pltpu.VMEM((Ch, H + 2, W + 2), jnp.float32),    # out1 pad
            pltpu.VMEM((Ch, H + 2, W + 2), jnp.float32),    # out2 pad
            pltpu.VMEM((9 * 2 * C, HW), jnp.float32),       # shared im2col slab
        ],
        compiler_params=pltpu.CompilerParams(
            dimension_semantics=("parallel",)),
        cost_estimate=pl.CostEstimate(flops=int(flops), transcendentals=0,
                                      bytes_accessed=int(bytes_accessed)),
    )(xf, kp["w1"], kp["b1"], kp["w2"], kp["b2"], kp["w3"], kp["b3"])
    return out.reshape(N, C, H, W)


# ----------------------------------------------------------------------------
# Parameter construction (deterministic, matches _DCR_block.__init__ shapes)
# ----------------------------------------------------------------------------
def _fold_bn(gamma, beta, mean, var, eps=1e-5):
    scale = gamma / jnp.sqrt(var + eps)
    bias = beta - mean * scale
    return scale, bias


def make_dcr_params(channel_in, key):
    """Raw params: OIHW conv weights + folded BN scale/bias per conv."""
    c_half = channel_in // 2
    shapes = [
        (channel_in, c_half),                 # conv_1: C      -> C/2
        (channel_in + c_half, c_half),        # conv_2: 3C/2   -> C/2
        (channel_in * 2, channel_in),         # conv_3: 2C     -> C
    ]
    raw = {}
    for i, (cin, cout) in enumerate(shapes, start=1):
        key, kw, kg, kb, km, kv = jax.random.split(key, 6)
        fan_in = cin * 9
        w = jax.random.normal(kw, (cout, cin, 3, 3), jnp.float32) / np.sqrt(fan_in)
        gamma = 1.0 + 0.1 * jax.random.normal(kg, (cout,), jnp.float32)
        beta = 0.1 * jax.random.normal(kb, (cout,), jnp.float32)
        mean = 0.1 * jax.random.normal(km, (cout,), jnp.float32)
        var = 0.5 + jax.random.uniform(kv, (cout,), jnp.float32)
        s, b = _fold_bn(gamma, beta, mean, var)
        raw[f"w{i}"], raw[f"s{i}"], raw[f"b{i}"] = w, s, b
    return raw


def prepare_kernel_params(raw, channel_in):
    """Build matmul-ready weight matrices whose K ordering matches the slab
    layout (source-major [x | out1 | out2], then (tap, channel) within each
    source), with the folded BN scale absorbed into the weights."""
    C = channel_in
    Ch = C // 2

    def w_to_mat(w_oihw):
        cout, cin = w_oihw.shape[0], w_oihw.shape[1]
        # column index = (dy*3 + dx) * cin + c
        return jnp.transpose(w_oihw, (0, 2, 3, 1)).reshape(cout, 9 * cin)

    w1m = w_to_mat(raw["w1"])
    w2m = jnp.concatenate([w_to_mat(raw["w2"][:, :C]),
                           w_to_mat(raw["w2"][:, C:])], axis=1)
    w3m = jnp.concatenate([w_to_mat(raw["w3"][:, :C]),
                           w_to_mat(raw["w3"][:, C:C + Ch]),
                           w_to_mat(raw["w3"][:, C + Ch:])], axis=1)
    return {
        "w1": raw["s1"][:, None] * w1m, "b1": raw["b1"][:, None],
        "w2": raw["s2"][:, None] * w2m, "b2": raw["b2"][:, None],
        "w3": raw["s3"][:, None] * w3m, "b3": raw["b3"][:, None],
    }


# ----------------------------------------------------------------------------
# Pure-JAX reference (conv -> BN -> ReLU, unfused, for correctness check)
# ----------------------------------------------------------------------------
def _ref_conv_bn_relu(x, w, s, b):
    y = jax.lax.conv_general_dilated(
        x, w, window_strides=(1, 1), padding="SAME",
        dimension_numbers=("NCHW", "OIHW", "NCHW"))
    return jnp.maximum(y * s.reshape(1, -1, 1, 1) + b.reshape(1, -1, 1, 1), 0.0)


def dcr_block_ref(x, raw):
    out1 = _ref_conv_bn_relu(x, raw["w1"], raw["s1"], raw["b1"])
    conc1 = jnp.concatenate([x, out1], axis=1)
    out2 = _ref_conv_bn_relu(conc1, raw["w2"], raw["s2"], raw["b2"])
    conc2 = jnp.concatenate([conc1, out2], axis=1)
    out3 = _ref_conv_bn_relu(conc2, raw["w3"], raw["s3"], raw["b3"]) + x
    return out3


# ----------------------------------------------------------------------------
if __name__ == "__main__":
    key = jax.random.PRNGKey(0)
    k_x, k_p = jax.random.split(key)

    N, C, H, W = 2, 4, 16, 16          # channel_in = 4
    x = jax.random.normal(k_x, (N, C, H, W), jnp.float32)
    raw = make_dcr_params(C, k_p)
    kp = prepare_kernel_params(raw, C)

    out = jax.block_until_ready(jax.jit(dcr_block)(x, kp))
    ref = jax.block_until_ready(dcr_block_ref(x, raw))

    assert out.shape == (N, C, H, W)
    np.testing.assert_allclose(np.asarray(out), np.asarray(ref),
                               rtol=1e-4, atol=1e-4)
    print("KERNEL_OK")
</pallas_src>

<mosaic_0001>
module attributes {stable_mosaic.version = 11 : i64} {
  func.func @_dcr_block_kernel(%arg0: i32, %arg1: memref<1x4x256xf32, #tpu.memory_space<vmem>>, %arg2: memref<2x36xf32, #tpu.memory_space<vmem>>, %arg3: memref<2x1xf32, #tpu.memory_space<vmem>>, %arg4: memref<2x54xf32, #tpu.memory_space<vmem>>, %arg5: memref<2x1xf32, #tpu.memory_space<vmem>>, %arg6: memref<4x72xf32, #tpu.memory_space<vmem>>, %arg7: memref<4x1xf32, #tpu.memory_space<vmem>>, %arg8: memref<1x4x256xf32, #tpu.memory_space<vmem>>, %arg9: memref<4x18x18xf32, #tpu.memory_space<vmem>>, %arg10: memref<2x18x18xf32, #tpu.memory_space<vmem>>, %arg11: memref<2x18x18xf32, #tpu.memory_space<vmem>>, %arg12: memref<72x256xf32, #tpu.memory_space<vmem>>) attributes {dimension_semantics = [#tpu.dimension_semantics<parallel>], iteration_bounds = array<i64: 2>, scalar_prefetch = 0 : i64, scratch_operands = 4 : i64, tpu.core_type = #tpu.core_type<tc>, window_params = [{transform_indices = @transform_0, window_bounds = array<i64: 1, 4, 256>}, {pipeline_mode = #tpu.pipeline_mode<synchronous>, transform_indices = @transform_1, window_bounds = array<i64: 2, 36>}, {pipeline_mode = #tpu.pipeline_mode<synchronous>, transform_indices = @transform_2, window_bounds = array<i64: 2, 1>}, {pipeline_mode = #tpu.pipeline_mode<synchronous>, transform_indices = @transform_3, window_bounds = array<i64: 2, 54>}, {pipeline_mode = #tpu.pipeline_mode<synchronous>, transform_indices = @transform_4, window_bounds = array<i64: 2, 1>}, {pipeline_mode = #tpu.pipeline_mode<synchronous>, transform_indices = @transform_5, window_bounds = array<i64: 4, 72>}, {pipeline_mode = #tpu.pipeline_mode<synchronous>, transform_indices = @transform_6, window_bounds = array<i64: 4, 1>}, {transform_indices = @transform_7, window_bounds = array<i64: 1, 4, 256>}]} {
    %c0 = arith.constant 0 : index
    %c0_0 = arith.constant 0 : index
    %c0_1 = arith.constant 0 : index
    %0 = vector.load %arg1[%c0, %c0_0, %c0_1] : memref<1x4x256xf32, #tpu.memory_space<vmem>>, vector<1x4x256xf32>
    %1 = vector.shape_cast %0 : vector<1x4x256xf32> to vector<4x256xf32>
    %cst = arith.constant 0.000000e+00 : f32
    %2 = vector.broadcast %cst : f32 to vector<4x18x18xf32>
    %c0_2 = arith.constant 0 : index
    %c0_3 = arith.constant 0 : index
    %c0_4 = arith.constant 0 : index
    %3 = vector.load %arg9[%c0_2, %c0_3, %c0_4] : memref<4x18x18xf32, #tpu.memory_space<vmem>>, vector<4x18x18xf32>
    tpu.vector_store %arg9[%c0_2, %c0_3, %c0_4], %2 {strides = array<i32>} : memref<4x18x18xf32, #tpu.memory_space<vmem>>, vector<4x18x18xf32>,
    %4 = vector.shape_cast %1 : vector<4x256xf32> to vector<4x16x16xf32>
    %c0_5 = arith.constant 0 : index
    %c1 = arith.constant 1 : index
    %c1_6 = arith.constant 1 : index
    %5 = vector.load %arg9[%c0_5, %c1, %c1_6] : memref<4x18x18xf32, #tpu.memory_space<vmem>>, vector<4x16x16xf32>
    tpu.vector_store %arg9[%c0_5, %c1, %c1_6], %4 {strides = array<i32>} : memref<4x18x18xf32, #tpu.memory_space<vmem>>, vector<4x16x16xf32>,
    %c0_7 = arith.constant 0 : index
    %c0_8 = arith.constant 0 : index
    %c0_9 = arith.constant 0 : index
    %6 = vector.load %arg9[%c0_7, %c0_8, %c0_9] : memref<4x18x18xf32, #tpu.memory_space<vmem>>, vector<4x16x16xf32>
    %7 = vector.shape_cast %6 : vector<4x16x16xf32> to vector<4x256xf32>
    %c0_10 = arith.constant 0 : index
    %c0_11 = arith.constant 0 : index
    %8 = vector.load %arg12[%c0_10, %c0_11] : memref<72x256xf32, #tpu.memory_space<vmem>>, vector<4x256xf32>
    tpu.vector_store %arg12[%c0_10, %c0_11], %7 {strides = array<i32>} : memref<72x256xf32, #tpu.memory_space<vmem>>, vector<4x256xf32>,
    %c0_12 = arith.constant 0 : index
    %c0_13 = arith.constant 0 : index
    %c1_14 = arith.constant 1 : index
    %9 = vector.load %arg9[%c0_12, %c0_13, %c1_14] : memref<4x18x18xf32, #tpu.memory_space<vmem>>, vector<4x16x16xf32>
    %10 = vector.shape_cast %9 : vector<4x16x16xf32> to vector<4x256xf32>
    %c4 = arith.constant 4 : index
    %c0_15 = arith.constant 0 : index
    %11 = vector.load %arg12[%c4, %c0_15] : memref<72x256xf32, #tpu.memory_space<vmem>>, vector<4x256xf32>
    tpu.vector_store %arg12[%c4, %c0_15], %10 {strides = array<i32>} : memref<72x256xf32, #tpu.memory_space<vmem>>, vector<4x256xf32>,
    %c0_16 = arith.constant 0 : index
    %c0_17 = arith.constant 0 : index
    %c2 = arith.constant 2 : index
    %12 = vector.load %arg9[%c0_16, %c0_17, %c2] : memref<4x18x18xf32, #tpu.memory_space<vmem>>, vector<4x16x16xf32>
    %13 = vector.shape_cast %12 : vector<4x16x16xf32> to vector<4x256xf32>
    %c8 = arith.constant 8 : index
    %c0_18 = arith.constant 0 : index
    %14 = vector.load %arg12[%c8, %c0_18] : memref<72x256xf32, #tpu.memory_space<vmem>>, vector<4x256xf32>
    tpu.vector_store %arg12[%c8, %c0_18], %13 {strides = array<i32>} : memref<72x256xf32, #tpu.memory_space<vmem>>, vector<4x256xf32>,
    %c0_19 = arith.constant 0 : index
    %c1_20 = arith.constant 1 : index
    %c0_21 = arith.constant 0 : index
    %15 = vector.load %arg9[%c0_19, %c1_20, %c0_21] : memref<4x18x18xf32, #tpu.memory_space<vmem>>, vector<4x16x16xf32>
    %16 = vector.shape_cast %15 : vector<4x16x16xf32> to vector<4x256xf32>
    %c12 = arith.constant 12 : index
    %c0_22 = arith.constant 0 : index
    %17 = vector.load %arg12[%c12, %c0_22] : memref<72x256xf32, #tpu.memory_space<vmem>>, vector<4x256xf32>
    tpu.vector_store %arg12[%c12, %c0_22], %16 {strides = array<i32>} : memref<72x256xf32, #tpu.memory_space<vmem>>, vector<4x256xf32>,
    %c0_23 = arith.constant 0 : index
    %c1_24 = arith.constant 1 : index
    %c1_25 = arith.constant 1 : index
    %18 = vector.load %arg9[%c0_23, %c1_24, %c1_25] : memref<4x18x18xf32, #tpu.memory_space<vmem>>, vector<4x16x16xf32>
    %19 = vector.shape_cast %18 : vector<4x16x16xf32> to vector<4x256xf32>
    %c16 = arith.constant 16 : index
    %c0_26 = arith.constant 0 : index
    %20 = vector.load %arg12[%c16, %c0_26] : memref<72x256xf32, #tpu.memory_space<vmem>>, vector<4x256xf32>
    tpu.vector_store %arg12[%c16, %c0_26], %19 {strides = array<i32>} : memref<72x256xf32, #tpu.memory_space<vmem>>, vector<4x256xf32>,
    %c0_27 = arith.constant 0 : index
    %c1_28 = arith.constant 1 : index
    %c2_29 = arith.constant 2 : index
    %21 = vector.load %arg9[%c0_27, %c1_28, %c2_29] : memref<4x18x18xf32, #tpu.memory_space<vmem>>, vector<4x16x16xf32>
    %22 = vector.shape_cast %21 : vector<4x16x16xf32> to vector<4x256xf32>
    %c20 = arith.constant 20 : index
    %c0_30 = arith.constant 0 : index
    %23 = vector.load %arg12[%c20, %c0_30] : memref<72x256xf32, #tpu.memory_space<vmem>>, vector<4x256xf32>
    tpu.vector_store %arg12[%c20, %c0_30], %22 {strides = array<i32>} : memref<72x256xf32, #tpu.memory_space<vmem>>, vector<4x256xf32>,
    %c0_31 = arith.constant 0 : index
    %c2_32 = arith.constant 2 : index
    %c0_33 = arith.constant 0 : index
    %24 = vector.load %arg9[%c0_31, %c2_32, %c0_33] : memref<4x18x18xf32, #tpu.memory_space<vmem>>, vector<4x16x16xf32>
    %25 = vector.shape_cast %24 : vector<4x16x16xf32> to vector<4x256xf32>
    %c24 = arith.constant 24 : index
    %c0_34 = arith.constant 0 : index
    %26 = vector.load %arg12[%c24, %c0_34] : memref<72x256xf32, #tpu.memory_space<vmem>>, vector<4x256xf32>
    tpu.vector_store %arg12[%c24, %c0_34], %25 {strides = array<i32>} : memref<72x256xf32, #tpu.memory_space<vmem>>, vector<4x256xf32>,
    %c0_35 = arith.constant 0 : index
    %c2_36 = arith.constant 2 : index
    %c1_37 = arith.constant 1 : index
    %27 = vector.load %arg9[%c0_35, %c2_36, %c1_37] : memref<4x18x18xf32, #tpu.memory_space<vmem>>, vector<4x16x16xf32>
    %28 = vector.shape_cast %27 : vector<4x16x16xf32> to vector<4x256xf32>
    %c28 = arith.constant 28 : index
    %c0_38 = arith.constant 0 : index
    %29 = vector.load %arg12[%c28, %c0_38] : memref<72x256xf32, #tpu.memory_space<vmem>>, vector<4x256xf32>
    tpu.vector_store %arg12[%c28, %c0_38], %28 {strides = array<i32>} : memref<72x256xf32, #tpu.memory_space<vmem>>, vector<4x256xf32>,
    %c0_39 = arith.constant 0 : index
    %c2_40 = arith.constant 2 : index
    %c2_41 = arith.constant 2 : index
    %30 = vector.load %arg9[%c0_39, %c2_40, %c2_41] : memref<4x18x18xf32, #tpu.memory_space<vmem>>, vector<4x16x16xf32>
    %31 = vector.shape_cast %30 : vector<4x16x16xf32> to vector<4x256xf32>
    %c32 = arith.constant 32 : index
    %c0_42 = arith.constant 0 : index
    %32 = vector.load %arg12[%c32, %c0_42] : memref<72x256xf32, #tpu.memory_space<vmem>>, vector<4x256xf32>
    tpu.vector_store %arg12[%c32, %c0_42], %31 {strides = array<i32>} : memref<72x256xf32, #tpu.memory_space<vmem>>, vector<4x256xf32>,
    %c0_43 = arith.constant 0 : index
    %c0_44 = arith.constant 0 : index
    %33 = vector.load %arg2[%c0_43, %c0_44] : memref<2x36xf32, #tpu.memory_space<vmem>>, vector<2x36xf32>
    %c0_45 = arith.constant 0 : index
    %c0_46 = arith.constant 0 : index
    %34 = vector.load %arg12[%c0_45, %c0_46] : memref<72x256xf32, #tpu.memory_space<vmem>>, vector<36x256xf32>
    %cst_47 = arith.constant dense<0.000000e+00> : vector<2x256xf32>
    %35 = tpu.matmul %33, %34, %cst_47 {dimension_numbers = #tpu.dot_dimension_numbers<[1], [0], [0], [1], [0, 0, 1, 1], [], []>} : vector<2x36xf32>, vector<36x256xf32>, vector<2x256xf32> -> vector<2x256xf32>
    %c0_48 = arith.constant 0 : index
    %c0_49 = arith.constant 0 : index
    %36 = vector.load %arg3[%c0_48, %c0_49] : memref<2x1xf32, #tpu.memory_space<vmem>>, vector<2x1xf32>
    %37 = vector.broadcast %36 : vector<2x1xf32> to vector<2x256xf32>
    %38 = arith.addf %35, %37 : vector<2x256xf32>
    %cst_50 = arith.constant 0.000000e+00 : f32
    %39 = vector.broadcast %cst_50 : f32 to vector<2x256xf32>
    %40 = arith.maximumf %38, %39 : vector<2x256xf32>
    %cst_51 = arith.constant 0.000000e+00 : f32
    %41 = vector.broadcast %cst_51 : f32 to vector<2x18x18xf32>
    %c0_52 = arith.constant 0 : index
    %c0_53 = arith.constant 0 : index
    %c0_54 = arith.constant 0 : index
    %42 = vector.load %arg10[%c0_52, %c0_53, %c0_54] : memref<2x18x18xf32, #tpu.memory_space<vmem>>, vector<2x18x18xf32>
    tpu.vector_store %arg10[%c0_52, %c0_53, %c0_54], %41 {strides = array<i32>} : memref<2x18x18xf32, #tpu.memory_space<vmem>>, vector<2x18x18xf32>,
    %43 = vector.shape_cast %40 : vector<2x256xf32> to vector<2x16x16xf32>
    %c0_55 = arith.constant 0 : index
    %c1_56 = arith.constant 1 : index
    %c1_57 = arith.constant 1 : index
    %44 = vector.load %arg10[%c0_55, %c1_56, %c1_57] : memref<2x18x18xf32, #tpu.memory_space<vmem>>, vector<2x16x16xf32>
    tpu.vector_store %arg10[%c0_55, %c1_56, %c1_57], %43 {strides = array<i32>} : memref<2x18x18xf32, #tpu.memory_space<vmem>>, vector<2x16x16xf32>,
    %c0_58 = arith.constant 0 : index
    %c0_59 = arith.constant 0 : index
    %c0_60 = arith.constant 0 : index
    %45 = vector.load %arg10[%c0_58, %c0_59, %c0_60] : memref<2x18x18xf32, #tpu.memory_space<vmem>>, vector<2x16x16xf32>
    %46 = vector.shape_cast %45 : vector<2x16x16xf32> to vector<2x256xf32>
    %c36 = arith.constant 36 : index
    %c0_61 = arith.constant 0 : index
    %47 = vector.load %arg12[%c36, %c0_61] : memref<72x256xf32, #tpu.memory_space<vmem>>, vector<2x256xf32>
    tpu.vector_store %arg12[%c36, %c0_61], %46 {strides = array<i32>} : memref<72x256xf32, #tpu.memory_space<vmem>>, vector<2x256xf32>,
    %c0_62 = arith.constant 0 : index
    %c0_63 = arith.constant 0 : index
    %c1_64 = arith.constant 1 : index
    %48 = vector.load %arg10[%c0_62, %c0_63, %c1_64] : memref<2x18x18xf32, #tpu.memory_space<vmem>>, vector<2x16x16xf32>
    %49 = vector.shape_cast %48 : vector<2x16x16xf32> to vector<2x256xf32>
    %c38 = arith.constant 38 : index
    %c0_65 = arith.constant 0 : index
    %50 = vector.load %arg12[%c38, %c0_65] : memref<72x256xf32, #tpu.memory_space<vmem>>, vector<2x256xf32>
    tpu.vector_store %arg12[%c38, %c0_65], %49 {strides = array<i32>} : memref<72x256xf32, #tpu.memory_space<vmem>>, vector<2x256xf32>,
    %c0_66 = arith.constant 0 : index
    %c0_67 = arith.constant 0 : index
    %c2_68 = arith.constant 2 : index
    %51 = vector.load %arg10[%c0_66, %c0_67, %c2_68] : memref<2x18x18xf32, #tpu.memory_space<vmem>>, vector<2x16x16xf32>
    %52 = vector.shape_cast %51 : vector<2x16x16xf32> to vector<2x256xf32>
    %c40 = arith.constant 40 : index
    %c0_69 = arith.constant 0 : index
    %53 = vector.load %arg12[%c40, %c0_69] : memref<72x256xf32, #tpu.memory_space<vmem>>, vector<2x256xf32>
    tpu.vector_store %arg12[%c40, %c0_69], %52 {strides = array<i32>} : memref<72x256xf32, #tpu.memory_space<vmem>>, vector<2x256xf32>,
    %c0_70 = arith.constant 0 : index
    %c1_71 = arith.constant 1 : index
    %c0_72 = arith.constant 0 : index
    %54 = vector.load %arg10[%c0_70, %c1_71, %c0_72] : memref<2x18x18xf32, #tpu.memory_space<vmem>>, vector<2x16x16xf32>
    %55 = vector.shape_cast %54 : vector<2x16x16xf32> to vector<2x256xf32>
    %c42 = arith.constant 42 : index
    %c0_73 = arith.constant 0 : index
    %56 = vector.load %arg12[%c42, %c0_73] : memref<72x256xf32, #tpu.memory_space<vmem>>, vector<2x256xf32>
    tpu.vector_store %arg12[%c42, %c0_73], %55 {strides = array<i32>} : memref<72x256xf32, #tpu.memory_space<vmem>>, vector<2x256xf32>,
    %c0_74 = arith.constant 0 : index
    %c1_75 = arith.constant 1 : index
    %c1_76 = arith.constant 1 : index
    %57 = vector.load %arg10[%c0_74, %c1_75, %c1_76] : memref<2x18x18xf32, #tpu.memory_space<vmem>>, vector<2x16x16xf32>
    %58 = vector.shape_cast %57 : vector<2x16x16xf32> to vector<2x256xf32>
    %c44 = arith.constant 44 : index
    %c0_77 = arith.constant 0 : index
    %59 = vector.load %arg12[%c44, %c0_77] : memref<72x256xf32, #tpu.memory_space<vmem>>, vector<2x256xf32>
    tpu.vector_store %arg12[%c44, %c0_77], %58 {strides = array<i32>} : memref<72x256xf32, #tpu.memory_space<vmem>>, vector<2x256xf32>,
    %c0_78 = arith.constant 0 : index
    %c1_79 = arith.constant 1 : index
    %c2_80 = arith.constant 2 : index
    %60 = vector.load %arg10[%c0_78, %c1_79, %c2_80] : memref<2x18x18xf32, #tpu.memory_space<vmem>>, vector<2x16x16xf32>
    %61 = vector.shape_cast %60 : vector<2x16x16xf32> to vector<2x256xf32>
    %c46 = arith.constant 46 : index
    %c0_81 = arith.constant 0 : index
    %62 = vector.load %arg12[%c46, %c0_81] : memref<72x256xf32, #tpu.memory_space<vmem>>, vector<2x256xf32>
    tpu.vector_store %arg12[%c46, %c0_81], %61 {strides = array<i32>} : memref<72x256xf32, #tpu.memory_space<vmem>>, vector<2x256xf32>,
    %c0_82 = arith.constant 0 : index
    %c2_83 = arith.constant 2 : index
    %c0_84 = arith.constant 0 : index
    %63 = vector.load %arg10[%c0_82, %c2_83, %c0_84] : memref<2x18x18xf32, #tpu.memory_space<vmem>>, vector<2x16x16xf32>
    %64 = vector.shape_cast %63 : vector<2x16x16xf32> to vector<2x256xf32>
    %c48 = arith.constant 48 : index
    %c0_85 = arith.constant 0 : index
    %65 = vector.load %arg12[%c48, %c0_85] : memref<72x256xf32, #tpu.memory_space<vmem>>, vector<2x256xf32>
    tpu.vector_store %arg12[%c48, %c0_85], %64 {strides = array<i32>} : memref<72x256xf32, #tpu.memory_space<vmem>>, vector<2x256xf32>,
    %c0_86 = arith.constant 0 : index
    %c2_87 = arith.constant 2 : index
    %c1_88 = arith.constant 1 : index
    %66 = vector.load %arg10[%c0_86, %c2_87, %c1_88] : memref<2x18x18xf32, #tpu.memory_space<vmem>>, vector<2x16x16xf32>
    %67 = vector.shape_cast %66 : vector<2x16x16xf32> to vector<2x256xf32>
    %c50 = arith.constant 50 : index
    %c0_89 = arith.constant 0 : index
    %68 = vector.load %arg12[%c50, %c0_89] : memref<72x256xf32, #tpu.memory_space<vmem>>, vector<2x256xf32>
    tpu.vector_store %arg12[%c50, %c0_89], %67 {strides = array<i32>} : memref<72x256xf32, #tpu.memory_space<vmem>>, vector<2x256xf32>,
    %c0_90 = arith.constant 0 : index
    %c2_91 = arith.constant 2 : index
    %c2_92 = arith.constant 2 : index
    %69 = vector.load %arg10[%c0_90, %c2_91, %c2_92] : memref<2x18x18xf32, #tpu.memory_space<vmem>>, vector<2x16x16xf32>
    %70 = vector.shape_cast %69 : vector<2x16x16xf32> to vector<2x256xf32>
    %c52 = arith.constant 52 : index
    %c0_93 = arith.constant 0 : index
    %71 = vector.load %arg12[%c52, %c0_93] : memref<72x256xf32, #tpu.memory_space<vmem>>, vector<2x256xf32>
    tpu.vector_store %arg12[%c52, %c0_93], %70 {strides = array<i32>} : memref<72x256xf32, #tpu.memory_space<vmem>>, vector<2x256xf32>,
    %c0_94 = arith.constant 0 : index
    %c0_95 = arith.constant 0 : index
    %72 = vector.load %arg4[%c0_94, %c0_95] : memref<2x54xf32, #tpu.memory_space<vmem>>, vector<2x54xf32>
    %c0_96 = arith.constant 0 : index
    %c0_97 = arith.constant 0 : index
    %73 = vector.load %arg12[%c0_96, %c0_97] : memref<72x256xf32, #tpu.memory_space<vmem>>, vector<54x256xf32>
    %cst_98 = arith.constant dense<0.000000e+00> : vector<2x256xf32>
    %74 = tpu.matmul %72, %73, %cst_98 {dimension_numbers = #tpu.dot_dimension_numbers<[1], [0], [0], [1], [0, 0, 1, 1], [], []>} : vector<2x54xf32>, vector<54x256xf32>, vector<2x256xf32> -> vector<2x256xf32>
    %c0_99 = arith.constant 0 : index
    %c0_100 = arith.constant 0 : index
    %75 = vector.load %arg5[%c0_99, %c0_100] : memref<2x1xf32, #tpu.memory_space<vmem>>, vector<2x1xf32>
    %76 = vector.broadcast %75 : vector<2x1xf32> to vector<2x256xf32>
    %77 = arith.addf %74, %76 : vector<2x256xf32>
    %cst_101 = arith.constant 0.000000e+00 : f32
    %78 = vector.broadcast %cst_101 : f32 to vector<2x256xf32>
    %79 = arith.maximumf %77, %78 : vector<2x256xf32>
    %cst_102 = arith.constant 0.000000e+00 : f32
    %80 = vector.broadcast %cst_102 : f32 to vector<2x18x18xf32>
    %c0_103 = arith.constant 0 : index
    %c0_104 = arith.constant 0 : index
    %c0_105 = arith.constant 0 : index
    %81 = vector.load %arg11[%c0_103, %c0_104, %c0_105] : memref<2x18x18xf32, #tpu.memory_space<vmem>>, vector<2x18x18xf32>
    tpu.vector_store %arg11[%c0_103, %c0_104, %c0_105], %80 {strides = array<i32>} : memref<2x18x18xf32, #tpu.memory_space<vmem>>, vector<2x18x18xf32>,
    %82 = vector.shape_cast %79 : vector<2x256xf32> to vector<2x16x16xf32>
    %c0_106 = arith.constant 0 : index
    %c1_107 = arith.constant 1 : index
    %c1_108 = arith.constant 1 : index
    %83 = vector.load %arg11[%c0_106, %c1_107, %c1_108] : memref<2x18x18xf32, #tpu.memory_space<vmem>>, vector<2x16x16xf32>
    tpu.vector_store %arg11[%c0_106, %c1_107, %c1_108], %82 {strides = array<i32>} : memref<2x18x18xf32, #tpu.memory_space<vmem>>, vector<2x16x16xf32>,
    %c0_109 = arith.constant 0 : index
    %c0_110 = arith.constant 0 : index
    %c0_111 = arith.constant 0 : index
    %84 = vector.load %arg11[%c0_109, %c0_110, %c0_111] : memref<2x18x18xf32, #tpu.memory_space<vmem>>, vector<2x16x16xf32>
    %85 = vector.shape_cast %84 : vector<2x16x16xf32> to vector<2x256xf32>
    %c54 = arith.constant 54 : index
    %c0_112 = arith.constant 0 : index
    %86 = vector.load %arg12[%c54, %c0_112] : memref<72x256xf32, #tpu.memory_space<vmem>>, vector<2x256xf32>
    tpu.vector_store %arg12[%c54, %c0_112], %85 {strides = array<i32>} : memref<72x256xf32, #tpu.memory_space<vmem>>, vector<2x256xf32>,
    %c0_113 = arith.constant 0 : index
    %c0_114 = arith.constant 0 : index
    %c1_115 = arith.constant 1 : index
    %87 = vector.load %arg11[%c0_113, %c0_114, %c1_115] : memref<2x18x18xf32, #tpu.memory_space<vmem>>, vector<2x16x16xf32>
    %88 = vector.shape_cast %87 : vector<2x16x16xf32> to vector<2x256xf32>
    %c56 = arith.constant 56 : index
    %c0_116 = arith.constant 0 : index
    %89 = vector.load %arg12[%c56, %c0_116] : memref<72x256xf32, #tpu.memory_space<vmem>>, vector<2x256xf32>
    tpu.vector_store %arg12[%c56, %c0_116], %88 {strides = array<i32>} : memref<72x256xf32, #tpu.memory_space<vmem>>, vector<2x256xf32>,
    %c0_117 = arith.constant 0 : index
    %c0_118 = arith.constant 0 : index
    %c2_119 = arith.constant 2 : index
    %90 = vector.load %arg11[%c0_117, %c0_118, %c2_119] : memref<2x18x18xf32, #tpu.memory_space<vmem>>, vector<2x16x16xf32>
    %91 = vector.shape_cast %90 : vector<2x16x16xf32> to vector<2x256xf32>
    %c58 = arith.constant 58 : index
    %c0_120 = arith.constant 0 : index
    %92 = vector.load %arg12[%c58, %c0_120] : memref<72x256xf32, #tpu.memory_space<vmem>>, vector<2x256xf32>
    tpu.vector_store %arg12[%c58, %c0_120], %91 {strides = array<i32>} : memref<72x256xf32, #tpu.memory_space<vmem>>, vector<2x256xf32>,
    %c0_121 = arith.constant 0 : index
    %c1_122 = arith.constant 1 : index
    %c0_123 = arith.constant 0 : index
    %93 = vector.load %arg11[%c0_121, %c1_122, %c0_123] : memref<2x18x18xf32, #tpu.memory_space<vmem>>, vector<2x16x16xf32>
    %94 = vector.shape_cast %93 : vector<2x16x16xf32> to vector<2x256xf32>
    %c60 = arith.constant 60 : index
    %c0_124 = arith.constant 0 : index
    %95 = vector.load %arg12[%c60, %c0_124] : memref<72x256xf32, #tpu.memory_space<vmem>>, vector<2x256xf32>
    tpu.vector_store %arg12[%c60, %c0_124], %94 {strides = array<i32>} : memref<72x256xf32, #tpu.memory_space<vmem>>, vector<2x256xf32>,
    %c0_125 = arith.constant 0 : index
    %c1_126 = arith.constant 1 : index
    %c1_127 = arith.constant 1 : index
    %96 = vector.load %arg11[%c0_125, %c1_126, %c1_127] : memref<2x18x18xf32, #tpu.memory_space<vmem>>, vector<2x16x16xf32>
    %97 = vector.shape_cast %96 : vector<2x16x16xf32> to vector<2x256xf32>
    %c62 = arith.constant 62 : index
    %c0_128 = arith.constant 0 : index
    %98 = vector.load %arg12[%c62, %c0_128] : memref<72x256xf32, #tpu.memory_space<vmem>>, vector<2x256xf32>
    tpu.vector_store %arg12[%c62, %c0_128], %97 {strides = array<i32>} : memref<72x256xf32, #tpu.memory_space<vmem>>, vector<2x256xf32>,
    %c0_129 = arith.constant 0 : index
    %c1_130 = arith.constant 1 : index
    %c2_131 = arith.constant 2 : index
    %99 = vector.load %arg11[%c0_129, %c1_130, %c2_131] : memref<2x18x18xf32, #tpu.memory_space<vmem>>, vector<2x16x16xf32>
    %100 = vector.shape_cast %99 : vector<2x16x16xf32> to vector<2x256xf32>
    %c64 = arith.constant 64 : index
    %c0_132 = arith.constant 0 : index
    %101 = vector.load %arg12[%c64, %c0_132] : memref<72x256xf32, #tpu.memory_space<vmem>>, vector<2x256xf32>
    tpu.vector_store %arg12[%c64, %c0_132], %100 {strides = array<i32>} : memref<72x256xf32, #tpu.memory_space<vmem>>, vector<2x256xf32>,
    %c0_133 = arith.constant 0 : index
    %c2_134 = arith.constant 2 : index
    %c0_135 = arith.constant 0 : index
    %102 = vector.load %arg11[%c0_133, %c2_134, %c0_135] : memref<2x18x18xf32, #tpu.memory_space<vmem>>, vector<2x16x16xf32>
    %103 = vector.shape_cast %102 : vector<2x16x16xf32> to vector<2x256xf32>
    %c66 = arith.constant 66 : index
    %c0_136 = arith.constant 0 : index
    %104 = vector.load %arg12[%c66, %c0_136] : memref<72x256xf32, #tpu.memory_space<vmem>>, vector<2x256xf32>
    tpu.vector_store %arg12[%c66, %c0_136], %103 {strides = array<i32>} : memref<72x256xf32, #tpu.memory_space<vmem>>, vector<2x256xf32>,
    %c0_137 = arith.constant 0 : index
    %c2_138 = arith.constant 2 : index
    %c1_139 = arith.constant 1 : index
    %105 = vector.load %arg11[%c0_137, %c2_138, %c1_139] : memref<2x18x18xf32, #tpu.memory_space<vmem>>, vector<2x16x16xf32>
    %106 = vector.shape_cast %105 : vector<2x16x16xf32> to vector<2x256xf32>
    %c68 = arith.constant 68 : index
    %c0_140 = arith.constant 0 : index
    %107 = vector.load %arg12[%c68, %c0_140] : memref<72x256xf32, #tpu.memory_space<vmem>>, vector<2x256xf32>
    tpu.vector_store %arg12[%c68, %c0_140], %106 {strides = array<i32>} : memref<72x256xf32, #tpu.memory_space<vmem>>, vector<2x256xf32>,
    %c0_141 = arith.constant 0 : index
    %c2_142 = arith.constant 2 : index
    %c2_143 = arith.constant 2 : index
    %108 = vector.load %arg11[%c0_141, %c2_142, %c2_143] : memref<2x18x18xf32, #tpu.memory_space<vmem>>, vector<2x16x16xf32>
    %109 = vector.shape_cast %108 : vector<2x16x16xf32> to vector<2x256xf32>
    %c70 = arith.constant 70 : index
    %c0_144 = arith.constant 0 : index
    %110 = vector.load %arg12[%c70, %c0_144] : memref<72x256xf32, #tpu.memory_space<vmem>>, vector<2x256xf32>
    tpu.vector_store %arg12[%c70, %c0_144], %109 {strides = array<i32>} : memref<72x256xf32, #tpu.memory_space<vmem>>, vector<2x256xf32>,
    %c0_145 = arith.constant 0 : index
    %c0_146 = arith.constant 0 : index
    %111 = vector.load %arg6[%c0_145, %c0_146] : memref<4x72xf32, #tpu.memory_space<vmem>>, vector<4x72xf32>
    %c0_147 = arith.constant 0 : index
    %c0_148 = arith.constant 0 : index
    %112 = vector.load %arg12[%c0_147, %c0_148] : memref<72x256xf32, #tpu.memory_space<vmem>>, vector<72x256xf32>
    %cst_149 = arith.constant dense<0.000000e+00> : vector<4x256xf32>
    %113 = tpu.matmul %111, %112, %cst_149 {dimension_numbers = #tpu.dot_dimension_numbers<[1], [0], [0], [1], [0, 0, 1, 1], [], []>} : vector<4x72xf32>, vector<72x256xf32>, vector<4x256xf32> -> vector<4x256xf32>
    %c0_150 = arith.constant 0 : index
    %c0_151 = arith.constant 0 : index
    %114 = vector.load %arg7[%c0_150, %c0_151] : memref<4x1xf32, #tpu.memory_space<vmem>>, vector<4x1xf32>
    %115 = vector.broadcast %114 : vector<4x1xf32> to vector<4x256xf32>
    %116 = arith.addf %113, %115 : vector<4x256xf32>
    %cst_152 = arith.constant 0.000000e+00 : f32
    %117 = vector.broadcast %cst_152 : f32 to vector<4x256xf32>
    %118 = arith.maximumf %116, %117 : vector<4x256xf32>
    %119 = arith.addf %118, %1 : vector<4x256xf32>
    %120 = vector.shape_cast %119 : vector<4x256xf32> to vector<1x4x256xf32>
    %c0_153 = arith.constant 0 : index
    %c0_154 = arith.constant 0 : index
    %c0_155 = arith.constant 0 : index
    %121 = vector.load %arg8[%c0_153, %c0_154, %c0_155] : memref<1x4x256xf32, #tpu.memory_space<vmem>>, vector<1x4x256xf32>
    tpu.vector_store %arg8[%c0_153, %c0_154, %c0_155], %120 {strides = array<i32>} : memref<1x4x256xf32, #tpu.memory_space<vmem>>, vector<1x4x256xf32>,
    return
  }
  func.func @transform_0(%arg0: i32) -> (i32, i32, i32) {
    %c0_i32 = arith.constant 0 : i32
    %c0_i32_0 = arith.constant 0 : i32
    %c0_i32_1 = arith.constant 0 : i32
    return %arg0, %c0_i32, %c0_i32_0 : i32, i32, i32
  }
  func.func @transform_1(%arg0: i32) -> (i32, i32) {
    %c0_i32 = arith.constant 0 : i32
    %c0_i32_0 = arith.constant 0 : i32
    %c0_i32_1 = arith.constant 0 : i32
    return %c0_i32, %c0_i32_0 : i32, i32
  }
  func.func @transform_2(%arg0: i32) -> (i32, i32) {
    %c0_i32 = arith.constant 0 : i32
    %c0_i32_0 = arith.constant 0 : i32
    %c0_i32_1 = arith.constant 0 : i32
    return %c0_i32, %c0_i32_0 : i32, i32
  }
  func.func @transform_3(%arg0: i32) -> (i32, i32) {
    %c0_i32 = arith.constant 0 : i32
    %c0_i32_0 = arith.constant 0 : i32
    %c0_i32_1 = arith.constant 0 : i32
    return %c0_i32, %c0_i32_0 : i32, i32
  }
  func.func @transform_4(%arg0: i32) -> (i32, i32) {
    %c0_i32 = arith.constant 0 : i32
    %c0_i32_0 = arith.constant 0 : i32
    %c0_i32_1 = arith.constant 0 : i32
    return %c0_i32, %c0_i32_0 : i32, i32
  }
  func.func @transform_5(%arg0: i32) -> (i32, i32) {
    %c0_i32 = arith.constant 0 : i32
    %c0_i32_0 = arith.constant 0 : i32
    %c0_i32_1 = arith.constant 0 : i32
    return %c0_i32, %c0_i32_0 : i32, i32
  }
  func.func @transform_6(%arg0: i32) -> (i32, i32) {
    %c0_i32 = arith.constant 0 : i32
    %c0_i32_0 = arith.constant 0 : i32
    %c0_i32_1 = arith.constant 0 : i32
    return %c0_i32, %c0_i32_0 : i32, i32
  }
  func.func @transform_7(%arg0: i32) -> (i32, i32, i32) {
    %c0_i32 = arith.constant 0 : i32
    %c0_i32_0 = arith.constant 0 : i32
    %c0_i32_1 = arith.constant 0 : i32
    return %arg0, %c0_i32, %c0_i32_0 : i32, i32, i32
  }
}

</mosaic_0001>

<llo_original>
// kernel: dcr_block.1
$region0: #{dcr_block.1}
  #allocation0 [shape = 'u32[]', space=smem, size = 0x4, offset = 0x4, fixed_abs, tag = 'smem constant byte address 0x4 - core index']
  #allocation1 [shape = 'u32[144,128]{1,0:T(1,128)}', space=vmem, size = 0x12000, scoped, tag = 'internal scratch']
  #allocation2 [shape = 'f32[4,18,18]{2,1,0:T(8,128)}', space=vmem, size = 0xc000, scoped, tag = 'scratch operand']
  #allocation3 [shape = 'f32[2,18,18]{2,1,0:T(8,128)}', space=vmem, size = 0x6000, scoped, tag = 'scratch operand']
  #allocation4 [shape = 'f32[2,18,18]{2,1,0:T(8,128)}', space=vmem, size = 0x6000, scoped, tag = 'scratch operand']
  #allocation5 [shape = 'f32[72,256]{1,0:T(8,128)}', space=vmem, size = 0x12000, scoped, tag = 'scratch operand']
  %s0 = inlined_call_operand.vmem [shape: f32[2,4,256], index: 0, kind: input, shape index: {}]
  %s1 = inlined_call_operand.vmem [shape: f32[2,36], index: 1, kind: input, shape index: {}]
  %s2 = inlined_call_operand.vmem [shape: f32[2,1], index: 2, kind: input, shape index: {}]
  %s3 = inlined_call_operand.vmem [shape: f32[2,54], index: 3, kind: input, shape index: {}]
  %s4 = inlined_call_operand.vmem [shape: f32[2,1], index: 4, kind: input, shape index: {}]
  %s5 = inlined_call_operand.vmem [shape: f32[4,72], index: 5, kind: input, shape index: {}]
  %s6 = inlined_call_operand.vmem [shape: f32[4,1], index: 6, kind: input, shape index: {}]
  %s7 = inlined_call_operand.vmem [shape: f32[2,4,256], index: 7, kind: output, shape index: {}]
  %s8 = sld [smem:[#allocation0]]
  $region61: #{dcr_block.1} parent=0
    _
  %s10 = ssub.s32 1, %s8
  %s11 = scalar_select 0, %s10, %s8
  loop: start=0, step=1, limit=4
  $region2: #{dcr_block.1} parent=0 // loop_pre_header
    _
  $region3: #{dcr_block.1} parent=0 // loop_header
    %s13 = sphi 0, %s17
    %p14 = scmp.ge.s32.totalorder %s13, 4
    %s23 = sphi 0, %s25
    %s26 = sphi 0, %s23
    %s27 = sphi 0, %s26
    %s43 = sphi 0, %s27
    %s47 = sphi 0, %s47
    %s49 = sphi 0, %s47
    %s50 = sphi 0, %s49
    %s64 = sphi 0, %s50
    %s68 = sphi 0, %s68
    %s70 = sphi 0, %s68
    %s71 = sphi 0, %s70
    %s85 = sphi 0, %s71
    %s89 = sphi 0, %s89
    %s91 = sphi 0, %s89
    %s92 = sphi 0, %s91
    %s106 = sphi 0, %s92
    %s110 = sphi 0, %s110
    %s112 = sphi 0, %s110
    %s113 = sphi 0, %s112
    %s127 = sphi 0, %s113
    %s131 = sphi 0, %s131
    %s133 = sphi 0, %s131
    %s134 = sphi 0, %s133
    %s148 = sphi 0, %s134
    %s152 = sphi 0, %s152
    %s154 = sphi 0, %s152
    %s155 = sphi 0, %s154
    %s169 = sphi 0, %s155
    %s175 = sphi 0, %s177
    %s178 = sphi 0, %s175
    %s179 = sphi 0, %s178
    %s195 = sphi 0, %s179
  $region4: #{dcr_block.1} parent=0 // loop_header_branch
    %16 = sbr.rel (%p14) target = $region8
  $region5: #{dcr_block.1} parent=0 // loop_body
    %s18 = ssub.s32 %s13, 1
    %s19 = ssub.s32 %s13, 2
    %s20 = sadd.s32 %s13, 1
    %s21 = ssub.s32 %s13, %s20
    %p22 = scmp.eq.s32.totalorder %s21, 0
    %s24 = sadd.s32 %s23, 1
    %s25 = scalar_select %p22, %s23, %s24
    %p28 = pneg %p22
    %p29 = scmp.eq.s32.totalorder %s13, 1
    %p30 = por %p28, %p29
    %p31 = scmp.ne.s32.totalorder %s23, %s26
    %p32 = scmp.eq.s32.totalorder %s13, 0
    %p33 = por %p31, %p32
    %p34 = scmp.ne.s32.totalorder %s23, %s26
    %p35 = scmp.eq.s32.totalorder %s18, 1
    %p36 = por %p34, %p35
    %p37 = scmp.ne.s32.totalorder %s26, %s27
    %p38 = scmp.eq.s32.totalorder %s18, 0
    %p39 = por %p37, %p38
    %p40 = scmp.ne.s32.totalorder %s26, %s27
    %p41 = scmp.eq.s32.totalorder %s19, 1
    %p42 = por %p40, %p41
    %p44 = scmp.ne.s32.totalorder %s27, %s43
    %p45 = scmp.eq.s32.totalorder %s19, 0
    %p46 = por %p44, %p45
    %s48 = sadd.s32 %s47, 1
    %p51 = scmp.eq.s32.totalorder %s13, 1
    %p52 = scmp.ne.s32.totalorder %s47, %s49
    %p53 = scmp.eq.s32.totalorder %s13, 0
    %p54 = por %p52, %p53
    %p55 = scmp.ne.s32.totalorder %s47, %s49
    %p56 = scmp.eq.s32.totalorder %s18, 1
    %p57 = por %p55, %p56
    %p58 = scmp.ne.s32.totalorder %s49, %s50
    %p59 = scmp.eq.s32.totalorder %s18, 0
    %p60 = por %p58, %p59
    %p61 = scmp.ne.s32.totalorder %s49, %s50
    %p62 = scmp.eq.s32.totalorder %s19, 1
    %p63 = por %p61, %p62
    %p65 = scmp.ne.s32.totalorder %s50, %s64
    %p66 = scmp.eq.s32.totalorder %s19, 0
    %p67 = por %p65, %p66
    %s69 = sadd.s32 %s68, 1
    %p72 = scmp.eq.s32.totalorder %s13, 1
    %p73 = scmp.ne.s32.totalorder %s68, %s70
    %p74 = scmp.eq.s32.totalorder %s13, 0
    %p75 = por %p73, %p74
    %p76 = scmp.ne.s32.totalorder %s68, %s70
    %p77 = scmp.eq.s32.totalorder %s18, 1
    %p78 = por %p76, %p77
    %p79 = scmp.ne.s32.totalorder %s70, %s71
    %p80 = scmp.eq.s32.totalorder %s18, 0
    %p81 = por %p79, %p80
    %p82 = scmp.ne.s32.totalorder %s70, %s71
    %p83 = scmp.eq.s32.totalorder %s19, 1
    %p84 = por %p82, %p83
    %p86 = scmp.ne.s32.totalorder %s71, %s85
    %p87 = scmp.eq.s32.totalorder %s19, 0
    %p88 = por %p86, %p87
    %s90 = sadd.s32 %s89, 1
    %p93 = scmp.eq.s32.totalorder %s13, 1
    %p94 = scmp.ne.s32.totalorder %s89, %s91
    %p95 = scmp.eq.s32.totalorder %s13, 0
    %p96 = por %p94, %p95
    %p97 = scmp.ne.s32.totalorder %s89, %s91
    %p98 = scmp.eq.s32.totalorder %s18, 1
    %p99 = por %p97, %p98
    %p100 = scmp.ne.s32.totalorder %s91, %s92
    %p101 = scmp.eq.s32.totalorder %s18, 0
    %p102 = por %p100, %p101
    %p103 = scmp.ne.s32.totalorder %s91, %s92
    %p104 = scmp.eq.s32.totalorder %s19, 1
    %p105 = por %p103, %p104
    %p107 = scmp.ne.s32.totalorder %s92, %s106
    %p108 = scmp.eq.s32.totalorder %s19, 0
    %p109 = por %p107, %p108
    %s111 = sadd.s32 %s110, 1
    %p114 = scmp.eq.s32.totalorder %s13, 1
    %p115 = scmp.ne.s32.totalorder %s110, %s112
    %p116 = scmp.eq.s32.totalorder %s13, 0
    %p117 = por %p115, %p116
    %p118 = scmp.ne.s32.totalorder %s110, %s112
    %p119 = scmp.eq.s32.totalorder %s18, 1
    %p120 = por %p118, %p119
    %p121 = scmp.ne.s32.totalorder %s112, %s113
    %p122 = scmp.eq.s32.totalorder %s18, 0
    %p123 = por %p121, %p122
    %p124 = scmp.ne.s32.totalorder %s112, %s113
    %p125 = scmp.eq.s32.totalorder %s19, 1
    %p126 = por %p124, %p125
    %p128 = scmp.ne.s32.totalorder %s113, %s127
    %p129 = scmp.eq.s32.totalorder %s19, 0
    %p130 = por %p128, %p129
    %s132 = sadd.s32 %s131, 1
    %p135 = scmp.eq.s32.totalorder %s13, 1
    %p136 = scmp.ne.s32.totalorder %s131, %s133
    %p137 = scmp.eq.s32.totalorder %s13, 0
    %p138 = por %p136, %p137
    %p139 = scmp.ne.s32.totalorder %s131, %s133
    %p140 = scmp.eq.s32.totalorder %s18, 1
    %p141 = por %p139, %p140
    %p142 = scmp.ne.s32.totalorder %s133, %s134
    %p143 = scmp.eq.s32.totalorder %s18, 0
    %p144 = por %p142, %p143
    %p145 = scmp.ne.s32.totalorder %s133, %s134
    %p146 = scmp.eq.s32.totalorder %s19, 1
    %p147 = por %p145, %p146
    %p149 = scmp.ne.s32.totalorder %s134, %s148
    %p150 = scmp.eq.s32.totalorder %s19, 0
    %p151 = por %p149, %p150
    %s153 = sadd.s32 %s152, 1
    %p156 = scmp.eq.s32.totalorder %s13, 1
    %p157 = scmp.ne.s32.totalorder %s152, %s154
    %p158 = scmp.eq.s32.totalorder %s13, 0
    %p159 = por %p157, %p158
    %p160 = scmp.ne.s32.totalorder %s152, %s154
    %p161 = scmp.eq.s32.totalorder %s18, 1
    %p162 = por %p160, %p161
    %p163 = scmp.ne.s32.totalorder %s154, %s155
    %p164 = scmp.eq.s32.totalorder %s18, 0
    %p165 = por %p163, %p164
    %p166 = scmp.ne.s32.totalorder %s154, %s155
    %p167 = scmp.eq.s32.totalorder %s19, 1
    %p168 = por %p166, %p167
    %p170 = scmp.ne.s32.totalorder %s155, %s169
    %p171 = scmp.eq.s32.totalorder %s19, 0
    %p172 = por %p170, %p171
    %s173 = ssub.s32 %s13, %s20
    %p174 = scmp.eq.s32.totalorder %s173, 0
    %s176 = sadd.s32 %s175, 1
    %s177 = scalar_select %p174, %s175, %s176
    %p180 = pneg %p174
    %p181 = scmp.eq.s32.totalorder %s13, 1
    %p182 = por %p180, %p181
    %p183 = scmp.ne.s32.totalorder %s175, %s178
    %p184 = scmp.eq.s32.totalorder %s13, 0
    %p185 = por %p183, %p184
    %p186 = scmp.ne.s32.totalorder %s175, %s178
    %p187 = scmp.eq.s32.totalorder %s18, 1
    %p188 = por %p186, %p187
    %p189 = scmp.ne.s32.totalorder %s178, %s179
    %p190 = scmp.eq.s32.totalorder %s18, 0
    %p191 = por %p189, %p190
    %p192 = scmp.ne.s32.totalorder %s178, %s179
    %p193 = scmp.eq.s32.totalorder %s19, 1
    %p194 = por %p192, %p193
    %p196 = scmp.ne.s32.totalorder %s179, %s195
    %p197 = scmp.eq.s32.totalorder %s19, 0
    %p198 = por %p196, %p197
    %p199 = scmp.le.s32.totalorder 1, %s13
    %p200 = scmp.lt.s32.totalorder %s13, 3
    %p201 = pnand %p199, %p200
    %p202 = pneg %p201
    // Predicated region
    $region9: #{dcr_block.1} parent=5 // pred_check
      _
    $region10: #{dcr_block.1} parent=5 // pred_check_branch
      %204 = sbr.rel (%p201) target = $region12
    $region11: #{dcr_block.1} parent=5 // pred_region
      %s205 = ssub.s32 %s13, 1
      // Predicated region
      $region13: #{dcr_block.1} parent=11 // pred_check
        %p206 = pneg %p60
      $region14: #{dcr_block.1} parent=11 // pred_check_branch
        %208 = sbr.rel (%p206) target = $region16
      $region15: #{dcr_block.1} parent=11 // pred_region
        _
      $region16: #{dcr_block.1} parent=11 // pred_fallthru
        _
      // Predicated region
      $region17: #{dcr_block.1} parent=11 // pred_check
        %p209 = pneg %p81
      $region18: #{dcr_block.1} parent=11 // pred_check_branch
        %211 = sbr.rel (%p209) target = $region20
      $region19: #{dcr_block.1} parent=11 // pred_region
        _
      $region20: #{dcr_block.1} parent=11 // pred_fallthru
        _
      // Predicated region
      $region21: #{dcr_block.1} parent=11 // pred_check
        %p212 = pneg %p102
      $region22: #{dcr_block.1} parent=11 // pred_check_branch
        %214 = sbr.rel (%p212) target = $region24
      $region23: #{dcr_block.1} parent=11 // pred_region
        _
      $region24: #{dcr_block.1} parent=11 // pred_fallthru
        _
      // Predicated region
      $region25: #{dcr_block.1} parent=11 // pred_check
        %p215 = pneg %p123
      $region26: #{dcr_block.1} parent=11 // pred_check_branch
        %217 = sbr.rel (%p215) target = $region28
      $region27: #{dcr_block.1} parent=11 // pred_region
        _
      $region28: #{dcr_block.1} parent=11 // pred_fallthru
        _
      // Predicated region
      $region29: #{dcr_block.1} parent=11 // pred_check
        %p218 = pneg %p144
      $region30: #{dcr_block.1} parent=11 // pred_check_branch
        %220 = sbr.rel (%p218) target = $region32
      $region31: #{dcr_block.1} parent=11 // pred_region
        _
      $region32: #{dcr_block.1} parent=11 // pred_fallthru
        _
      // Predicated region
      $region33: #{dcr_block.1} parent=11 // pred_check
        %p221 = pneg %p165
      $region34: #{dcr_block.1} parent=11 // pred_check_branch
        %223 = sbr.rel (%p221) target = $region36
      $region35: #{dcr_block.1} parent=11 // pred_region
        _
      $region36: #{dcr_block.1} parent=11 // pred_fallthru
        _
    $region12: #{dcr_block.1} parent=5 // pred_fallthru
      _
    %p224 = scmp.lt.s32.totalorder %s13, 2
    // Predicated region
    $region37: #{dcr_block.1} parent=5 // pred_check
      %p225 = pneg %p224
    $region38: #{dcr_block.1} parent=5 // pred_check_branch
      %227 = sbr.rel (%p225) target = $region40
    $region39: #{dcr_block.1} parent=5 // pred_region
      // Predicated region
      $region41: #{dcr_block.1} parent=39 // pred_check
        %p228 = pneg %p33
      $region42: #{dcr_block.1} parent=39 // pred_check_branch
        %230 = sbr.rel (%p228) target = $region44
      $region43: #{dcr_block.1} parent=39 // pred_region
        %p231 = scmp.lt.s32.totalorder %s13, 1
        %s232 = scalar_select %p231, %s13, 1
        %s233 = smul.addr %s232, 2
        %s234 = smul.addr %s233, 4
        %s235 = scalar_lea.vmem %s0, %s234
      $region44: #{dcr_block.1} parent=39 // pred_fallthru
        _
    $region40: #{dcr_block.1} parent=5 // pred_fallthru
      _
    %p236 = scmp.le.s32.totalorder 1, %s13
    %p237 = scmp.lt.s32.totalorder %s13, 3
    %p238 = pnand %p236, %p237
    %p239 = pneg %p238
    // Predicated region
    $region45: #{dcr_block.1} parent=5 // pred_check
      _
    $region46: #{dcr_block.1} parent=5 // pred_check_branch
      %241 = sbr.rel (%p238) target = $region48
    $region47: #{dcr_block.1} parent=5 // pred_region
      %s242 = ssub.s32 %s13, 1
      %p243 = scmp.lt.s32.totalorder %s18, 1
      %s244 = scalar_select %p243, %s18, 1
      %s245 = smul.addr %s244, 2
      %s246 = smul.addr %s245, 4
      %s247 = scalar_lea.vmem %s0, %s246
      %p248 = pneg %p39
      %p249 = pneg %p36
      %p250 = pneg %p60
      %p251 = pneg %p57
      %p252 = pneg %p81
      %p253 = pneg %p78
      %p254 = pneg %p102
      %p255 = pneg %p99
      %p256 = pneg %p123
      %p257 = pneg %p120
      %p258 = pneg %p144
      %p259 = pneg %p141
      %p260 = pneg %p165
      %p261 = pneg %p162
      %p262 = pneg %p191
      %p263 = pneg %p188
      %p264 = scmp.lt.s32.totalorder %s18, 1
      %s265 = scalar_select %p264, %s18, 1
      %s266 = smul.addr %s265, 2
      %s267 = smul.addr %s266, 4
      %s268 = scalar_lea.vmem %s7, %s267
      %p269 = scmp.lt.s32.totalorder %s18, 1
      %s270 = scalar_select %p269, %s18, 1
      %s271 = smul.addr %s270, 2
      %s272 = smul.addr %s271, 4
      %s273 = scalar_lea.vmem %s0, %s272
      %p274 = scmp.lt.s32.totalorder %s18, 1
      %s275 = scalar_select %p274, %s18, 1
      %s276 = smul.addr %s275, 2
      %s277 = smul.addr %s276, 4
      %s278 = scalar_lea.vmem %s7, %s277
      %v279 = vld [vmem:[%s273] sm:$0xff]
      %vm280 = vcmask 146432
      %281 = vst.msk [vmem:[#allocation2] sm:$0xff] %vm280, 0.0
      %282 = vst.msk [vmem:[#allocation2 + $0x8] sm:$0xff] %vm280, 0.0
      %vm283 = vcmask 140288
      %284 = vst.msk [vmem:[#allocation2 + $0x10] sm:$0x3] %vm283, 0.0
      %285 = vst.msk [vmem:[#allocation2 + $0x18] sm:$0xff] %vm280, 0.0
      %286 = vst.msk [vmem:[#allocation2 + $0x20] sm:$0xff] %vm280, 0.0
      %287 = vst.msk [vmem:[#allocation2 + $0x28] sm:$0x3] %vm283, 0.0
      %288 = vst.msk [vmem:[#allocation2 + $0x30] sm:$0xff] %vm280, 0.0
      %289 = vst.msk [vmem:[#allocation2 + $0x38] sm:$0xff] %vm280, 0.0
      %290 = vst.msk [vmem:[#allocation2 + $0x40] sm:$0x3] %vm283, 0.0
      %291 = vst.msk [vmem:[#allocation2 + $0x48] sm:$0xff] %vm280, 0.0
      %292 = vst.msk [vmem:[#allocation2 + $0x50] sm:$0xff] %vm280, 0.0
      %293 = vst.msk [vmem:[#allocation2 + $0x58] sm:$0x3] %vm283, 0.0
      %v295 = vrot.slane %v279, 4
      %297 = vrot.lane.b32.xlu0 %v279, 112
      %v298 = vpop.permute.xlu0 %297
      %v299 = vrot.slane %v298, 4
      %301 = vrot.lane.b32.xlu0 %v279, 96
      %v302 = vpop.permute.xlu0 %301
      %v303 = vrot.slane %v302, 4
      %305 = vrot.lane.b32.xlu0 %v279, 80
      %v306 = vpop.permute.xlu0 %305
      %v307 = vrot.slane %v306, 4
      %309 = vrot.lane.b32.xlu0 %v279, 64
      %v310 = vpop.permute.xlu0 %309
      %v311 = vrot.slane %v310, 4
      %313 = vrot.lane.b32.xlu0 %v279, 48
      %v314 = vpop.permute.xlu0 %313
      %v315 = vrot.slane %v314, 4
      %317 = vrot.lane.b32.xlu0 %v279, 32
      %v318 = vpop.permute.xlu0 %317
      %v319 = vrot.slane %v318, 4
      %321 = vrot.lane.b32.xlu0 %v279, 16
      %v322 = vpop.permute.xlu0 %321
      %v323 = vrot.slane %v322, 4
      %v332 = vcombine.low %v279, %v302
      %v334 = vunpack.c.l.s4 1983009808
      %v335 = vunpack.c.0.s8 %v334
      %v336 = vlaneseq
      %v337 = vshrl.u32 %v336, 7
      %v338 = vsub.s32 %v335, %v337
      %v339 = vrot.slane %v332, %v338
      %v340 = vcombine.low %v298, %v306
      %v342 = vunpack.c.l.s4 1983009808
      %v343 = vunpack.c.0.s8 %v342
      %v344 = vlaneseq
      %v345 = vshrl.u32 %v344, 7
      %v346 = vsub.s32 %v343, %v345
      %v347 = vrot.slane %v340, %v346
      %v348 = vcombine.low %v339, %v347
      %v349 = vcombine.high %v339, %v347
      %v351 = vunpack.c.l.s4 1934713408
      %v352 = vunpack.c.0.s8 %v351
      %v353 = vlaneseq
      %v354 = vshrl.u32 %v353, 7
      %v355 = vsub.s32 %v352, %v354
      %v356 = vrot.slane %v348, %v355
      %v358 = vunpack.c.l.s4 1934713408
      %v359 = vunpack.c.0.s8 %v358
      %v360 = vlaneseq
      %v361 = vshrl.u32 %v360, 7
      %v362 = vsub.s32 %v359, %v361
      %v363 = vrot.slane %v349, %v362
      %v364 = vcombine.high %v356, 0.0
      %v365 = vcombine.high %v363, 0.0
      %v366 = vcombine.low %v310, %v318
      %v368 = vunpack.c.l.s4 1983009808
      %v369 = vunpack.c.0.s8 %v368
      %v370 = vlaneseq
      %v371 = vshrl.u32 %v370, 7
      %v372 = vsub.s32 %v369, %v371
      %v373 = vrot.slane %v366, %v372
      %v374 = vcombine.low %v314, %v322
      %v376 = vunpack.c.l.s4 1983009808
      %v377 = vunpack.c.0.s8 %v376
      %v378 = vlaneseq
      %v379 = vshrl.u32 %v378, 7
      %v380 = vsub.s32 %v377, %v379
      %v381 = vrot.slane %v374, %v380
      %v382 = vcombine.low %v373, %v381
      %v383 = vcombine.high %v373, %v381
      %v385 = vunpack.c.l.s4 1934713408
      %v386 = vunpack.c.0.s8 %v385
      %v387 = vlaneseq
      %v388 = vshrl.u32 %v387, 7
      %v389 = vsub.s32 %v386, %v388
      %v390 = vrot.slane %v382, %v389
      %v392 = vunpack.c.l.s4 1934713408
      %v393 = vunpack.c.0.s8 %v392
      %v394 = vlaneseq
      %v395 = vshrl.u32 %v394, 7
      %v396 = vsub.s32 %v393, %v395
      %v397 = vrot.slane %v383, %v396
      %v398 = vcombine.high %v390, 0.0
      %v399 = vcombine.high %v397, 0.0
      %v400 = vcombine.low %v295, %v303
      %v402 = vunpack.c.l.s4 1983009808
      %v403 = vunpack.c.0.s8 %v402
      %v404 = vlaneseq
      %v405 = vshrl.u32 %v404, 7
      %v406 = vsub.s32 %v403, %v405
      %v407 = vrot.slane %v400, %v406
      %v408 = vcombine.low %v299, %v307
      %v410 = vunpack.c.l.s4 1983009808
      %v411 = vunpack.c.0.s8 %v410
      %v412 = vlaneseq
      %v413 = vshrl.u32 %v412, 7
      %v414 = vsub.s32 %v411, %v413
      %v415 = vrot.slane %v408, %v414
      %v416 = vcombine.low %v407, %v415
      %v417 = vcombine.high %v407, %v415
      %v419 = vunpack.c.l.s4 1934713408
      %v420 = vunpack.c.0.s8 %v419
      %v421 = vlaneseq
      %v422 = vshrl.u32 %v421, 7
      %v423 = vsub.s32 %v420, %v422
      %v424 = vrot.slane %v416, %v423
      %v426 = vunpack.c.l.s4 1934713408
      %v427 = vunpack.c.0.s8 %v426
      %v428 = vlaneseq
      %v429 = vshrl.u32 %v428, 7
      %v430 = vsub.s32 %v427, %v429
      %v431 = vrot.slane %v417, %v430
      %v432 = vcombine.high %v424, 0.0
      %v433 = vcombine.high %v431, 0.0
      %v434 = vcombine.low %v311, %v319
      %v436 = vunpack.c.l.s4 1983009808
      %v437 = vunpack.c.0.s8 %v436
      %v438 = vlaneseq
      %v439 = vshrl.u32 %v438, 7
      %v440 = vsub.s32 %v437, %v439
      %v441 = vrot.slane %v434, %v440
      %v442 = vcombine.low %v315, %v323
      %v444 = vunpack.c.l.s4 1983009808
      %v445 = vunpack.c.0.s8 %v444
      %v446 = vlaneseq
      %v447 = vshrl.u32 %v446, 7
      %v448 = vsub.s32 %v445, %v447
      %v449 = vrot.slane %v442, %v448
      %v450 = vcombine.low %v441, %v449
      %v451 = vcombine.high %v441, %v449
      %v453 = vunpack.c.l.s4 1934713408
      %v454 = vunpack.c.0.s8 %v453
      %v455 = vlaneseq
      %v456 = vshrl.u32 %v455, 7
      %v457 = vsub.s32 %v454, %v456
      %v458 = vrot.slane %v450, %v457
      %v460 = vunpack.c.l.s4 1934713408
      %v461 = vunpack.c.0.s8 %v460
      %v462 = vlaneseq
      %v463 = vshrl.u32 %v462, 7
      %v464 = vsub.s32 %v461, %v463
      %v465 = vrot.slane %v451, %v464
      %v466 = vcombine.high %v458, 0.0
      %v467 = vcombine.high %v465, 0.0
      %v484 = vcombine.low %v356, %v390
      %v485 = vcombine.low %v424, %v458
      %v486 = vcombine.low %v364, %v398
      %v487 = vcombine.low %v432, %v466
      %v488 = vcombine.low %v363, %v397
      %v489 = vcombine.low %v431, %v465
      %v490 = vcombine.low %v365, %v399
      %v491 = vcombine.low %v433, %v467
      %492 = vrot.lane.b32.xlu0 %v484, 1
      %v493 = vpop.permute.xlu0 %492
      %494 = vrot.lane.b32.xlu0 %v485, 1
      %v495 = vpop.permute.xlu0 %494
      %496 = vrot.lane.b32.xlu0 %v486, 1
      %v497 = vpop.permute.xlu0 %496
      %498 = vrot.lane.b32.xlu0 %v487, 1
      %v499 = vpop.permute.xlu0 %498
      %500 = vrot.lane.b32.xlu0 %v488, 1
      %v501 = vpop.permute.xlu0 %500
      %502 = vrot.lane.b32.xlu0 %v489, 1
      %v503 = vpop.permute.xlu0 %502
      %504 = vrot.lane.b32.xlu0 %v490, 1
      %v505 = vpop.permute.xlu0 %504
      %506 = vrot.lane.b32.xlu0 %v491, 1
      %v507 = vpop.permute.xlu0 %506
      %vm516 = vcmask 138248
      %517 = vst.msk [vmem:[#allocation2 + $0x1] sm:$0xff] %vm516, %v493
      %518 = vst.msk [vmem:[#allocation2 + $0x9] sm:$0xff] %vm516, %v495
      %519 = vst.msk [vmem:[#allocation2 + $0x19] sm:$0xff] %vm516, %v497
      %520 = vst.msk [vmem:[#allocation2 + $0x21] sm:$0xff] %vm516, %v499
      %521 = vst.msk [vmem:[#allocation2 + $0x31] sm:$0xff] %vm516, %v501
      %522 = vst.msk [vmem:[#allocation2 + $0x39] sm:$0xff] %vm516, %v503
      %523 = vst.msk [vmem:[#allocation2 + $0x49] sm:$0xff] %vm516, %v505
      %524 = vst.msk [vmem:[#allocation2 + $0x51] sm:$0xff] %vm516, %v507
      %v525 = vld [vmem:[#allocation2] sm:$0xff]
      %v526 = vld [vmem:[#allocation2 + $0x8] sm:$0xff]
      %v527 = vld [vmem:[#allocation2 + $0x18] sm:$0xff]
      %v528 = vld [vmem:[#allocation2 + $0x20] sm:$0xff]
      %v529 = vld [vmem:[#allocation2 + $0x30] sm:$0xff]
      %v530 = vld [vmem:[#allocation2 + $0x38] sm:$0xff]
      %v531 = vld [vmem:[#allocation2 + $0x48] sm:$0xff]
      %v532 = vld [vmem:[#allocation2 + $0x50] sm:$0xff]
      %v533 = vcombine.low %v525, %v529
      %v534 = vcombine.high %v525, %v529
      %v536 = vunpack.c.l.s4 1983009808
      %v537 = vunpack.c.0.s8 %v536
      %v538 = vlaneseq
      %v539 = vshrl.u32 %v538, 7
      %v540 = vsub.s32 %v537, %v539
      %v541 = vrot.slane %v533, %v540
      %v543 = vunpack.c.l.s4 1983009808
      %v544 = vunpack.c.0.s8 %v543
      %v545 = vlaneseq
      %v546 = vshrl.u32 %v545, 7
      %v547 = vsub.s32 %v544, %v546
      %v548 = vrot.slane %v534, %v547
      %v549 = vcombine.low %v527, %v531
      %v550 = vcombine.high %v527, %v531
      %v552 = vunpack.c.l.s4 1983009808
      %v553 = vunpack.c.0.s8 %v552
      %v554 = vlaneseq
      %v555 = vshrl.u32 %v554, 7
      %v556 = vsub.s32 %v553, %v555
      %v557 = vrot.slane %v549, %v556
      %v559 = vunpack.c.l.s4 1983009808
      %v560 = vunpack.c.0.s8 %v559
      %v561 = vlaneseq
      %v562 = vshrl.u32 %v561, 7
      %v563 = vsub.s32 %v560, %v562
      %v564 = vrot.slane %v550, %v563
      %v565 = vcombine.low %v541, %v557
      %v566 = vcombine.high %v541, %v557
      %v568 = vunpack.c.l.s4 1934713408
      %v569 = vunpack.c.0.s8 %v568
      %v570 = vlaneseq
      %v571 = vshrl.u32 %v570, 7
      %v572 = vsub.s32 %v569, %v571
      %v573 = vrot.slane %v565, %v572
      %v575 = vunpack.c.l.s4 1934713408
      %v576 = vunpack.c.0.s8 %v575
      %v577 = vlaneseq
      %v578 = vshrl.u32 %v577, 7
      %v579 = vsub.s32 %v576, %v578
      %v580 = vrot.slane %v566, %v579
      %v581 = vcombine.low %v548, %v564
      %v582 = vcombine.high %v548, %v564
      %v584 = vunpack.c.l.s4 1934713408
      %v585 = vunpack.c.0.s8 %v584
      %v586 = vlaneseq
      %v587 = vshrl.u32 %v586, 7
      %v588 = vsub.s32 %v585, %v587
      %v589 = vrot.slane %v581, %v588
      %v591 = vunpack.c.l.s4 1934713408
      %v592 = vunpack.c.0.s8 %v591
      %v593 = vlaneseq
      %v594 = vshrl.u32 %v593, 7
      %v595 = vsub.s32 %v592, %v594
      %v596 = vrot.slane %v582, %v595
      %v597 = vcombine.high %v573, 0.0
      %v598 = vcombine.high %v580, 0.0
      %v599 = vcombine.high %v589, 0.0
      %v600 = vcombine.high %v596, 0.0
      %v601 = vcombine.low %v526, %v530
      %v602 = vcombine.high %v526, %v530
      %v604 = vunpack.c.l.s4 1983009808
      %v605 = vunpack.c.0.s8 %v604
      %v606 = vlaneseq
      %v607 = vshrl.u32 %v606, 7
      %v608 = vsub.s32 %v605, %v607
      %v609 = vrot.slane %v601, %v608
      %v611 = vunpack.c.l.s4 1983009808
      %v612 = vunpack.c.0.s8 %v611
      %v613 = vlaneseq
      %v614 = vshrl.u32 %v613, 7
      %v615 = vsub.s32 %v612, %v614
      %v616 = vrot.slane %v602, %v615
      %v617 = vcombine.low %v528, %v532
      %v618 = vcombine.high %v528, %v532
      %v620 = vunpack.c.l.s4 1983009808
      %v621 = vunpack.c.0.s8 %v620
      %v622 = vlaneseq
      %v623 = vshrl.u32 %v622, 7
      %v624 = vsub.s32 %v621, %v623
      %v625 = vrot.slane %v617, %v624
      %v627 = vunpack.c.l.s4 1983009808
      %v628 = vunpack.c.0.s8 %v627
      %v629 = vlaneseq
      %v630 = vshrl.u32 %v629, 7
      %v631 = vsub.s32 %v628, %v630
      %v632 = vrot.slane %v618, %v631
      %v633 = vcombine.low %v609, %v625
      %v634 = vcombine.high %v609, %v625
      %v636 = vunpack.c.l.s4 1934713408
      %v637 = vunpack.c.0.s8 %v636
      %v638 = vlaneseq
      %v639 = vshrl.u32 %v638, 7
      %v640 = vsub.s32 %v637, %v639
      %v641 = vrot.slane %v633, %v640
      %v643 = vunpack.c.l.s4 1934713408
      %v644 = vunpack.c.0.s8 %v643
      %v645 = vlaneseq
      %v646 = vshrl.u32 %v645, 7
      %v647 = vsub.s32 %v644, %v646
      %v648 = vrot.slane %v634, %v647
      %v649 = vcombine.low %v616, %v632
      %v650 = vcombine.high %v616, %v632
      %v652 = vunpack.c.l.s4 1934713408
      %v653 = vunpack.c.0.s8 %v652
      %v654 = vlaneseq
      %v655 = vshrl.u32 %v654, 7
      %v656 = vsub.s32 %v653, %v655
      %v657 = vrot.slane %v649, %v656
      %v659 = vunpack.c.l.s4 1934713408
      %v660 = vunpack.c.0.s8 %v659
      %v661 = vlaneseq
      %v662 = vshrl.u32 %v661, 7
      %v663 = vsub.s32 %v660, %v662
      %v664 = vrot.slane %v650, %v663
      %v665 = vcombine.high %v641, 0.0
      %v666 = vcombine.high %v648, 0.0
      %v667 = vcombine.high %v657, 0.0
      %v668 = vcombine.high %v664, 0.0
      %670 = vrot.lane.b32.xlu0 %v597, 16
      %v671 = vpop.permute.xlu0 %670
      %674 = vrot.lane.b32.xlu0 %v580, 32
      %v675 = vpop.permute.xlu0 %674
      %678 = vrot.lane.b32.xlu0 %v598, 48
      %v679 = vpop.permute.xlu0 %678
      %682 = vrot.lane.b32.xlu0 %v589, 64
      %v683 = vpop.permute.xlu0 %682
      %686 = vrot.lane.b32.xlu0 %v599, 80
      %v687 = vpop.permute.xlu0 %686
      %690 = vrot.lane.b32.xlu0 %v596, 96
      %v691 = vpop.permute.xlu0 %690
      %694 = vrot.lane.b32.xlu0 %v600, 112
      %v695 = vpop.permute.xlu0 %694
      %698 = vrot.lane.b32.xlu0 %v665, 16
      %v699 = vpop.permute.xlu0 %698
      %702 = vrot.lane.b32.xlu0 %v648, 32
      %v703 = vpop.permute.xlu0 %702
      %706 = vrot.lane.b32.xlu0 %v666, 48
      %v707 = vpop.permute.xlu0 %706
      %710 = vrot.lane.b32.xlu0 %v657, 64
      %v711 = vpop.permute.xlu0 %710
      %714 = vrot.lane.b32.xlu0 %v667, 80
      %v715 = vpop.permute.xlu0 %714
      %718 = vrot.lane.b32.xlu0 %v664, 96
      %v719 = vpop.permute.xlu0 %718
      %722 = vrot.lane.b32.xlu0 %v668, 112
      %v723 = vpop.permute.xlu0 %722
      %vm725 = vcmask 130048
      %v726 = vsel %vm725, %v573, %v671
      %vm727 = vcmask 261120
      %v728 = vsel %vm727, %v726, %v675
      %vm729 = vcmask 392192
      %v730 = vsel %vm729, %v728, %v679
      %vm731 = vcmask 523264
      %v732 = vsel %vm731, %v730, %v683
      %vm733 = vcmask 654336
      %v734 = vsel %vm733, %v732, %v687
      %vm735 = vcmask 785408
      %v736 = vsel %vm735, %v734, %v691
      %vm737 = vcmask 916480
      %v738 = vsel %vm737, %v736, %v695
      %v739 = vsel %vm725, %v641, %v699
      %v740 = vsel %vm727, %v739, %v703
      %v741 = vsel %vm729, %v740, %v707
      %v742 = vsel %vm731, %v741, %v711
      %v743 = vsel %vm733, %v742, %v715
      %v744 = vsel %vm735, %v743, %v719
      %v745 = vsel %vm737, %v744, %v723
      %746 = vst [vmem:[#allocation5] sm:$0xf] %v738
      %747 = vst [vmem:[#allocation5 + $0x8] sm:$0xf] %v745
      %v748 = vld [vmem:[#allocation2] sm:$0xff]
      %v749 = vld [vmem:[#allocation2 + $0x8] sm:$0xff]
      %v750 = vld [vmem:[#allocation2 + $0x18] sm:$0xff]
      %v751 = vld [vmem:[#allocation2 + $0x20] sm:$0xff]
      %v752 = vld [vmem:[#allocation2 + $0x30] sm:$0xff]
      %v753 = vld [vmem:[#allocation2 + $0x38] sm:$0xff]
      %v754 = vld [vmem:[#allocation2 + $0x48] sm:$0xff]
      %v755 = vld [vmem:[#allocation2 + $0x50] sm:$0xff]
      %764 = vrot.lane.b32.xlu0 %v748, 127
      %v765 = vpop.permute.xlu0 %764
      %766 = vrot.lane.b32.xlu0 %v749, 127
      %v767 = vpop.permute.xlu0 %766
      %768 = vrot.lane.b32.xlu0 %v750, 127
      %v769 = vpop.permute.xlu0 %768
      %770 = vrot.lane.b32.xlu0 %v751, 127
      %v771 = vpop.permute.xlu0 %770
      %772 = vrot.lane.b32.xlu0 %v752, 127
      %v773 = vpop.permute.xlu0 %772
      %774 = vrot.lane.b32.xlu0 %v753, 127
      %v775 = vpop.permute.xlu0 %774
      %776 = vrot.lane.b32.xlu0 %v754, 127
      %v777 = vpop.permute.xlu0 %776
      %778 = vrot.lane.b32.xlu0 %v755, 127
      %v779 = vpop.permute.xlu0 %778
      %v788 = vcombine.low %v765, %v773
      %v789 = vcombine.high %v765, %v773
      %v791 = vunpack.c.l.s4 1983009808
      %v792 = vunpack.c.0.s8 %v791
      %v793 = vlaneseq
      %v794 = vshrl.u32 %v793, 7
      %v795 = vsub.s32 %v792, %v794
      %v796 = vrot.slane %v788, %v795
      %v798 = vunpack.c.l.s4 1983009808
      %v799 = vunpack.c.0.s8 %v798
      %v800 = vlaneseq
      %v801 = vshrl.u32 %v800, 7
      %v802 = vsub.s32 %v799, %v801
      %v803 = vrot.slane %v789, %v802
      %v804 = vcombine.low %v769, %v777
      %v805 = vcombine.high %v769, %v777
      %v807 = vunpack.c.l.s4 1983009808
      %v808 = vunpack.c.0.s8 %v807
      %v809 = vlaneseq
      %v810 = vshrl.u32 %v809, 7
      %v811 = vsub.s32 %v808, %v810
      %v812 = vrot.slane %v804, %v811
      %v814 = vunpack.c.l.s4 1983009808
      %v815 = vunpack.c.0.s8 %v814
      %v816 = vlaneseq
      %v817 = vshrl.u32 %v816, 7
      %v818 = vsub.s32 %v815, %v817
      %v819 = vrot.slane %v805, %v818
      %v820 = vcombine.low %v796, %v812
      %v821 = vcombine.high %v796, %v812
      %v823 = vunpack.c.l.s4 1934713408
      %v824 = vunpack.c.0.s8 %v823
      %v825 = vlaneseq
      %v826 = vshrl.u32 %v825, 7
      %v827 = vsub.s32 %v824, %v826
      %v828 = vrot.slane %v820, %v827
      %v830 = vunpack.c.l.s4 1934713408
      %v831 = vunpack.c.0.s8 %v830
      %v832 = vlaneseq
      %v833 = vshrl.u32 %v832, 7
      %v834 = vsub.s32 %v831, %v833
      %v835 = vrot.slane %v821, %v834
      %v836 = vcombine.low %v803, %v819
      %v837 = vcombine.high %v803, %v819
      %v839 = vunpack.c.l.s4 1934713408
      %v840 = vunpack.c.0.s8 %v839
      %v841 = vlaneseq
      %v842 = vshrl.u32 %v841, 7
      %v843 = vsub.s32 %v840, %v842
      %v844 = vrot.slane %v836, %v843
      %v846 = vunpack.c.l.s4 1934713408
      %v847 = vunpack.c.0.s8 %v846
      %v848 = vlaneseq
      %v849 = vshrl.u32 %v848, 7
      %v850 = vsub.s32 %v847, %v849
      %v851 = vrot.slane %v837, %v850
      %v852 = vcombine.high %v828, 0.0
      %v853 = vcombine.high %v835, 0.0
      %v854 = vcombine.high %v844, 0.0
      %v855 = vcombine.high %v851, 0.0
      %v856 = vcombine.low %v767, %v775
      %v857 = vcombine.high %v767, %v775
      %v859 = vunpack.c.l.s4 1983009808
      %v860 = vunpack.c.0.s8 %v859
      %v861 = vlaneseq
      %v862 = vshrl.u32 %v861, 7
      %v863 = vsub.s32 %v860, %v862
      %v864 = vrot.slane %v856, %v863
      %v866 = vunpack.c.l.s4 1983009808
      %v867 = vunpack.c.0.s8 %v866
      %v868 = vlaneseq
      %v869 = vshrl.u32 %v868, 7
      %v870 = vsub.s32 %v867, %v869
      %v871 = vrot.slane %v857, %v870
      %v872 = vcombine.low %v771, %v779
      %v873 = vcombine.high %v771, %v779
      %v875 = vunpack.c.l.s4 1983009808
      %v876 = vunpack.c.0.s8 %v875
      %v877 = vlaneseq
      %v878 = vshrl.u32 %v877, 7
      %v879 = vsub.s32 %v876, %v878
      %v880 = vrot.slane %v872, %v879
      %v882 = vunpack.c.l.s4 1983009808
      %v883 = vunpack.c.0.s8 %v882
      %v884 = vlaneseq
      %v885 = vshrl.u32 %v884, 7
      %v886 = vsub.s32 %v883, %v885
      %v887 = vrot.slane %v873, %v886
      %v888 = vcombine.low %v864, %v880
      %v889 = vcombine.high %v864, %v880
      %v891 = vunpack.c.l.s4 1934713408
      %v892 = vunpack.c.0.s8 %v891
      %v893 = vlaneseq
      %v894 = vshrl.u32 %v893, 7
      %v895 = vsub.s32 %v892, %v894
      %v896 = vrot.slane %v888, %v895
      %v898 = vunpack.c.l.s4 1934713408
      %v899 = vunpack.c.0.s8 %v898
      %v900 = vlaneseq
      %v901 = vshrl.u32 %v900, 7
      %v902 = vsub.s32 %v899, %v901
      %v903 = vrot.slane %v889, %v902
      %v904 = vcombine.low %v871, %v887
      %v905 = vcombine.high %v871, %v887
      %v907 = vunpack.c.l.s4 1934713408
      %v908 = vunpack.c.0.s8 %v907
      %v909 = vlaneseq
      %v910 = vshrl.u32 %v909, 7
      %v911 = vsub.s32 %v908, %v910
      %v912 = vrot.slane %v904, %v911
      %v914 = vunpack.c.l.s4 1934713408
      %v915 = vunpack.c.0.s8 %v914
      %v916 = vlaneseq
      %v917 = vshrl.u32 %v916, 7
      %v918 = vsub.s32 %v915, %v917
      %v919 = vrot.slane %v905, %v918
      %v920 = vcombine.high %v896, 0.0
      %v921 = vcombine.high %v903, 0.0
      %v922 = vcombine.high %v912, 0.0
      %v923 = vcombine.high %v919, 0.0
      %925 = vrot.lane.b32.xlu0 %v852, 16
      %v926 = vpop.permute.xlu0 %925
      %929 = vrot.lane.b32.xlu0 %v835, 32
      %v930 = vpop.permute.xlu0 %929
      %933 = vrot.lane.b32.xlu0 %v853, 48
      %v934 = vpop.permute.xlu0 %933
      %937 = vrot.lane.b32.xlu0 %v844, 64
      %v938 = vpop.permute.xlu0 %937
      %941 = vrot.lane.b32.xlu0 %v854, 80
      %v942 = vpop.permute.xlu0 %941
      %945 = vrot.lane.b32.xlu0 %v851, 96
      %v946 = vpop.permute.xlu0 %945
      %949 = vrot.lane.b32.xlu0 %v855, 112
      %v950 = vpop.permute.xlu0 %949
      %953 = vrot.lane.b32.xlu0 %v920, 16
      %v954 = vpop.permute.xlu0 %953
      %957 = vrot.lane.b32.xlu0 %v903, 32
      %v958 = vpop.permute.xlu0 %957
      %961 = vrot.lane.b32.xlu0 %v921, 48
      %v962 = vpop.permute.xlu0 %961
      %965 = vrot.lane.b32.xlu0 %v912, 64
      %v966 = vpop.permute.xlu0 %965
      %969 = vrot.lane.b32.xlu0 %v922, 80
      %v970 = vpop.permute.xlu0 %969
      %973 = vrot.lane.b32.xlu0 %v919, 96
      %v974 = vpop.permute.xlu0 %973
      %977 = vrot.lane.b32.xlu0 %v923, 112
      %v978 = vpop.permute.xlu0 %977
      %v980 = vsel %vm725, %v828, %v926
      %v981 = vsel %vm727, %v980, %v930
      %v982 = vsel %vm729, %v981, %v934
      %v983 = vsel %vm731, %v982, %v938
      %v984 = vsel %vm733, %v983, %v942
      %v985 = vsel %vm735, %v984, %v946
      %v986 = vsel %vm737, %v985, %v950
      %v987 = vsel %vm725, %v896, %v954
      %v988 = vsel %vm727, %v987, %v958
      %v989 = vsel %vm729, %v988, %v962
      %v990 = vsel %vm731, %v989, %v966
      %v991 = vsel %vm733, %v990, %v970
      %v992 = vsel %vm735, %v991, %v974
      %v993 = vsel %vm737, %v992, %v978
      %v996 = vrot.slane %v986, 4
      %v997 = vrot.slane %v993, 4
      %1000 = vst [vmem:[#allocation5] sm:$0xf0] %v996
      %1001 = vst [vmem:[#allocation5 + $0x8] sm:$0xf0] %v997
      %v1002 = vld [vmem:[#allocation2] sm:$0xff]
      %v1003 = vld [vmem:[#allocation2 + $0x8] sm:$0xff]
      %v1004 = vld [vmem:[#allocation2 + $0x18] sm:$0xff]
      %v1005 = vld [vmem:[#allocation2 + $0x20] sm:$0xff]
      %v1006 = vld [vmem:[#allocation2 + $0x30] sm:$0xff]
      %v1007 = vld [vmem:[#allocation2 + $0x38] sm:$0xff]
      %v1008 = vld [vmem:[#allocation2 + $0x48] sm:$0xff]
      %v1009 = vld [vmem:[#allocation2 + $0x50] sm:$0xff]
      %1018 = vrot.lane.b32.xlu0 %v1002, 126
      %v1019 = vpop.permute.xlu0 %1018
      %1020 = vrot.lane.b32.xlu0 %v1003, 126
      %v1021 = vpop.permute.xlu0 %1020
      %1022 = vrot.lane.b32.xlu0 %v1004, 126
      %v1023 = vpop.permute.xlu0 %1022
      %1024 = vrot.lane.b32.xlu0 %v1005, 126
      %v1025 = vpop.permute.xlu0 %1024
      %1026 = vrot.lane.b32.xlu0 %v1006, 126
      %v1027 = vpop.permute.xlu0 %1026
      %1028 = vrot.lane.b32.xlu0 %v1007, 126
      %v1029 = vpop.permute.xlu0 %1028
      %1030 = vrot.lane.b32.xlu0 %v1008, 126
      %v1031 = vpop.permute.xlu0 %1030
      %1032 = vrot.lane.b32.xlu0 %v1009, 126
      %v1033 = vpop.permute.xlu0 %1032
      %v1042 = vcombine.low %v1019, %v1027
      %v1043 = vcombine.high %v1019, %v1027
      %v1045 = vunpack.c.l.s4 1983009808
      %v1046 = vunpack.c.0.s8 %v1045
      %v1047 = vlaneseq
      %v1048 = vshrl.u32 %v1047, 7
      %v1049 = vsub.s32 %v1046, %v1048
      %v1050 = vrot.slane %v1042, %v1049
      %v1052 = vunpack.c.l.s4 1983009808
      %v1053 = vunpack.c.0.s8 %v1052
      %v1054 = vlaneseq
      %v1055 = vshrl.u32 %v1054, 7
      %v1056 = vsub.s32 %v1053, %v1055
      %v1057 = vrot.slane %v1043, %v1056
      %v1058 = vcombine.low %v1023, %v1031
      %v1059 = vcombine.high %v1023, %v1031
      %v1061 = vunpack.c.l.s4 1983009808
      %v1062 = vunpack.c.0.s8 %v1061
      %v1063 = vlaneseq
      %v1064 = vshrl.u32 %v1063, 7
      %v1065 = vsub.s32 %v1062, %v1064
      %v1066 = vrot.slane %v1058, %v1065
      %v1068 = vunpack.c.l.s4 1983009808
      %v1069 = vunpack.c.0.s8 %v1068
      %v1070 = vlaneseq
      %v1071 = vshrl.u32 %v1070, 7
      %v1072 = vsub.s32 %v1069, %v1071
      %v1073 = vrot.slane %v1059, %v1072
      %v1074 = vcombine.low %v1050, %v1066
      %v1075 = vcombine.high %v1050, %v1066
      %v1077 = vunpack.c.l.s4 1934713408
      %v1078 = vunpack.c.0.s8 %v1077
      %v1079 = vlaneseq
      %v1080 = vshrl.u32 %v1079, 7
      %v1081 = vsub.s32 %v1078, %v1080
      %v1082 = vrot.slane %v1074, %v1081
      %v1084 = vunpack.c.l.s4 1934713408
      %v1085 = vunpack.c.0.s8 %v1084
      %v1086 = vlaneseq
      %v1087 = vshrl.u32 %v1086, 7
      %v1088 = vsub.s32 %v1085, %v1087
      %v1089 = vrot.slane %v1075, %v1088
      %v1090 = vcombine.low %v1057, %v1073
      %v1091 = vcombine.high %v1057, %v1073
      %v1093 = vunpack.c.l.s4 1934713408
      %v1094 = vunpack.c.0.s8 %v1093
      %v1095 = vlaneseq
      %v1096 = vshrl.u32 %v1095, 7
      %v1097 = vsub.s32 %v1094, %v1096
      %v1098 = vrot.slane %v1090, %v1097
      %v1100 = vunpack.c.l.s4 1934713408
      %v1101 = vunpack.c.0.s8 %v1100
      %v1102 = vlaneseq
      %v1103 = vshrl.u32 %v1102, 7
      %v1104 = vsub.s32 %v1101, %v1103
      %v1105 = vrot.slane %v1091, %v1104
      %v1106 = vcombine.high %v1082, 0.0
      %v1107 = vcombine.high %v1089, 0.0
      %v1108 = vcombine.high %v1098, 0.0
      %v1109 = vcombine.high %v1105, 0.0
      %v1110 = vcombine.low %v1021, %v1029
      %v1111 = vcombine.high %v1021, %v1029
      %v1113 = vunpack.c.l.s4 1983009808
      %v1114 = vunpack.c.0.s8 %v1113
      %v1115 = vlaneseq
      %v1116 = vshrl.u32 %v1115, 7
      %v1117 = vsub.s32 %v1114, %v1116
      %v1118 = vrot.slane %v1110, %v1117
      %v1120 = vunpack.c.l.s4 1983009808
      %v1121 = vunpack.c.0.s8 %v1120
      %v1122 = vlaneseq
      %v1123 = vshrl.u32 %v1122, 7
      %v1124 = vsub.s32 %v1121, %v1123
      %v1125 = vrot.slane %v1111, %v1124
      %v1126 = vcombine.low %v1025, %v1033
      %v1127 = vcombine.high %v1025, %v1033
      %v1129 = vunpack.c.l.s4 1983009808
      %v1130 = vunpack.c.0.s8 %v1129
      %v1131 = vlaneseq
      %v1132 = vshrl.u32 %v1131, 7
      %v1133 = vsub.s32 %v1130, %v1132
      %v1134 = vrot.slane %v1126, %v1133
      %v1136 = vunpack.c.l.s4 1983009808
      %v1137 = vunpack.c.0.s8 %v1136
      %v1138 = vlaneseq
      %v1139 = vshrl.u32 %v1138, 7
      %v1140 = vsub.s32 %v1137, %v1139
      %v1141 = vrot.slane %v1127, %v1140
      %v1142 = vcombine.low %v1118, %v1134
      %v1143 = vcombine.high %v1118, %v1134
      %v1145 = vunpack.c.l.s4 1934713408
      %v1146 = vunpack.c.0.s8 %v1145
      %v1147 = vlaneseq
      %v1148 = vshrl.u32 %v1147, 7
      %v1149 = vsub.s32 %v1146, %v1148
      %v1150 = vrot.slane %v1142, %v1149
      %v1152 = vunpack.c.l.s4 1934713408
      %v1153 = vunpack.c.0.s8 %v1152
      %v1154 = vlaneseq
      %v1155 = vshrl.u32 %v1154, 7
      %v1156 = vsub.s32 %v1153, %v1155
      %v1157 = vrot.slane %v1143, %v1156
      %v1158 = vcombine.low %v1125, %v1141
      %v1159 = vcombine.high %v1125, %v1141
      %v1161 = vunpack.c.l.s4 1934713408
      %v1162 = vunpack.c.0.s8 %v1161
      %v1163 = vlaneseq
      %v1164 = vshrl.u32 %v1163, 7
      %v1165 = vsub.s32 %v1162, %v1164
      %v1166 = vrot.slane %v1158, %v1165
      %v1168 = vunpack.c.l.s4 1934713408
      %v1169 = vunpack.c.0.s8 %v1168
      %v1170 = vlaneseq
      %v1171 = vshrl.u32 %v1170, 7
      %v1172 = vsub.s32 %v1169, %v1171
      %v1173 = vrot.slane %v1159, %v1172
      %v1174 = vcombine.high %v1150, 0.0
      %v1175 = vcombine.high %v1157, 0.0
      %v1176 = vcombine.high %v1166, 0.0
      %v1177 = vcombine.high %v1173, 0.0
      %1179 = vrot.lane.b32.xlu0 %v1106, 16
      %v1180 = vpop.permute.xlu0 %1179
      %1183 = vrot.lane.b32.xlu0 %v1089, 32
      %v1184 = vpop.permute.xlu0 %1183
      %1187 = vrot.lane.b32.xlu0 %v1107, 48
      %v1188 = vpop.permute.xlu0 %1187
      %1191 = vrot.lane.b32.xlu0 %v1098, 64
      %v1192 = vpop.permute.xlu0 %1191
      %1195 = vrot.lane.b32.xlu0 %v1108, 80
      %v1196 = vpop.permute.xlu0 %1195
      %1199 = vrot.lane.b32.xlu0 %v1105, 96
      %v1200 = vpop.permute.xlu0 %1199
      %1203 = vrot.lane.b32.xlu0 %v1109, 112
      %v1204 = vpop.permute.xlu0 %1203
      %1207 = vrot.lane.b32.xlu0 %v1174, 16
      %v1208 = vpop.permute.xlu0 %1207
      %1211 = vrot.lane.b32.xlu0 %v1157, 32
      %v1212 = vpop.permute.xlu0 %1211
      %1215 = vrot.lane.b32.xlu0 %v1175, 48
      %v1216 = vpop.permute.xlu0 %1215
      %1219 = vrot.lane.b32.xlu0 %v1166, 64
      %v1220 = vpop.permute.xlu0 %1219
      %1223 = vrot.lane.b32.xlu0 %v1176, 80
      %v1224 = vpop.permute.xlu0 %1223
      %1227 = vrot.lane.b32.xlu0 %v1173, 96
      %v1228 = vpop.permute.xlu0 %1227
      %1231 = vrot.lane.b32.xlu0 %v1177, 112
      %v1232 = vpop.permute.xlu0 %1231
      %v1234 = vsel %vm725, %v1082, %v1180
      %v1235 = vsel %vm727, %v1234, %v1184
      %v1236 = vsel %vm729, %v1235, %v1188
      %v1237 = vsel %vm731, %v1236, %v1192
      %v1238 = vsel %vm733, %v1237, %v1196
      %v1239 = vsel %vm735, %v1238, %v1200
      %v1240 = vsel %vm737, %v1239, %v1204
      %v1241 = vsel %vm725, %v1150, %v1208
      %v1242 = vsel %vm727, %v1241, %v1212
      %v1243 = vsel %vm729, %v1242, %v1216
      %v1244 = vsel %vm731, %v1243, %v1220
      %v1245 = vsel %vm733, %v1244, %v1224
      %v1246 = vsel %vm735, %v1245, %v1228
      %v1247 = vsel %vm737, %v1246, %v1232
      %1248 = vst [vmem:[#allocation5 + $0x10] sm:$0xf] %v1240
      %1249 = vst [vmem:[#allocation5 + $0x18] sm:$0xf] %v1247
      %v1250 = vld [vmem:[#allocation2 + $0x1] sm:$0xff]
      %v1251 = vld [vmem:[#allocation2 + $0x9] sm:$0xff]
      %v1252 = vld [vmem:[#allocation2 + $0x19] sm:$0xff]
      %v1253 = vld [vmem:[#allocation2 + $0x21] sm:$0xff]
      %v1254 = vld [vmem:[#allocation2 + $0x31] sm:$0xff]
      %v1255 = vld [vmem:[#allocation2 + $0x39] sm:$0xff]
      %v1256 = vld [vmem:[#allocation2 + $0x49] sm:$0xff]
      %v1257 = vld [vmem:[#allocation2 + $0x51] sm:$0xff]
      %v1258 = vcombine.low %v1250, %v1254
      %v1259 = vcombine.high %v1250, %v1254
      %v1261 = vunpack.c.l.s4 1983009808
      %v1262 = vunpack.c.0.s8 %v1261
      %v1263 = vlaneseq
      %v1264 = vshrl.u32 %v1263, 7
      %v1265 = vsub.s32 %v1262, %v1264
      %v1266 = vrot.slane %v1258, %v1265
      %v1268 = vunpack.c.l.s4 1983009808
      %v1269 = vunpack.c.0.s8 %v1268
      %v1270 = vlaneseq
      %v1271 = vshrl.u32 %v1270, 7
      %v1272 = vsub.s32 %v1269, %v1271
      %v1273 = vrot.slane %v1259, %v1272
      %v1274 = vcombine.low %v1252, %v1256
      %v1275 = vcombine.high %v1252, %v1256
      %v1277 = vunpack.c.l.s4 1983009808
      %v1278 = vunpack.c.0.s8 %v1277
      %v1279 = vlaneseq
      %v1280 = vshrl.u32 %v1279, 7
      %v1281 = vsub.s32 %v1278, %v1280
      %v1282 = vrot.slane %v1274, %v1281
      %v1284 = vunpack.c.l.s4 1983009808
      %v1285 = vunpack.c.0.s8 %v1284
      %v1286 = vlaneseq
      %v1287 = vshrl.u32 %v1286, 7
      %v1288 = vsub.s32 %v1285, %v1287
      %v1289 = vrot.slane %v1275, %v1288
      %v1290 = vcombine.low %v1266, %v1282
      %v1291 = vcombine.high %v1266, %v1282
      %v1293 = vunpack.c.l.s4 1934713408
      %v1294 = vunpack.c.0.s8 %v1293
      %v1295 = vlaneseq
      %v1296 = vshrl.u32 %v1295, 7
      %v1297 = vsub.s32 %v1294, %v1296
      %v1298 = vrot.slane %v1290, %v1297
      %v1300 = vunpack.c.l.s4 1934713408
      %v1301 = vunpack.c.0.s8 %v1300
      %v1302 = vlaneseq
      %v1303 = vshrl.u32 %v1302, 7
      %v1304 = vsub.s32 %v1301, %v1303
      %v1305 = vrot.slane %v1291, %v1304
      %v1306 = vcombine.low %v1273, %v1289
      %v1307 = vcombine.high %v1273, %v1289
      %v1309 = vunpack.c.l.s4 1934713408
      %v1310 = vunpack.c.0.s8 %v1309
      %v1311 = vlaneseq
      %v1312 = vshrl.u32 %v1311, 7
      %v1313 = vsub.s32 %v1310, %v1312
      %v1314 = vrot.slane %v1306, %v1313
      %v1316 = vunpack.c.l.s4 1934713408
      %v1317 = vunpack.c.0.s8 %v1316
      %v1318 = vlaneseq
      %v1319 = vshrl.u32 %v1318, 7
      %v1320 = vsub.s32 %v1317, %v1319
      %v1321 = vrot.slane %v1307, %v1320
      %v1322 = vcombine.high %v1298, 0.0
      %v1323 = vcombine.high %v1305, 0.0
      %v1324 = vcombine.high %v1314, 0.0
      %v1325 = vcombine.high %v1321, 0.0
      %v1326 = vcombine.low %v1251, %v1255
      %v1327 = vcombine.high %v1251, %v1255
      %v1329 = vunpack.c.l.s4 1983009808
      %v1330 = vunpack.c.0.s8 %v1329
      %v1331 = vlaneseq
      %v1332 = vshrl.u32 %v1331, 7
      %v1333 = vsub.s32 %v1330, %v1332
      %v1334 = vrot.slane %v1326, %v1333
      %v1336 = vunpack.c.l.s4 1983009808
      %v1337 = vunpack.c.0.s8 %v1336
      %v1338 = vlaneseq
      %v1339 = vshrl.u32 %v1338, 7
      %v1340 = vsub.s32 %v1337, %v1339
      %v1341 = vrot.slane %v1327, %v1340
      %v1342 = vcombine.low %v1253, %v1257
      %v1343 = vcombine.high %v1253, %v1257
      %v1345 = vunpack.c.l.s4 1983009808
      %v1346 = vunpack.c.0.s8 %v1345
      %v1347 = vlaneseq
      %v1348 = vshrl.u32 %v1347, 7
      %v1349 = vsub.s32 %v1346, %v1348
      %v1350 = vrot.slane %v1342, %v1349
      %v1352 = vunpack.c.l.s4 1983009808
      %v1353 = vunpack.c.0.s8 %v1352
      %v1354 = vlaneseq
      %v1355 = vshrl.u32 %v1354, 7
      %v1356 = vsub.s32 %v1353, %v1355
      %v1357 = vrot.slane %v1343, %v1356
      %v1358 = vcombine.low %v1334, %v1350
      %v1359 = vcombine.high %v1334, %v1350
      %v1361 = vunpack.c.l.s4 1934713408
      %v1362 = vunpack.c.0.s8 %v1361
      %v1363 = vlaneseq
      %v1364 = vshrl.u32 %v1363, 7
      %v1365 = vsub.s32 %v1362, %v1364
      %v1366 = vrot.slane %v1358, %v1365
      %v1368 = vunpack.c.l.s4 1934713408
      %v1369 = vunpack.c.0.s8 %v1368
      %v1370 = vlaneseq
      %v1371 = vshrl.u32 %v1370, 7
      %v1372 = vsub.s32 %v1369, %v1371
      %v1373 = vrot.slane %v1359, %v1372
      %v1374 = vcombine.low %v1341, %v1357
      %v1375 = vcombine.high %v1341, %v1357
      %v1377 = vunpack.c.l.s4 1934713408
      %v1378 = vunpack.c.0.s8 %v1377
      %v1379 = vlaneseq
      %v1380 = vshrl.u32 %v1379, 7
      %v1381 = vsub.s32 %v1378, %v1380
      %v1382 = vrot.slane %v1374, %v1381
      %v1384 = vunpack.c.l.s4 1934713408
      %v1385 = vunpack.c.0.s8 %v1384
      %v1386 = vlaneseq
      %v1387 = vshrl.u32 %v1386, 7
      %v1388 = vsub.s32 %v1385, %v1387
      %v1389 = vrot.slane %v1375, %v1388
      %v1390 = vcombine.high %v1366, 0.0
      %v1391 = vcombine.high %v1373, 0.0
      %v1392 = vcombine.high %v1382, 0.0
      %v1393 = vcombine.high %v1389, 0.0
      %1395 = vrot.lane.b32.xlu0 %v1322, 16
      %v1396 = vpop.permute.xlu0 %1395
      %1399 = vrot.lane.b32.xlu0 %v1305, 32
      %v1400 = vpop.permute.xlu0 %1399
      %1403 = vrot.lane.b32.xlu0 %v1323, 48
      %v1404 = vpop.permute.xlu0 %1403
      %1407 = vrot.lane.b32.xlu0 %v1314, 64
      %v1408 = vpop.permute.xlu0 %1407
      %1411 = vrot.lane.b32.xlu0 %v1324, 80
      %v1412 = vpop.permute.xlu0 %1411
      %1415 = vrot.lane.b32.xlu0 %v1321, 96
      %v1416 = vpop.permute.xlu0 %1415
      %1419 = vrot.lane.b32.xlu0 %v1325, 112
      %v1420 = vpop.permute.xlu0 %1419
      %1423 = vrot.lane.b32.xlu0 %v1390, 16
      %v1424 = vpop.permute.xlu0 %1423
      %1427 = vrot.lane.b32.xlu0 %v1373, 32
      %v1428 = vpop.permute.xlu0 %1427
      %1431 = vrot.lane.b32.xlu0 %v1391, 48
      %v1432 = vpop.permute.xlu0 %1431
      %1435 = vrot.lane.b32.xlu0 %v1382, 64
      %v1436 = vpop.permute.xlu0 %1435
      %1439 = vrot.lane.b32.xlu0 %v1392, 80
      %v1440 = vpop.permute.xlu0 %1439
      %1443 = vrot.lane.b32.xlu0 %v1389, 96
      %v1444 = vpop.permute.xlu0 %1443
      %1447 = vrot.lane.b32.xlu0 %v1393, 112
      %v1448 = vpop.permute.xlu0 %1447
      %v1450 = vsel %vm725, %v1298, %v1396
      %v1451 = vsel %vm727, %v1450, %v1400
      %v1452 = vsel %vm729, %v1451, %v1404
      %v1453 = vsel %vm731, %v1452, %v1408
      %v1454 = vsel %vm733, %v1453, %v1412
      %v1455 = vsel %vm735, %v1454, %v1416
      %v1456 = vsel %vm737, %v1455, %v1420
      %v1457 = vsel %vm725, %v1366, %v1424
      %v1458 = vsel %vm727, %v1457, %v1428
      %v1459 = vsel %vm729, %v1458, %v1432
      %v1460 = vsel %vm731, %v1459, %v1436
      %v1461 = vsel %vm733, %v1460, %v1440
      %v1462 = vsel %vm735, %v1461, %v1444
      %v1463 = vsel %vm737, %v1462, %v1448
      %v1466 = vrot.slane %v1456, 4
      %v1467 = vrot.slane %v1463, 4
      %1470 = vst [vmem:[#allocation5 + $0x10] sm:$0xf0] %v1466
      %1471 = vst [vmem:[#allocation5 + $0x18] sm:$0xf0] %v1467
      %v1472 = vld [vmem:[#allocation2 + $0x1] sm:$0xff]
      %v1473 = vld [vmem:[#allocation2 + $0x9] sm:$0xff]
      %v1474 = vld [vmem:[#allocation2 + $0x19] sm:$0xff]
      %v1475 = vld [vmem:[#allocation2 + $0x21] sm:$0xff]
      %v1476 = vld [vmem:[#allocation2 + $0x31] sm:$0xff]
      %v1477 = vld [vmem:[#allocation2 + $0x39] sm:$0xff]
      %v1478 = vld [vmem:[#allocation2 + $0x49] sm:$0xff]
      %v1479 = vld [vmem:[#allocation2 + $0x51] sm:$0xff]
      %1488 = vrot.lane.b32.xlu0 %v1472, 127
      %v1489 = vpop.permute.xlu0 %1488
      %1490 = vrot.lane.b32.xlu0 %v1473, 127
      %v1491 = vpop.permute.xlu0 %1490
      %1492 = vrot.lane.b32.xlu0 %v1474, 127
      %v1493 = vpop.permute.xlu0 %1492
      %1494 = vrot.lane.b32.xlu0 %v1475, 127
      %v1495 = vpop.permute.xlu0 %1494
      %1496 = vrot.lane.b32.xlu0 %v1476, 127
      %v1497 = vpop.permute.xlu0 %1496
      %1498 = vrot.lane.b32.xlu0 %v1477, 127
      %v1499 = vpop.permute.xlu0 %1498
      %1500 = vrot.lane.b32.xlu0 %v1478, 127
      %v1501 = vpop.permute.xlu0 %1500
      %1502 = vrot.lane.b32.xlu0 %v1479, 127
      %v1503 = vpop.permute.xlu0 %1502
      %v1512 = vcombine.low %v1489, %v1497
      %v1513 = vcombine.high %v1489, %v1497
      %v1515 = vunpack.c.l.s4 1983009808
      %v1516 = vunpack.c.0.s8 %v1515
      %v1517 = vlaneseq
      %v1518 = vshrl.u32 %v1517, 7
      %v1519 = vsub.s32 %v1516, %v1518
      %v1520 = vrot.slane %v1512, %v1519
      %v1522 = vunpack.c.l.s4 1983009808
      %v1523 = vunpack.c.0.s8 %v1522
      %v1524 = vlaneseq
      %v1525 = vshrl.u32 %v1524, 7
      %v1526 = vsub.s32 %v1523, %v1525
      %v1527 = vrot.slane %v1513, %v1526
      %v1528 = vcombine.low %v1493, %v1501
      %v1529 = vcombine.high %v1493, %v1501
      %v1531 = vunpack.c.l.s4 1983009808
      %v1532 = vunpack.c.0.s8 %v1531
      %v1533 = vlaneseq
      %v1534 = vshrl.u32 %v1533, 7
      %v1535 = vsub.s32 %v1532, %v1534
      %v1536 = vrot.slane %v1528, %v1535
      %v1538 = vunpack.c.l.s4 1983009808
      %v1539 = vunpack.c.0.s8 %v1538
      %v1540 = vlaneseq
      %v1541 = vshrl.u32 %v1540, 7
      %v1542 = vsub.s32 %v1539, %v1541
      %v1543 = vrot.slane %v1529, %v1542
      %v1544 = vcombine.low %v1520, %v1536
      %v1545 = vcombine.high %v1520, %v1536
      %v1547 = vunpack.c.l.s4 1934713408
      %v1548 = vunpack.c.0.s8 %v1547
      %v1549 = vlaneseq
      %v1550 = vshrl.u32 %v1549, 7
      %v1551 = vsub.s32 %v1548, %v1550
      %v1552 = vrot.slane %v1544, %v1551
      %v1554 = vunpack.c.l.s4 1934713408
      %v1555 = vunpack.c.0.s8 %v1554
      %v1556 = vlaneseq
      %v1557 = vshrl.u32 %v1556, 7
      %v1558 = vsub.s32 %v1555, %v1557
      %v1559 = vrot.slane %v1545, %v1558
      %v1560 = vcombine.low %v1527, %v1543
      %v1561 = vcombine.high %v1527, %v1543
      %v1563 = vunpack.c.l.s4 1934713408
      %v1564 = vunpack.c.0.s8 %v1563
      %v1565 = vlaneseq
      %v1566 = vshrl.u32 %v1565, 7
      %v1567 = vsub.s32 %v1564, %v1566
      %v1568 = vrot.slane %v1560, %v1567
      %v1570 = vunpack.c.l.s4 1934713408
      %v1571 = vunpack.c.0.s8 %v1570
      %v1572 = vlaneseq
      %v1573 = vshrl.u32 %v1572, 7
      %v1574 = vsub.s32 %v1571, %v1573
      %v1575 = vrot.slane %v1561, %v1574
      %v1576 = vcombine.high %v1552, 0.0
      %v1577 = vcombine.high %v1559, 0.0
      %v1578 = vcombine.high %v1568, 0.0
      %v1579 = vcombine.high %v1575, 0.0
      %v1580 = vcombine.low %v1491, %v1499
      %v1581 = vcombine.high %v1491, %v1499
      %v1583 = vunpack.c.l.s4 1983009808
      %v1584 = vunpack.c.0.s8 %v1583
      %v1585 = vlaneseq
      %v1586 = vshrl.u32 %v1585, 7
      %v1587 = vsub.s32 %v1584, %v1586
      %v1588 = vrot.slane %v1580, %v1587
      %v1590 = vunpack.c.l.s4 1983009808
      %v1591 = vunpack.c.0.s8 %v1590
      %v1592 = vlaneseq
      %v1593 = vshrl.u32 %v1592, 7
      %v1594 = vsub.s32 %v1591, %v1593
      %v1595 = vrot.slane %v1581, %v1594
      %v1596 = vcombine.low %v1495, %v1503
      %v1597 = vcombine.high %v1495, %v1503
      %v1599 = vunpack.c.l.s4 1983009808
      %v1600 = vunpack.c.0.s8 %v1599
      %v1601 = vlaneseq
      %v1602 = vshrl.u32 %v1601, 7
      %v1603 = vsub.s32 %v1600, %v1602
      %v1604 = vrot.slane %v1596, %v1603
      %v1606 = vunpack.c.l.s4 1983009808
      %v1607 = vunpack.c.0.s8 %v1606
      %v1608 = vlaneseq
      %v1609 = vshrl.u32 %v1608, 7
      %v1610 = vsub.s32 %v1607, %v1609
      %v1611 = vrot.slane %v1597, %v1610
      %v1612 = vcombine.low %v1588, %v1604
      %v1613 = vcombine.high %v1588, %v1604
      %v1615 = vunpack.c.l.s4 1934713408
      %v1616 = vunpack.c.0.s8 %v1615
      %v1617 = vlaneseq
      %v1618 = vshrl.u32 %v1617, 7
      %v1619 = vsub.s32 %v1616, %v1618
      %v1620 = vrot.slane %v1612, %v1619
      %v1622 = vunpack.c.l.s4 1934713408
      %v1623 = vunpack.c.0.s8 %v1622
      %v1624 = vlaneseq
      %v1625 = vshrl.u32 %v1624, 7
      %v1626 = vsub.s32 %v1623, %v1625
      %v1627 = vrot.slane %v1613, %v1626
      %v1628 = vcombine.low %v1595, %v1611
      %v1629 = vcombine.high %v1595, %v1611
      %v1631 = vunpack.c.l.s4 1934713408
      %v1632 = vunpack.c.0.s8 %v1631
      %v1633 = vlaneseq
      %v1634 = vshrl.u32 %v1633, 7
      %v1635 = vsub.s32 %v1632, %v1634
      %v1636 = vrot.slane %v1628, %v1635
      %v1638 = vunpack.c.l.s4 1934713408
      %v1639 = vunpack.c.0.s8 %v1638
      %v1640 = vlaneseq
      %v1641 = vshrl.u32 %v1640, 7
      %v1642 = vsub.s32 %v1639, %v1641
      %v1643 = vrot.slane %v1629, %v1642
      %v1644 = vcombine.high %v1620, 0.0
      %v1645 = vcombine.high %v1627, 0.0
      %v1646 = vcombine.high %v1636, 0.0
      %v1647 = vcombine.high %v1643, 0.0
      %1649 = vrot.lane.b32.xlu0 %v1576, 16
      %v1650 = vpop.permute.xlu0 %1649
      %1653 = vrot.lane.b32.xlu0 %v1559, 32
      %v1654 = vpop.permute.xlu0 %1653
      %1657 = vrot.lane.b32.xlu0 %v1577, 48
      %v1658 = vpop.permute.xlu0 %1657
      %1661 = vrot.lane.b32.xlu0 %v1568, 64
      %v1662 = vpop.permute.xlu0 %1661
      %1665 = vrot.lane.b32.xlu0 %v1578, 80
      %v1666 = vpop.permute.xlu0 %1665
      %1669 = vrot.lane.b32.xlu0 %v1575, 96
      %v1670 = vpop.permute.xlu0 %1669
      %1673 = vrot.lane.b32.xlu0 %v1579, 112
      %v1674 = vpop.permute.xlu0 %1673
      %1677 = vrot.lane.b32.xlu0 %v1644, 16
      %v1678 = vpop.permute.xlu0 %1677
      %1681 = vrot.lane.b32.xlu0 %v1627, 32
      %v1682 = vpop.permute.xlu0 %1681
      %1685 = vrot.lane.b32.xlu0 %v1645, 48
      %v1686 = vpop.permute.xlu0 %1685
      %1689 = vrot.lane.b32.xlu0 %v1636, 64
      %v1690 = vpop.permute.xlu0 %1689
      %1693 = vrot.lane.b32.xlu0 %v1646, 80
      %v1694 = vpop.permute.xlu0 %1693
      %1697 = vrot.lane.b32.xlu0 %v1643, 96
      %v1698 = vpop.permute.xlu0 %1697
      %1701 = vrot.lane.b32.xlu0 %v1647, 112
      %v1702 = vpop.permute.xlu0 %1701
      %v1704 = vsel %vm725, %v1552, %v1650
      %v1705 = vsel %vm727, %v1704, %v1654
      %v1706 = vsel %vm729, %v1705, %v1658
      %v1707 = vsel %vm731, %v1706, %v1662
      %v1708 = vsel %vm733, %v1707, %v1666
      %v1709 = vsel %vm735, %v1708, %v1670
      %v1710 = vsel %vm737, %v1709, %v1674
      %v1711 = vsel %vm725, %v1620, %v1678
      %v1712 = vsel %vm727, %v1711, %v1682
      %v1713 = vsel %vm729, %v1712, %v1686
      %v1714 = vsel %vm731, %v1713, %v1690
      %v1715 = vsel %vm733, %v1714, %v1694
      %v1716 = vsel %vm735, %v1715, %v1698
      %v1717 = vsel %vm737, %v1716, %v1702
      %1718 = vst [vmem:[#allocation5 + $0x20] sm:$0xf] %v1710
      %1719 = vst [vmem:[#allocation5 + $0x28] sm:$0xf] %v1717
      %v1720 = vld [vmem:[#allocation2 + $0x1] sm:$0xff]
      %v1721 = vld [vmem:[#allocation2 + $0x9] sm:$0xff]
      %v1722 = vld [vmem:[#allocation2 + $0x19] sm:$0xff]
      %v1723 = vld [vmem:[#allocation2 + $0x21] sm:$0xff]
      %v1724 = vld [vmem:[#allocation2 + $0x31] sm:$0xff]
      %v1725 = vld [vmem:[#allocation2 + $0x39] sm:$0xff]
      %v1726 = vld [vmem:[#allocation2 + $0x49] sm:$0xff]
      %v1727 = vld [vmem:[#allocation2 + $0x51] sm:$0xff]
      %1736 = vrot.lane.b32.xlu0 %v1720, 126
      %v1737 = vpop.permute.xlu0 %1736
      %1738 = vrot.lane.b32.xlu0 %v1721, 126
      %v1739 = vpop.permute.xlu0 %1738
      %1740 = vrot.lane.b32.xlu0 %v1722, 126
      %v1741 = vpop.permute.xlu0 %1740
      %1742 = vrot.lane.b32.xlu0 %v1723, 126
      %v1743 = vpop.permute.xlu0 %1742
      %1744 = vrot.lane.b32.xlu0 %v1724, 126
      %v1745 = vpop.permute.xlu0 %1744
      %1746 = vrot.lane.b32.xlu0 %v1725, 126
      %v1747 = vpop.permute.xlu0 %1746
      %1748 = vrot.lane.b32.xlu0 %v1726, 126
      %v1749 = vpop.permute.xlu0 %1748
      %1750 = vrot.lane.b32.xlu0 %v1727, 126
      %v1751 = vpop.permute.xlu0 %1750
      %v1760 = vcombine.low %v1737, %v1745
      %v1761 = vcombine.high %v1737, %v1745
      %v1763 = vunpack.c.l.s4 1983009808
      %v1764 = vunpack.c.0.s8 %v1763
      %v1765 = vlaneseq
      %v1766 = vshrl.u32 %v1765, 7
      %v1767 = vsub.s32 %v1764, %v1766
      %v1768 = vrot.slane %v1760, %v1767
      %v1770 = vunpack.c.l.s4 1983009808
      %v1771 = vunpack.c.0.s8 %v1770
      %v1772 = vlaneseq
      %v1773 = vshrl.u32 %v1772, 7
      %v1774 = vsub.s32 %v1771, %v1773
      %v1775 = vrot.slane %v1761, %v1774
      %v1776 = vcombine.low %v1741, %v1749
      %v1777 = vcombine.high %v1741, %v1749
      %v1779 = vunpack.c.l.s4 1983009808
      %v1780 = vunpack.c.0.s8 %v1779
      %v1781 = vlaneseq
      %v1782 = vshrl.u32 %v1781, 7
      %v1783 = vsub.s32 %v1780, %v1782
      %v1784 = vrot.slane %v1776, %v1783
      %v1786 = vunpack.c.l.s4 1983009808
      %v1787 = vunpack.c.0.s8 %v1786
      %v1788 = vlaneseq
      %v1789 = vshrl.u32 %v1788, 7
      %v1790 = vsub.s32 %v1787, %v1789
      %v1791 = vrot.slane %v1777, %v1790
      %v1792 = vcombine.low %v1768, %v1784
      %v1793 = vcombine.high %v1768, %v1784
      %v1795 = vunpack.c.l.s4 1934713408
      %v1796 = vunpack.c.0.s8 %v1795
      %v1797 = vlaneseq
      %v1798 = vshrl.u32 %v1797, 7
      %v1799 = vsub.s32 %v1796, %v1798
      %v1800 = vrot.slane %v1792, %v1799
      %v1802 = vunpack.c.l.s4 1934713408
      %v1803 = vunpack.c.0.s8 %v1802
      %v1804 = vlaneseq
      %v1805 = vshrl.u32 %v1804, 7
      %v1806 = vsub.s32 %v1803, %v1805
      %v1807 = vrot.slane %v1793, %v1806
      %v1808 = vcombine.low %v1775, %v1791
      %v1809 = vcombine.high %v1775, %v1791
      %v1811 = vunpack.c.l.s4 1934713408
      %v1812 = vunpack.c.0.s8 %v1811
      %v1813 = vlaneseq
      %v1814 = vshrl.u32 %v1813, 7
      %v1815 = vsub.s32 %v1812, %v1814
      %v1816 = vrot.slane %v1808, %v1815
      %v1818 = vunpack.c.l.s4 1934713408
      %v1819 = vunpack.c.0.s8 %v1818
      %v1820 = vlaneseq
      %v1821 = vshrl.u32 %v1820, 7
      %v1822 = vsub.s32 %v1819, %v1821
      %v1823 = vrot.slane %v1809, %v1822
      %v1824 = vcombine.high %v1800, 0.0
      %v1825 = vcombine.high %v1807, 0.0
      %v1826 = vcombine.high %v1816, 0.0
      %v1827 = vcombine.high %v1823, 0.0
      %v1828 = vcombine.low %v1739, %v1747
      %v1829 = vcombine.high %v1739, %v1747
      %v1831 = vunpack.c.l.s4 1983009808
      %v1832 = vunpack.c.0.s8 %v1831
      %v1833 = vlaneseq
      %v1834 = vshrl.u32 %v1833, 7
      %v1835 = vsub.s32 %v1832, %v1834
      %v1836 = vrot.slane %v1828, %v1835
      %v1838 = vunpack.c.l.s4 1983009808
      %v1839 = vunpack.c.0.s8 %v1838
      %v1840 = vlaneseq
      %v1841 = vshrl.u32 %v1840, 7
      %v1842 = vsub.s32 %v1839, %v1841
      %v1843 = vrot.slane %v1829, %v1842
      %v1844 = vcombine.low %v1743, %v1751
      %v1845 = vcombine.high %v1743, %v1751
      %v1847 = vunpack.c.l.s4 1983009808
      %v1848 = vunpack.c.0.s8 %v1847
      %v1849 = vlaneseq
      %v1850 = vshrl.u32 %v1849, 7
      %v1851 = vsub.s32 %v1848, %v1850
      %v1852 = vrot.slane %v1844, %v1851
      %v1854 = vunpack.c.l.s4 1983009808
      %v1855 = vunpack.c.0.s8 %v1854
      %v1856 = vlaneseq
      %v1857 = vshrl.u32 %v1856, 7
      %v1858 = vsub.s32 %v1855, %v1857
      %v1859 = vrot.slane %v1845, %v1858
      %v1860 = vcombine.low %v1836, %v1852
      %v1861 = vcombine.high %v1836, %v1852
      %v1863 = vunpack.c.l.s4 1934713408
      %v1864 = vunpack.c.0.s8 %v1863
      %v1865 = vlaneseq
      %v1866 = vshrl.u32 %v1865, 7
      %v1867 = vsub.s32 %v1864, %v1866
      %v1868 = vrot.slane %v1860, %v1867
      %v1870 = vunpack.c.l.s4 1934713408
      %v1871 = vunpack.c.0.s8 %v1870
      %v1872 = vlaneseq
      %v1873 = vshrl.u32 %v1872, 7
      %v1874 = vsub.s32 %v1871, %v1873
      %v1875 = vrot.slane %v1861, %v1874
      %v1876 = vcombine.low %v1843, %v1859
      %v1877 = vcombine.high %v1843, %v1859
      %v1879 = vunpack.c.l.s4 1934713408
      %v1880 = vunpack.c.0.s8 %v1879
      %v1881 = vlaneseq
      %v1882 = vshrl.u32 %v1881, 7
      %v1883 = vsub.s32 %v1880, %v1882
      %v1884 = vrot.slane %v1876, %v1883
      %v1886 = vunpack.c.l.s4 1934713408
      %v1887 = vunpack.c.0.s8 %v1886
      %v1888 = vlaneseq
      %v1889 = vshrl.u32 %v1888, 7
      %v1890 = vsub.s32 %v1887, %v1889
      %v1891 = vrot.slane %v1877, %v1890
      %v1892 = vcombine.high %v1868, 0.0
      %v1893 = vcombine.high %v1875, 0.0
      %v1894 = vcombine.high %v1884, 0.0
      %v1895 = vcombine.high %v1891, 0.0
      %1897 = vrot.lane.b32.xlu0 %v1824, 16
      %v1898 = vpop.permute.xlu0 %1897
      %1901 = vrot.lane.b32.xlu0 %v1807, 32
      %v1902 = vpop.permute.xlu0 %1901
      %1905 = vrot.lane.b32.xlu0 %v1825, 48
      %v1906 = vpop.permute.xlu0 %1905
      %1909 = vrot.lane.b32.xlu0 %v1816, 64
      %v1910 = vpop.permute.xlu0 %1909
      %1913 = vrot.lane.b32.xlu0 %v1826, 80
      %v1914 = vpop.permute.xlu0 %1913
      %1917 = vrot.lane.b32.xlu0 %v1823, 96
      %v1918 = vpop.permute.xlu0 %1917
      %1921 = vrot.lane.b32.xlu0 %v1827, 112
      %v1922 = vpop.permute.xlu0 %1921
      %1925 = vrot.lane.b32.xlu0 %v1892, 16
      %v1926 = vpop.permute.xlu0 %1925
      %1929 = vrot.lane.b32.xlu0 %v1875, 32
      %v1930 = vpop.permute.xlu0 %1929
      %1933 = vrot.lane.b32.xlu0 %v1893, 48
      %v1934 = vpop.permute.xlu0 %1933
      %1937 = vrot.lane.b32.xlu0 %v1884, 64
      %v1938 = vpop.permute.xlu0 %1937
      %1941 = vrot.lane.b32.xlu0 %v1894, 80
      %v1942 = vpop.permute.xlu0 %1941
      %1945 = vrot.lane.b32.xlu0 %v1891, 96
      %v1946 = vpop.permute.xlu0 %1945
      %1949 = vrot.lane.b32.xlu0 %v1895, 112
      %v1950 = vpop.permute.xlu0 %1949
      %v1952 = vsel %vm725, %v1800, %v1898
      %v1953 = vsel %vm727, %v1952, %v1902
      %v1954 = vsel %vm729, %v1953, %v1906
      %v1955 = vsel %vm731, %v1954, %v1910
      %v1956 = vsel %vm733, %v1955, %v1914
      %v1957 = vsel %vm735, %v1956, %v1918
      %v1958 = vsel %vm737, %v1957, %v1922
      %v1959 = vsel %vm725, %v1868, %v1926
      %v1960 = vsel %vm727, %v1959, %v1930
      %v1961 = vsel %vm729, %v1960, %v1934
      %v1962 = vsel %vm731, %v1961, %v1938
      %v1963 = vsel %vm733, %v1962, %v1942
      %v1964 = vsel %vm735, %v1963, %v1946
      %v1965 = vsel %vm737, %v1964, %v1950
      %v1968 = vrot.slane %v1958, 4
      %v1969 = vrot.slane %v1965, 4
      %1972 = vst [vmem:[#allocation5 + $0x20] sm:$0xf0] %v1968
      %1973 = vst [vmem:[#allocation5 + $0x28] sm:$0xf0] %v1969
      %v1974 = vld [vmem:[#allocation2 + $0x2] sm:$0xff]
      %v1975 = vld [vmem:[#allocation2 + $0xa] sm:$0xff]
      %v1976 = vld [vmem:[#allocation2 + $0x1a] sm:$0xff]
      %v1977 = vld [vmem:[#allocation2 + $0x22] sm:$0xff]
      %v1978 = vld [vmem:[#allocation2 + $0x32] sm:$0xff]
      %v1979 = vld [vmem:[#allocation2 + $0x3a] sm:$0xff]
      %v1980 = vld [vmem:[#allocation2 + $0x4a] sm:$0xff]
      %v1981 = vld [vmem:[#allocation2 + $0x52] sm:$0xff]
      %v1982 = vcombine.low %v1974, %v1978
      %v1983 = vcombine.high %v1974, %v1978
      %v1985 = vunpack.c.l.s4 1983009808
      %v1986 = vunpack.c.0.s8 %v1985
      %v1987 = vlaneseq
      %v1988 = vshrl.u32 %v1987, 7
      %v1989 = vsub.s32 %v1986, %v1988
      %v1990 = vrot.slane %v1982, %v1989
      %v1992 = vunpack.c.l.s4 1983009808
      %v1993 = vunpack.c.0.s8 %v1992
      %v1994 = vlaneseq
      %v1995 = vshrl.u32 %v1994, 7
      %v1996 = vsub.s32 %v1993, %v1995
      %v1997 = vrot.slane %v1983, %v1996
      %v1998 = vcombine.low %v1976, %v1980
      %v1999 = vcombine.high %v1976, %v1980
      %v2001 = vunpack.c.l.s4 1983009808
      %v2002 = vunpack.c.0.s8 %v2001
      %v2003 = vlaneseq
      %v2004 = vshrl.u32 %v2003, 7
      %v2005 = vsub.s32 %v2002, %v2004
      %v2006 = vrot.slane %v1998, %v2005
      %v2008 = vunpack.c.l.s4 1983009808
      %v2009 = vunpack.c.0.s8 %v2008
      %v2010 = vlaneseq
      %v2011 = vshrl.u32 %v2010, 7
      %v2012 = vsub.s32 %v2009, %v2011
      %v2013 = vrot.slane %v1999, %v2012
      %v2014 = vcombine.low %v1990, %v2006
      %v2015 = vcombine.high %v1990, %v2006
      %v2017 = vunpack.c.l.s4 1934713408
      %v2018 = vunpack.c.0.s8 %v2017
      %v2019 = vlaneseq
      %v2020 = vshrl.u32 %v2019, 7
      %v2021 = vsub.s32 %v2018, %v2020
      %v2022 = vrot.slane %v2014, %v2021
      %v2024 = vunpack.c.l.s4 1934713408
      %v2025 = vunpack.c.0.s8 %v2024
      %v2026 = vlaneseq
      %v2027 = vshrl.u32 %v2026, 7
      %v2028 = vsub.s32 %v2025, %v2027
      %v2029 = vrot.slane %v2015, %v2028
      %v2030 = vcombine.low %v1997, %v2013
      %v2031 = vcombine.high %v1997, %v2013
      %v2033 = vunpack.c.l.s4 1934713408
      %v2034 = vunpack.c.0.s8 %v2033
      %v2035 = vlaneseq
      %v2036 = vshrl.u32 %v2035, 7
      %v2037 = vsub.s32 %v2034, %v2036
      %v2038 = vrot.slane %v2030, %v2037
      %v2040 = vunpack.c.l.s4 1934713408
      %v2041 = vunpack.c.0.s8 %v2040
      %v2042 = vlaneseq
      %v2043 = vshrl.u32 %v2042, 7
      %v2044 = vsub.s32 %v2041, %v2043
      %v2045 = vrot.slane %v2031, %v2044
      %v2046 = vcombine.high %v2022, 0.0
      %v2047 = vcombine.high %v2029, 0.0
      %v2048 = vcombine.high %v2038, 0.0
      %v2049 = vcombine.high %v2045, 0.0
      %v2050 = vcombine.low %v1975, %v1979
      %v2051 = vcombine.high %v1975, %v1979
      %v2053 = vunpack.c.l.s4 1983009808
      %v2054 = vunpack.c.0.s8 %v2053
      %v2055 = vlaneseq
      %v2056 = vshrl.u32 %v2055, 7
      %v2057 = vsub.s32 %v2054, %v2056
      %v2058 = vrot.slane %v2050, %v2057
      %v2060 = vunpack.c.l.s4 1983009808
      %v2061 = vunpack.c.0.s8 %v2060
      %v2062 = vlaneseq
      %v2063 = vshrl.u32 %v2062, 7
      %v2064 = vsub.s32 %v2061, %v2063
      %v2065 = vrot.slane %v2051, %v2064
      %v2066 = vcombine.low %v1977, %v1981
      %v2067 = vcombine.high %v1977, %v1981
      %v2069 = vunpack.c.l.s4 1983009808
      %v2070 = vunpack.c.0.s8 %v2069
      %v2071 = vlaneseq
      %v2072 = vshrl.u32 %v2071, 7
      %v2073 = vsub.s32 %v2070, %v2072
      %v2074 = vrot.slane %v2066, %v2073
      %v2076 = vunpack.c.l.s4 1983009808
      %v2077 = vunpack.c.0.s8 %v2076
      %v2078 = vlaneseq
      %v2079 = vshrl.u32 %v2078, 7
      %v2080 = vsub.s32 %v2077, %v2079
      %v2081 = vrot.slane %v2067, %v2080
      %v2082 = vcombine.low %v2058, %v2074
      %v2083 = vcombine.high %v2058, %v2074
      %v2085 = vunpack.c.l.s4 1934713408
      %v2086 = vunpack.c.0.s8 %v2085
      %v2087 = vlaneseq
      %v2088 = vshrl.u32 %v2087, 7
      %v2089 = vsub.s32 %v2086, %v2088
      %v2090 = vrot.slane %v2082, %v2089
      %v2092 = vunpack.c.l.s4 1934713408
      %v2093 = vunpack.c.0.s8 %v2092
      %v2094 = vlaneseq
      %v2095 = vshrl.u32 %v2094, 7
      %v2096 = vsub.s32 %v2093, %v2095
      %v2097 = vrot.slane %v2083, %v2096
      %v2098 = vcombine.low %v2065, %v2081
      %v2099 = vcombine.high %v2065, %v2081
      %v2101 = vunpack.c.l.s4 1934713408
      %v2102 = vunpack.c.0.s8 %v2101
      %v2103 = vlaneseq
      %v2104 = vshrl.u32 %v2103, 7
      %v2105 = vsub.s32 %v2102, %v2104
      %v2106 = vrot.slane %v2098, %v2105
      %v2108 = vunpack.c.l.s4 1934713408
      %v2109 = vunpack.c.0.s8 %v2108
      %v2110 = vlaneseq
      %v2111 = vshrl.u32 %v2110, 7
      %v2112 = vsub.s32 %v2109, %v2111
      %v2113 = vrot.slane %v2099, %v2112
      %v2114 = vcombine.high %v2090, 0.0
      %v2115 = vcombine.high %v2097, 0.0
      %v2116 = vcombine.high %v2106, 0.0
      %v2117 = vcombine.high %v2113, 0.0
      %2119 = vrot.lane.b32.xlu0 %v2046, 16
      %v2120 = vpop.permute.xlu0 %2119
      %2123 = vrot.lane.b32.xlu0 %v2029, 32
      %v2124 = vpop.permute.xlu0 %2123
      %2127 = vrot.lane.b32.xlu0 %v2047, 48
      %v2128 = vpop.permute.xlu0 %2127
      %2131 = vrot.lane.b32.xlu0 %v2038, 64
      %v2132 = vpop.permute.xlu0 %2131
      %2135 = vrot.lane.b32.xlu0 %v2048, 80
      %v2136 = vpop.permute.xlu0 %2135
      %2139 = vrot.lane.b32.xlu0 %v2045, 96
      %v2140 = vpop.permute.xlu0 %2139
      %2143 = vrot.lane.b32.xlu0 %v2049, 112
      %v2144 = vpop.permute.xlu0 %2143
      %2147 = vrot.lane.b32.xlu0 %v2114, 16
      %v2148 = vpop.permute.xlu0 %2147
      %2151 = vrot.lane.b32.xlu0 %v2097, 32
      %v2152 = vpop.permute.xlu0 %2151
      %2155 = vrot.lane.b32.xlu0 %v2115, 48
      %v2156 = vpop.permute.xlu0 %2155
      %2159 = vrot.lane.b32.xlu0 %v2106, 64
      %v2160 = vpop.permute.xlu0 %2159
      %2163 = vrot.lane.b32.xlu0 %v2116, 80
      %v2164 = vpop.permute.xlu0 %2163
      %2167 = vrot.lane.b32.xlu0 %v2113, 96
      %v2168 = vpop.permute.xlu0 %2167
      %2171 = vrot.lane.b32.xlu0 %v2117, 112
      %v2172 = vpop.permute.xlu0 %2171
      %v2174 = vsel %vm725, %v2022, %v2120
      %v2175 = vsel %vm727, %v2174, %v2124
      %v2176 = vsel %vm729, %v2175, %v2128
      %v2177 = vsel %vm731, %v2176, %v2132
      %v2178 = vsel %vm733, %v2177, %v2136
      %v2179 = vsel %vm735, %v2178, %v2140
      %v2180 = vsel %vm737, %v2179, %v2144
      %v2181 = vsel %vm725, %v2090, %v2148
      %v2182 = vsel %vm727, %v2181, %v2152
      %v2183 = vsel %vm729, %v2182, %v2156
      %v2184 = vsel %vm731, %v2183, %v2160
      %v2185 = vsel %vm733, %v2184, %v2164
      %v2186 = vsel %vm735, %v2185, %v2168
      %v2187 = vsel %vm737, %v2186, %v2172
      %2188 = vst [vmem:[#allocation5 + $0x30] sm:$0xf] %v2180
      %2189 = vst [vmem:[#allocation5 + $0x38] sm:$0xf] %v2187
      %v2190 = vld [vmem:[#allocation2 + $0x2] sm:$0xff]
      %v2191 = vld [vmem:[#allocation2 + $0xa] sm:$0xff]
      %v2192 = vld [vmem:[#allocation2 + $0x1a] sm:$0xff]
      %v2193 = vld [vmem:[#allocation2 + $0x22] sm:$0xff]
      %v2194 = vld [vmem:[#allocation2 + $0x32] sm:$0xff]
      %v2195 = vld [vmem:[#allocation2 + $0x3a] sm:$0xff]
      %v2196 = vld [vmem:[#allocation2 + $0x4a] sm:$0xff]
      %v2197 = vld [vmem:[#allocation2 + $0x52] sm:$0xff]
      %2206 = vrot.lane.b32.xlu0 %v2190, 127
      %v2207 = vpop.permute.xlu0 %2206
      %2208 = vrot.lane.b32.xlu0 %v2191, 127
      %v2209 = vpop.permute.xlu0 %2208
      %2210 = vrot.lane.b32.xlu0 %v2192, 127
      %v2211 = vpop.permute.xlu0 %2210
      %2212 = vrot.lane.b32.xlu0 %v2193, 127
      %v2213 = vpop.permute.xlu0 %2212
      %2214 = vrot.lane.b32.xlu0 %v2194, 127
      %v2215 = vpop.permute.xlu0 %2214
      %2216 = vrot.lane.b32.xlu0 %v2195, 127
      %v2217 = vpop.permute.xlu0 %2216
      %2218 = vrot.lane.b32.xlu0 %v2196, 127
      %v2219 = vpop.permute.xlu0 %2218
      %2220 = vrot.lane.b32.xlu0 %v2197, 127
      %v2221 = vpop.permute.xlu0 %2220
      %v2230 = vcombine.low %v2207, %v2215
      %v2231 = vcombine.high %v2207, %v2215
      %v2233 = vunpack.c.l.s4 1983009808
      %v2234 = vunpack.c.0.s8 %v2233
      %v2235 = vlaneseq
      %v2236 = vshrl.u32 %v2235, 7
      %v2237 = vsub.s32 %v2234, %v2236
      %v2238 = vrot.slane %v2230, %v2237
      %v2240 = vunpack.c.l.s4 1983009808
      %v2241 = vunpack.c.0.s8 %v2240
      %v2242 = vlaneseq
      %v2243 = vshrl.u32 %v2242, 7
      %v2244 = vsub.s32 %v2241, %v2243
      %v2245 = vrot.slane %v2231, %v2244
      %v2246 = vcombine.low %v2211, %v2219
      %v2247 = vcombine.high %v2211, %v2219
      %v2249 = vunpack.c.l.s4 1983009808
      %v2250 = vunpack.c.0.s8 %v2249
      %v2251 = vlaneseq
      %v2252 = vshrl.u32 %v2251, 7
      %v2253 = vsub.s32 %v2250, %v2252
      %v2254 = vrot.slane %v2246, %v2253
      %v2256 = vunpack.c.l.s4 1983009808
      %v2257 = vunpack.c.0.s8 %v2256
      %v2258 = vlaneseq
      %v2259 = vshrl.u32 %v2258, 7
      %v2260 = vsub.s32 %v2257, %v2259
      %v2261 = vrot.slane %v2247, %v2260
      %v2262 = vcombine.low %v2238, %v2254
      %v2263 = vcombine.high %v2238, %v2254
      %v2265 = vunpack.c.l.s4 1934713408
      %v2266 = vunpack.c.0.s8 %v2265
      %v2267 = vlaneseq
      %v2268 = vshrl.u32 %v2267, 7
      %v2269 = vsub.s32 %v2266, %v2268
      %v2270 = vrot.slane %v2262, %v2269
      %v2272 = vunpack.c.l.s4 1934713408
      %v2273 = vunpack.c.0.s8 %v2272
      %v2274 = vlaneseq
      %v2275 = vshrl.u32 %v2274, 7
      %v2276 = vsub.s32 %v2273, %v2275
      %v2277 = vrot.slane %v2263, %v2276
      %v2278 = vcombine.low %v2245, %v2261
      %v2279 = vcombine.high %v2245, %v2261
      %v2281 = vunpack.c.l.s4 1934713408
      %v2282 = vunpack.c.0.s8 %v2281
      %v2283 = vlaneseq
      %v2284 = vshrl.u32 %v2283, 7
      %v2285 = vsub.s32 %v2282, %v2284
      %v2286 = vrot.slane %v2278, %v2285
      %v2288 = vunpack.c.l.s4 1934713408
      %v2289 = vunpack.c.0.s8 %v2288
      %v2290 = vlaneseq
      %v2291 = vshrl.u32 %v2290, 7
      %v2292 = vsub.s32 %v2289, %v2291
      %v2293 = vrot.slane %v2279, %v2292
      %v2294 = vcombine.high %v2270, 0.0
      %v2295 = vcombine.high %v2277, 0.0
      %v2296 = vcombine.high %v2286, 0.0
      %v2297 = vcombine.high %v2293, 0.0
      %v2298 = vcombine.low %v2209, %v2217
      %v2299 = vcombine.high %v2209, %v2217
      %v2301 = vunpack.c.l.s4 1983009808
      %v2302 = vunpack.c.0.s8 %v2301
      %v2303 = vlaneseq
      %v2304 = vshrl.u32 %v2303, 7
      %v2305 = vsub.s32 %v2302, %v2304
      %v2306 = vrot.slane %v2298, %v2305
      %v2308 = vunpack.c.l.s4 1983009808
      %v2309 = vunpack.c.0.s8 %v2308
      %v2310 = vlaneseq
      %v2311 = vshrl.u32 %v2310, 7
      %v2312 = vsub.s32 %v2309, %v2311
      %v2313 = vrot.slane %v2299, %v2312
      %v2314 = vcombine.low %v2213, %v2221
      %v2315 = vcombine.high %v2213, %v2221
      %v2317 = vunpack.c.l.s4 1983009808
      %v2318 = vunpack.c.0.s8 %v2317
      %v2319 = vlaneseq
      %v2320 = vshrl.u32 %v2319, 7
      %v2321 = vsub.s32 %v2318, %v2320
      %v2322 = vrot.slane %v2314, %v2321
      %v2324 = vunpack.c.l.s4 1983009808
      %v2325 = vunpack.c.0.s8 %v2324
      %v2326 = vlaneseq
      %v2327 = vshrl.u32 %v2326, 7
      %v2328 = vsub.s32 %v2325, %v2327
      %v2329 = vrot.slane %v2315, %v2328
      %v2330 = vcombine.low %v2306, %v2322
      %v2331 = vcombine.high %v2306, %v2322
      %v2333 = vunpack.c.l.s4 1934713408
      %v2334 = vunpack.c.0.s8 %v2333
      %v2335 = vlaneseq
      %v2336 = vshrl.u32 %v2335, 7
      %v2337 = vsub.s32 %v2334, %v2336
      %v2338 = vrot.slane %v2330, %v2337
      %v2340 = vunpack.c.l.s4 1934713408
      %v2341 = vunpack.c.0.s8 %v2340
      %v2342 = vlaneseq
      %v2343 = vshrl.u32 %v2342, 7
      %v2344 = vsub.s32 %v2341, %v2343
      %v2345 = vrot.slane %v2331, %v2344
      %v2346 = vcombine.low %v2313, %v2329
      %v2347 = vcombine.high %v2313, %v2329
      %v2349 = vunpack.c.l.s4 1934713408
      %v2350 = vunpack.c.0.s8 %v2349
      %v2351 = vlaneseq
      %v2352 = vshrl.u32 %v2351, 7
      %v2353 = vsub.s32 %v2350, %v2352
      %v2354 = vrot.slane %v2346, %v2353
      %v2356 = vunpack.c.l.s4 1934713408
      %v2357 = vunpack.c.0.s8 %v2356
      %v2358 = vlaneseq
      %v2359 = vshrl.u32 %v2358, 7
      %v2360 = vsub.s32 %v2357, %v2359
      %v2361 = vrot.slane %v2347, %v2360
      %v2362 = vcombine.high %v2338, 0.0
      %v2363 = vcombine.high %v2345, 0.0
      %v2364 = vcombine.high %v2354, 0.0
      %v2365 = vcombine.high %v2361, 0.0
      %2367 = vrot.lane.b32.xlu0 %v2294, 16
      %v2368 = vpop.permute.xlu0 %2367
      %2371 = vrot.lane.b32.xlu0 %v2277, 32
      %v2372 = vpop.permute.xlu0 %2371
      %2375 = vrot.lane.b32.xlu0 %v2295, 48
      %v2376 = vpop.permute.xlu0 %2375
      %2379 = vrot.lane.b32.xlu0 %v2286, 64
      %v2380 = vpop.permute.xlu0 %2379
      %2383 = vrot.lane.b32.xlu0 %v2296, 80
      %v2384 = vpop.permute.xlu0 %2383
      %2387 = vrot.lane.b32.xlu0 %v2293, 96
      %v2388 = vpop.permute.xlu0 %2387
      %2391 = vrot.lane.b32.xlu0 %v2297, 112
      %v2392 = vpop.permute.xlu0 %2391
      %2395 = vrot.lane.b32.xlu0 %v2362, 16
      %v2396 = vpop.permute.xlu0 %2395
      %2399 = vrot.lane.b32.xlu0 %v2345, 32
      %v2400 = vpop.permute.xlu0 %2399
      %2403 = vrot.lane.b32.xlu0 %v2363, 48
      %v2404 = vpop.permute.xlu0 %2403
      %2407 = vrot.lane.b32.xlu0 %v2354, 64
      %v2408 = vpop.permute.xlu0 %2407
      %2411 = vrot.lane.b32.xlu0 %v2364, 80
      %v2412 = vpop.permute.xlu0 %2411
      %2415 = vrot.lane.b32.xlu0 %v2361, 96
      %v2416 = vpop.permute.xlu0 %2415
      %2419 = vrot.lane.b32.xlu0 %v2365, 112
      %v2420 = vpop.permute.xlu0 %2419
      %v2422 = vsel %vm725, %v2270, %v2368
      %v2423 = vsel %vm727, %v2422, %v2372
      %v2424 = vsel %vm729, %v2423, %v2376
      %v2425 = vsel %vm731, %v2424, %v2380
      %v2426 = vsel %vm733, %v2425, %v2384
      %v2427 = vsel %vm735, %v2426, %v2388
      %v2428 = vsel %vm737, %v2427, %v2392
      %v2429 = vsel %vm725, %v2338, %v2396
      %v2430 = vsel %vm727, %v2429, %v2400
      %v2431 = vsel %vm729, %v2430, %v2404
      %v2432 = vsel %vm731, %v2431, %v2408
      %v2433 = vsel %vm733, %v2432, %v2412
      %v2434 = vsel %vm735, %v2433, %v2416
      %v2435 = vsel %vm737, %v2434, %v2420
      %v2438 = vrot.slane %v2428, 4
      %v2439 = vrot.slane %v2435, 4
      %2442 = vst [vmem:[#allocation5 + $0x30] sm:$0xf0] %v2438
      %2443 = vst [vmem:[#allocation5 + $0x38] sm:$0xf0] %v2439
      %v2444 = vld [vmem:[#allocation2 + $0x2] sm:$0xff]
      %v2445 = vld [vmem:[#allocation2 + $0xa] sm:$0xff]
      %v2446 = vld [vmem:[#allocation2 + $0x1a] sm:$0xff]
      %v2447 = vld [vmem:[#allocation2 + $0x22] sm:$0xff]
      %v2448 = vld [vmem:[#allocation2 + $0x32] sm:$0xff]
      %v2449 = vld [vmem:[#allocation2 + $0x3a] sm:$0xff]
      %v2450 = vld [vmem:[#allocation2 + $0x4a] sm:$0xff]
      %v2451 = vld [vmem:[#allocation2 + $0x52] sm:$0xff]
      %2460 = vrot.lane.b32.xlu0 %v2444, 126
      %v2461 = vpop.permute.xlu0 %2460
      %2462 = vrot.lane.b32.xlu0 %v2445, 126
      %v2463 = vpop.permute.xlu0 %2462
      %2464 = vrot.lane.b32.xlu0 %v2446, 126
      %v2465 = vpop.permute.xlu0 %2464
      %2466 = vrot.lane.b32.xlu0 %v2447, 126
      %v2467 = vpop.permute.xlu0 %2466
      %2468 = vrot.lane.b32.xlu0 %v2448, 126
      %v2469 = vpop.permute.xlu0 %2468
      %2470 = vrot.lane.b32.xlu0 %v2449, 126
      %v2471 = vpop.permute.xlu0 %2470
      %2472 = vrot.lane.b32.xlu0 %v2450, 126
      %v2473 = vpop.permute.xlu0 %2472
      %2474 = vrot.lane.b32.xlu0 %v2451, 126
      %v2475 = vpop.permute.xlu0 %2474
      %v2484 = vcombine.low %v2461, %v2469
      %v2485 = vcombine.high %v2461, %v2469
      %v2487 = vunpack.c.l.s4 1983009808
      %v2488 = vunpack.c.0.s8 %v2487
      %v2489 = vlaneseq
      %v2490 = vshrl.u32 %v2489, 7
      %v2491 = vsub.s32 %v2488, %v2490
      %v2492 = vrot.slane %v2484, %v2491
      %v2494 = vunpack.c.l.s4 1983009808
      %v2495 = vunpack.c.0.s8 %v2494
      %v2496 = vlaneseq
      %v2497 = vshrl.u32 %v2496, 7
      %v2498 = vsub.s32 %v2495, %v2497
      %v2499 = vrot.slane %v2485, %v2498
      %v2500 = vcombine.low %v2465, %v2473
      %v2501 = vcombine.high %v2465, %v2473
      %v2503 = vunpack.c.l.s4 1983009808
      %v2504 = vunpack.c.0.s8 %v2503
      %v2505 = vlaneseq
      %v2506 = vshrl.u32 %v2505, 7
      %v2507 = vsub.s32 %v2504, %v2506
      %v2508 = vrot.slane %v2500, %v2507
      %v2510 = vunpack.c.l.s4 1983009808
      %v2511 = vunpack.c.0.s8 %v2510
      %v2512 = vlaneseq
      %v2513 = vshrl.u32 %v2512, 7
      %v2514 = vsub.s32 %v2511, %v2513
      %v2515 = vrot.slane %v2501, %v2514
      %v2516 = vcombine.low %v2492, %v2508
      %v2517 = vcombine.high %v2492, %v2508
      %v2519 = vunpack.c.l.s4 1934713408
      %v2520 = vunpack.c.0.s8 %v2519
      %v2521 = vlaneseq
      %v2522 = vshrl.u32 %v2521, 7
      %v2523 = vsub.s32 %v2520, %v2522
      %v2524 = vrot.slane %v2516, %v2523
      %v2526 = vunpack.c.l.s4 1934713408
      %v2527 = vunpack.c.0.s8 %v2526
      %v2528 = vlaneseq
      %v2529 = vshrl.u32 %v2528, 7
      %v2530 = vsub.s32 %v2527, %v2529
      %v2531 = vrot.slane %v2517, %v2530
      %v2532 = vcombine.low %v2499, %v2515
      %v2533 = vcombine.high %v2499, %v2515
      %v2535 = vunpack.c.l.s4 1934713408
      %v2536 = vunpack.c.0.s8 %v2535
      %v2537 = vlaneseq
      %v2538 = vshrl.u32 %v2537, 7
      %v2539 = vsub.s32 %v2536, %v2538
      %v2540 = vrot.slane %v2532, %v2539
      %v2542 = vunpack.c.l.s4 1934713408
      %v2543 = vunpack.c.0.s8 %v2542
      %v2544 = vlaneseq
      %v2545 = vshrl.u32 %v2544, 7
      %v2546 = vsub.s32 %v2543, %v2545
      %v2547 = vrot.slane %v2533, %v2546
      %v2548 = vcombine.high %v2524, 0.0
      %v2549 = vcombine.high %v2531, 0.0
      %v2550 = vcombine.high %v2540, 0.0
      %v2551 = vcombine.high %v2547, 0.0
      %v2552 = vcombine.low %v2463, %v2471
      %v2553 = vcombine.high %v2463, %v2471
      %v2555 = vunpack.c.l.s4 1983009808
      %v2556 = vunpack.c.0.s8 %v2555
      %v2557 = vlaneseq
      %v2558 = vshrl.u32 %v2557, 7
      %v2559 = vsub.s32 %v2556, %v2558
      %v2560 = vrot.slane %v2552, %v2559
      %v2562 = vunpack.c.l.s4 1983009808
      %v2563 = vunpack.c.0.s8 %v2562
      %v2564 = vlaneseq
      %v2565 = vshrl.u32 %v2564, 7
      %v2566 = vsub.s32 %v2563, %v2565
      %v2567 = vrot.slane %v2553, %v2566
      %v2568 = vcombine.low %v2467, %v2475
      %v2569 = vcombine.high %v2467, %v2475
      %v2571 = vunpack.c.l.s4 1983009808
      %v2572 = vunpack.c.0.s8 %v2571
      %v2573 = vlaneseq
      %v2574 = vshrl.u32 %v2573, 7
      %v2575 = vsub.s32 %v2572, %v2574
      %v2576 = vrot.slane %v2568, %v2575
      %v2578 = vunpack.c.l.s4 1983009808
      %v2579 = vunpack.c.0.s8 %v2578
      %v2580 = vlaneseq
      %v2581 = vshrl.u32 %v2580, 7
      %v2582 = vsub.s32 %v2579, %v2581
      %v2583 = vrot.slane %v2569, %v2582
      %v2584 = vcombine.low %v2560, %v2576
      %v2585 = vcombine.high %v2560, %v2576
      %v2587 = vunpack.c.l.s4 1934713408
      %v2588 = vunpack.c.0.s8 %v2587
      %v2589 = vlaneseq
      %v2590 = vshrl.u32 %v2589, 7
      %v2591 = vsub.s32 %v2588, %v2590
      %v2592 = vrot.slane %v2584, %v2591
      %v2594 = vunpack.c.l.s4 1934713408
      %v2595 = vunpack.c.0.s8 %v2594
      %v2596 = vlaneseq
      %v2597 = vshrl.u32 %v2596, 7
      %v2598 = vsub.s32 %v2595, %v2597
      %v2599 = vrot.slane %v2585, %v2598
      %v2600 = vcombine.low %v2567, %v2583
      %v2601 = vcombine.high %v2567, %v2583
      %v2603 = vunpack.c.l.s4 1934713408
      %v2604 = vunpack.c.0.s8 %v2603
      %v2605 = vlaneseq
      %v2606 = vshrl.u32 %v2605, 7
      %v2607 = vsub.s32 %v2604, %v2606
      %v2608 = vrot.slane %v2600, %v2607
      %v2610 = vunpack.c.l.s4 1934713408
      %v2611 = vunpack.c.0.s8 %v2610
      %v2612 = vlaneseq
      %v2613 = vshrl.u32 %v2612, 7
      %v2614 = vsub.s32 %v2611, %v2613
      %v2615 = vrot.slane %v2601, %v2614
      %v2616 = vcombine.high %v2592, 0.0
      %v2617 = vcombine.high %v2599, 0.0
      %v2618 = vcombine.high %v2608, 0.0
      %v2619 = vcombine.high %v2615, 0.0
      %2621 = vrot.lane.b32.xlu0 %v2548, 16
      %v2622 = vpop.permute.xlu0 %2621
      %2625 = vrot.lane.b32.xlu0 %v2531, 32
      %v2626 = vpop.permute.xlu0 %2625
      %2629 = vrot.lane.b32.xlu0 %v2549, 48
      %v2630 = vpop.permute.xlu0 %2629
      %2633 = vrot.lane.b32.xlu0 %v2540, 64
      %v2634 = vpop.permute.xlu0 %2633
      %2637 = vrot.lane.b32.xlu0 %v2550, 80
      %v2638 = vpop.permute.xlu0 %2637
      %2641 = vrot.lane.b32.xlu0 %v2547, 96
      %v2642 = vpop.permute.xlu0 %2641
      %2645 = vrot.lane.b32.xlu0 %v2551, 112
      %v2646 = vpop.permute.xlu0 %2645
      %2649 = vrot.lane.b32.xlu0 %v2616, 16
      %v2650 = vpop.permute.xlu0 %2649
      %2653 = vrot.lane.b32.xlu0 %v2599, 32
      %v2654 = vpop.permute.xlu0 %2653
      %2657 = vrot.lane.b32.xlu0 %v2617, 48
      %v2658 = vpop.permute.xlu0 %2657
      %2661 = vrot.lane.b32.xlu0 %v2608, 64
      %v2662 = vpop.permute.xlu0 %2661
      %2665 = vrot.lane.b32.xlu0 %v2618, 80
      %v2666 = vpop.permute.xlu0 %2665
      %2669 = vrot.lane.b32.xlu0 %v2615, 96
      %v2670 = vpop.permute.xlu0 %2669
      %2673 = vrot.lane.b32.xlu0 %v2619, 112
      %v2674 = vpop.permute.xlu0 %2673
      %v2676 = vsel %vm725, %v2524, %v2622
      %v2677 = vsel %vm727, %v2676, %v2626
      %v2678 = vsel %vm729, %v2677, %v2630
      %v2679 = vsel %vm731, %v2678, %v2634
      %v2680 = vsel %vm733, %v2679, %v2638
      %v2681 = vsel %vm735, %v2680, %v2642
      %v2682 = vsel %vm737, %v2681, %v2646
      %v2683 = vsel %vm725, %v2592, %v2650
      %v2684 = vsel %vm727, %v2683, %v2654
      %v2685 = vsel %vm729, %v2684, %v2658
      %v2686 = vsel %vm731, %v2685, %v2662
      %v2687 = vsel %vm733, %v2686, %v2666
      %v2688 = vsel %vm735, %v2687, %v2670
      %v2689 = vsel %vm737, %v2688, %v2674
      %2690 = vst [vmem:[#allocation5 + $0x40] sm:$0xf] %v2682
      %2691 = vst [vmem:[#allocation5 + $0x48] sm:$0xf] %v2689
      %v2692 = vld [vmem:[%s1] sm:$0x3]
      %v2693 = vld [vmem:[#allocation5] sm:$0xff]
      %v2694 = vld [vmem:[#allocation5 + $0x8] sm:$0xff]
      %v2695 = vld [vmem:[#allocation5 + $0x10] sm:$0xff]
      %v2696 = vld [vmem:[#allocation5 + $0x18] sm:$0xff]
      %v2697 = vld [vmem:[#allocation5 + $0x20] sm:$0xff]
      %v2698 = vld [vmem:[#allocation5 + $0x28] sm:$0xff]
      %v2699 = vld [vmem:[#allocation5 + $0x30] sm:$0xff]
      %v2700 = vld [vmem:[#allocation5 + $0x38] sm:$0xff]
      %v2701 = vld [vmem:[#allocation5 + $0x40] sm:$0xf]
      %v2702 = vld [vmem:[#allocation5 + $0x48] sm:$0xf]
      %v2703 = vld [vmem:[%s2] sm:$0x3]
      %2705 = vset.pattern.permute.xlu0 0
      %2706 = vperm.xlu0 %2705, %v2703
      %v2707 = vpop.permute.xlu0 %2706
      %vm2709 = vcmask 293888
      %v2711 = vsel %vm2709, %v2692, 0
      %vm2713 = vcmask 1043456
      %v2715 = vsel %vm2713, %v2701, 0
      %v2718 = vsel %vm2713, %v2702, 0
      %2720 = vmatprep.subr.mxu0 %v2694
      %2721 = vmatpush1.msra.mxu0 %v2693
      %2722 = vmatprep.subr.mxu0 %v2696
      %2723 = vmatpush1.msra.mxu0 %v2695
      %2724 = vmatprep.subr.mxu0 %v2698
      %2725 = vmatpush1.msra.mxu0 %v2697
      %2726 = vmatprep.subr.mxu0 %v2700
      %2727 = vmatpush1.msra.mxu0 %v2699
      %2728 = vmatprep.subr.mxu0 %v2718
      %2729 = vmatpush1.msra.mxu0 %v2715
      %2730 = vmatprep.subr.mxu0 0.0
      %2731 = vmatpush1.msra.mxu0 0.0
      %2732 = vmatprep.subr.mxu0 0.0
      %2733 = vmatpush1.msra.mxu0 0.0
      %2734 = vmatprep.subr.mxu0 0.0
      %2735 = vmatpush1.msra.mxu0 0.0
      %2736 = vmatprep.subr.mxu0 0.0
      %2737 = vmatpush1.msra.mxu0 0.0
      %2738 = vmatprep.subr.mxu0 0.0
      %2739 = vmatpush1.msra.mxu0 0.0
      %2740 = vmatprep.subr.mxu0 0.0
      %2741 = vmatpush1.msra.mxu0 0.0
      %2742 = vmatprep.subr.mxu0 0.0
      %2743 = vmatpush1.msra.mxu0 0.0
      %2744 = vmatprep.subr.mxu0 0.0
      %2745 = vmatpush1.msra.mxu0 0.0
      %2746 = vmatprep.subr.mxu0 0.0
      %2747 = vmatpush1.msra.mxu0 0.0
      %2748 = vmatprep.subr.mxu0 0.0
      %2749 = vmatpush1.msra.mxu0 0.0
      %2750 = vmatprep.subr.mxu0 0.0
      %2751 = vmatpush1.msra.mxu0 0.0
      %2752 = vmatprep.subr.mxu0 0.0
      %2753 = vmatpush1.msra.mxu0 0.0
      %2754 = vmatprep.subr.mxu0 0.0
      %2755 = vmatpush1.msra.mxu0 0.0
      %2756 = vmatprep.subr.mxu0 0.0
      %2757 = vmatpush1.msra.mxu0 0.0
      %2758 = vmatprep.subr.mxu0 0.0
      %2759 = vmatpush1.msra.mxu0 0.0
      %2760 = vmatprep.subr.mxu0 0.0
      %2761 = vmatpush1.msra.mxu0 0.0
      %2762 = vmatprep.subr.mxu0 0.0
      %2763 = vmatpush1.msra.mxu0 0.0
      %2764 = vmatprep.subr.mxu0 0.0
      %2765 = vmatpush1.msra.mxu0 0.0
      %2766 = vmatprep.subr.mxu0 0.0
      %2767 = vmatpush1.msra.mxu0 0.0
      %2768 = vmatprep.subr.mxu0 0.0
      %2769 = vmatpush1.msra.mxu0 0.0
      %2770 = vmatprep.subr.mxu0 0.0
      %2771 = vmatpush1.msra.mxu0 0.0
      %2772 = vmatprep.subr.mxu0 0.0
      %2773 = vmatpush1.msra.mxu0 0.0
      %2774 = vmatprep.subr.mxu0 0.0
      %2775 = vmatpush1.msra.mxu0 0.0
      %2776 = vmatprep.subr.mxu0 0.0
      %2777 = vmatpush1.msra.mxu0 0.0
      %2778 = vmatprep.subr.mxu0 0.0
      %2779 = vmatpush1.msra.mxu0 0.0
      %2780 = vmatprep.subr.mxu0 0.0
      %2781 = vmatpush1.msra.mxu0 0.0
      %2782 = vmatprep.subr.mxu0 0.0
      %2783 = vmatpush1.msra.mxu0 0.0
      %2784 = vmatprep.mubr.f32.mxu0 0.0
      %2785 = vmatmul.mubr.f32.gmra.mrb[0].mxu0 %v2711
      %v2786 = vpop.f32.mrb[0].mxu0
      %v2787 = vadd.f32 %v2707, %v2786
      %v2788 = vpop.f32.mrb[0].mxu0
      %v2789 = vadd.f32 %v2707, %v2788
      %2790 = vdwg.mxu0
      %v2791 = vmax.f32 %v2787, 0.0
      %v2792 = vmax.f32 %v2789, 0.0
      %2793 = vst.msk [vmem:[#allocation3] sm:$0xff] %vm280, 0.0
      %2794 = vst.msk [vmem:[#allocation3 + $0x8] sm:$0xff] %vm280, 0.0
      %2795 = vst.msk [vmem:[#allocation3 + $0x10] sm:$0x3] %vm283, 0.0
      %2796 = vst.msk [vmem:[#allocation3 + $0x18] sm:$0xff] %vm280, 0.0
      %2797 = vst.msk [vmem:[#allocation3 + $0x20] sm:$0xff] %vm280, 0.0
      %2798 = vst.msk [vmem:[#allocation3 + $0x28] sm:$0x3] %vm283, 0.0
      %2800 = vrot.lane.b32.xlu0 %v2791, 112
      %v2801 = vpop.permute.xlu0 %2800
      %2803 = vrot.lane.b32.xlu0 %v2791, 96
      %v2804 = vpop.permute.xlu0 %2803
      %2806 = vrot.lane.b32.xlu0 %v2791, 80
      %v2807 = vpop.permute.xlu0 %2806
      %2809 = vrot.lane.b32.xlu0 %v2791, 64
      %v2810 = vpop.permute.xlu0 %2809
      %2812 = vrot.lane.b32.xlu0 %v2791, 48
      %v2813 = vpop.permute.xlu0 %2812
      %2815 = vrot.lane.b32.xlu0 %v2791, 32
      %v2816 = vpop.permute.xlu0 %2815
      %2818 = vrot.lane.b32.xlu0 %v2791, 16
      %v2819 = vpop.permute.xlu0 %2818
      %2822 = vrot.lane.b32.xlu0 %v2792, 112
      %v2823 = vpop.permute.xlu0 %2822
      %2825 = vrot.lane.b32.xlu0 %v2792, 96
      %v2826 = vpop.permute.xlu0 %2825
      %2828 = vrot.lane.b32.xlu0 %v2792, 80
      %v2829 = vpop.permute.xlu0 %2828
      %2831 = vrot.lane.b32.xlu0 %v2792, 64
      %v2832 = vpop.permute.xlu0 %2831
      %2834 = vrot.lane.b32.xlu0 %v2792, 48
      %v2835 = vpop.permute.xlu0 %2834
      %2837 = vrot.lane.b32.xlu0 %v2792, 32
      %v2838 = vpop.permute.xlu0 %2837
      %2840 = vrot.lane.b32.xlu0 %v2792, 16
      %v2841 = vpop.permute.xlu0 %2840
      %v2843 = vcombine.low %v2791, %v2804
      %v2845 = vunpack.c.l.s4 1983009808
      %v2846 = vunpack.c.0.s8 %v2845
      %v2847 = vlaneseq
      %v2848 = vshrl.u32 %v2847, 7
      %v2849 = vsub.s32 %v2846, %v2848
      %v2850 = vrot.slane %v2843, %v2849
      %v2851 = vcombine.low %v2801, %v2807
      %v2853 = vunpack.c.l.s4 1983009808
      %v2854 = vunpack.c.0.s8 %v2853
      %v2855 = vlaneseq
      %v2856 = vshrl.u32 %v2855, 7
      %v2857 = vsub.s32 %v2854, %v2856
      %v2858 = vrot.slane %v2851, %v2857
      %v2859 = vcombine.low %v2810, %v2816
      %v2861 = vunpack.c.l.s4 1983009808
      %v2862 = vunpack.c.0.s8 %v2861
      %v2863 = vlaneseq
      %v2864 = vshrl.u32 %v2863, 7
      %v2865 = vsub.s32 %v2862, %v2864
      %v2866 = vrot.slane %v2859, %v2865
      %v2867 = vcombine.low %v2813, %v2819
      %v2869 = vunpack.c.l.s4 1983009808
      %v2870 = vunpack.c.0.s8 %v2869
      %v2871 = vlaneseq
      %v2872 = vshrl.u32 %v2871, 7
      %v2873 = vsub.s32 %v2870, %v2872
      %v2874 = vrot.slane %v2867, %v2873
      %v2875 = vcombine.low %v2850, %v2858
      %v2877 = vunpack.c.l.s4 1934713408
      %v2878 = vunpack.c.0.s8 %v2877
      %v2879 = vlaneseq
      %v2880 = vshrl.u32 %v2879, 7
      %v2881 = vsub.s32 %v2878, %v2880
      %v2882 = vrot.slane %v2875, %v2881
      %v2883 = vcombine.low %v2866, %v2874
      %v2885 = vunpack.c.l.s4 1934713408
      %v2886 = vunpack.c.0.s8 %v2885
      %v2887 = vlaneseq
      %v2888 = vshrl.u32 %v2887, 7
      %v2889 = vsub.s32 %v2886, %v2888
      %v2890 = vrot.slane %v2883, %v2889
      %v2891 = vcombine.low %v2882, %v2890
      %v2892 = vcombine.high %v2882, %v2890
      %v2893 = vcombine.low %v2792, %v2826
      %v2895 = vunpack.c.l.s4 1983009808
      %v2896 = vunpack.c.0.s8 %v2895
      %v2897 = vlaneseq
      %v2898 = vshrl.u32 %v2897, 7
      %v2899 = vsub.s32 %v2896, %v2898
      %v2900 = vrot.slane %v2893, %v2899
      %v2901 = vcombine.low %v2823, %v2829
      %v2903 = vunpack.c.l.s4 1983009808
      %v2904 = vunpack.c.0.s8 %v2903
      %v2905 = vlaneseq
      %v2906 = vshrl.u32 %v2905, 7
      %v2907 = vsub.s32 %v2904, %v2906
      %v2908 = vrot.slane %v2901, %v2907
      %v2909 = vcombine.low %v2832, %v2838
      %v2911 = vunpack.c.l.s4 1983009808
      %v2912 = vunpack.c.0.s8 %v2911
      %v2913 = vlaneseq
      %v2914 = vshrl.u32 %v2913, 7
      %v2915 = vsub.s32 %v2912, %v2914
      %v2916 = vrot.slane %v2909, %v2915
      %v2917 = vcombine.low %v2835, %v2841
      %v2919 = vunpack.c.l.s4 1983009808
      %v2920 = vunpack.c.0.s8 %v2919
      %v2921 = vlaneseq
      %v2922 = vshrl.u32 %v2921, 7
      %v2923 = vsub.s32 %v2920, %v2922
      %v2924 = vrot.slane %v2917, %v2923
      %v2925 = vcombine.low %v2900, %v2908
      %v2927 = vunpack.c.l.s4 1934713408
      %v2928 = vunpack.c.0.s8 %v2927
      %v2929 = vlaneseq
      %v2930 = vshrl.u32 %v2929, 7
      %v2931 = vsub.s32 %v2928, %v2930
      %v2932 = vrot.slane %v2925, %v2931
      %v2933 = vcombine.low %v2916, %v2924
      %v2935 = vunpack.c.l.s4 1934713408
      %v2936 = vunpack.c.0.s8 %v2935
      %v2937 = vlaneseq
      %v2938 = vshrl.u32 %v2937, 7
      %v2939 = vsub.s32 %v2936, %v2938
      %v2940 = vrot.slane %v2933, %v2939
      %v2941 = vcombine.low %v2932, %v2940
      %v2942 = vcombine.high %v2932, %v2940
      %2947 = vrot.lane.b32.xlu0 %v2891, 1
      %v2948 = vpop.permute.xlu0 %2947
      %2949 = vrot.lane.b32.xlu0 %v2941, 1
      %v2950 = vpop.permute.xlu0 %2949
      %2951 = vrot.lane.b32.xlu0 %v2892, 1
      %v2952 = vpop.permute.xlu0 %2951
      %2953 = vrot.lane.b32.xlu0 %v2942, 1
      %v2954 = vpop.permute.xlu0 %2953
      %2959 = vst.msk [vmem:[#allocation3 + $0x1] sm:$0xff] %vm516, %v2948
      %2960 = vst.msk [vmem:[#allocation3 + $0x9] sm:$0xff] %vm516, %v2950
      %2961 = vst.msk [vmem:[#allocation3 + $0x19] sm:$0xff] %vm516, %v2952
      %2962 = vst.msk [vmem:[#allocation3 + $0x21] sm:$0xff] %vm516, %v2954
      %v2963 = vld [vmem:[#allocation3] sm:$0xff]
      %v2964 = vld [vmem:[#allocation3 + $0x8] sm:$0xff]
      %v2965 = vld [vmem:[#allocation3 + $0x18] sm:$0xff]
      %v2966 = vld [vmem:[#allocation3 + $0x20] sm:$0xff]
      %v2967 = vcombine.high %v2963, 0.0
      %v2969 = vunpack.c.l.s4 1983009808
      %v2970 = vunpack.c.0.s8 %v2969
      %v2971 = vlaneseq
      %v2972 = vshrl.u32 %v2971, 7
      %v2973 = vsub.s32 %v2970, %v2972
      %v2974 = vrot.slane %v2963, %v2973
      %v2976 = vunpack.c.l.s4 1983009808
      %v2977 = vunpack.c.0.s8 %v2976
      %v2978 = vlaneseq
      %v2979 = vshrl.u32 %v2978, 7
      %v2980 = vsub.s32 %v2977, %v2979
      %v2981 = vrot.slane %v2967, %v2980
      %v2982 = vcombine.high %v2965, 0.0
      %v2984 = vunpack.c.l.s4 1983009808
      %v2985 = vunpack.c.0.s8 %v2984
      %v2986 = vlaneseq
      %v2987 = vshrl.u32 %v2986, 7
      %v2988 = vsub.s32 %v2985, %v2987
      %v2989 = vrot.slane %v2965, %v2988
      %v2991 = vunpack.c.l.s4 1983009808
      %v2992 = vunpack.c.0.s8 %v2991
      %v2993 = vlaneseq
      %v2994 = vshrl.u32 %v2993, 7
      %v2995 = vsub.s32 %v2992, %v2994
      %v2996 = vrot.slane %v2982, %v2995
      %v2997 = vcombine.low %v2974, %v2989
      %v2998 = vcombine.high %v2974, %v2989
      %v3000 = vunpack.c.l.s4 1934713408
      %v3001 = vunpack.c.0.s8 %v3000
      %v3002 = vlaneseq
      %v3003 = vshrl.u32 %v3002, 7
      %v3004 = vsub.s32 %v3001, %v3003
      %v3005 = vrot.slane %v2997, %v3004
      %v3007 = vunpack.c.l.s4 1934713408
      %v3008 = vunpack.c.0.s8 %v3007
      %v3009 = vlaneseq
      %v3010 = vshrl.u32 %v3009, 7
      %v3011 = vsub.s32 %v3008, %v3010
      %v3012 = vrot.slane %v2998, %v3011
      %v3013 = vcombine.low %v2981, %v2996
      %v3014 = vcombine.high %v2981, %v2996
      %v3016 = vunpack.c.l.s4 1934713408
      %v3017 = vunpack.c.0.s8 %v3016
      %v3018 = vlaneseq
      %v3019 = vshrl.u32 %v3018, 7
      %v3020 = vsub.s32 %v3017, %v3019
      %v3021 = vrot.slane %v3013, %v3020
      %v3023 = vunpack.c.l.s4 1934713408
      %v3024 = vunpack.c.0.s8 %v3023
      %v3025 = vlaneseq
      %v3026 = vshrl.u32 %v3025, 7
      %v3027 = vsub.s32 %v3024, %v3026
      %v3028 = vrot.slane %v3014, %v3027
      %v3029 = vcombine.high %v3005, 0.0
      %v3030 = vcombine.high %v3012, 0.0
      %v3031 = vcombine.high %v3021, 0.0
      %v3032 = vcombine.high %v3028, 0.0
      %v3033 = vcombine.high %v2964, 0.0
      %v3035 = vunpack.c.l.s4 1983009808
      %v3036 = vunpack.c.0.s8 %v3035
      %v3037 = vlaneseq
      %v3038 = vshrl.u32 %v3037, 7
      %v3039 = vsub.s32 %v3036, %v3038
      %v3040 = vrot.slane %v2964, %v3039
      %v3042 = vunpack.c.l.s4 1983009808
      %v3043 = vunpack.c.0.s8 %v3042
      %v3044 = vlaneseq
      %v3045 = vshrl.u32 %v3044, 7
      %v3046 = vsub.s32 %v3043, %v3045
      %v3047 = vrot.slane %v3033, %v3046
      %v3048 = vcombine.high %v2966, 0.0
      %v3050 = vunpack.c.l.s4 1983009808
      %v3051 = vunpack.c.0.s8 %v3050
      %v3052 = vlaneseq
      %v3053 = vshrl.u32 %v3052, 7
      %v3054 = vsub.s32 %v3051, %v3053
      %v3055 = vrot.slane %v2966, %v3054
      %v3057 = vunpack.c.l.s4 1983009808
      %v3058 = vunpack.c.0.s8 %v3057
      %v3059 = vlaneseq
      %v3060 = vshrl.u32 %v3059, 7
      %v3061 = vsub.s32 %v3058, %v3060
      %v3062 = vrot.slane %v3048, %v3061
      %v3063 = vcombine.low %v3040, %v3055
      %v3064 = vcombine.high %v3040, %v3055
      %v3066 = vunpack.c.l.s4 1934713408
      %v3067 = vunpack.c.0.s8 %v3066
      %v3068 = vlaneseq
      %v3069 = vshrl.u32 %v3068, 7
      %v3070 = vsub.s32 %v3067, %v3069
      %v3071 = vrot.slane %v3063, %v3070
      %v3073 = vunpack.c.l.s4 1934713408
      %v3074 = vunpack.c.0.s8 %v3073
      %v3075 = vlaneseq
      %v3076 = vshrl.u32 %v3075, 7
      %v3077 = vsub.s32 %v3074, %v3076
      %v3078 = vrot.slane %v3064, %v3077
      %v3079 = vcombine.low %v3047, %v3062
      %v3080 = vcombine.high %v3047, %v3062
      %v3082 = vunpack.c.l.s4 1934713408
      %v3083 = vunpack.c.0.s8 %v3082
      %v3084 = vlaneseq
      %v3085 = vshrl.u32 %v3084, 7
      %v3086 = vsub.s32 %v3083, %v3085
      %v3087 = vrot.slane %v3079, %v3086
      %v3089 = vunpack.c.l.s4 1934713408
      %v3090 = vunpack.c.0.s8 %v3089
      %v3091 = vlaneseq
      %v3092 = vshrl.u32 %v3091, 7
      %v3093 = vsub.s32 %v3090, %v3092
      %v3094 = vrot.slane %v3080, %v3093
      %v3095 = vcombine.high %v3071, 0.0
      %v3096 = vcombine.high %v3078, 0.0
      %v3097 = vcombine.high %v3087, 0.0
      %v3098 = vcombine.high %v3094, 0.0
      %3100 = vrot.lane.b32.xlu0 %v3029, 16
      %v3101 = vpop.permute.xlu0 %3100
      %3104 = vrot.lane.b32.xlu0 %v3012, 32
      %v3105 = vpop.permute.xlu0 %3104
      %3108 = vrot.lane.b32.xlu0 %v3030, 48
      %v3109 = vpop.permute.xlu0 %3108
      %3112 = vrot.lane.b32.xlu0 %v3021, 64
      %v3113 = vpop.permute.xlu0 %3112
      %3116 = vrot.lane.b32.xlu0 %v3031, 80
      %v3117 = vpop.permute.xlu0 %3116
      %3120 = vrot.lane.b32.xlu0 %v3028, 96
      %v3121 = vpop.permute.xlu0 %3120
      %3124 = vrot.lane.b32.xlu0 %v3032, 112
      %v3125 = vpop.permute.xlu0 %3124
      %3128 = vrot.lane.b32.xlu0 %v3095, 16
      %v3129 = vpop.permute.xlu0 %3128
      %3132 = vrot.lane.b32.xlu0 %v3078, 32
      %v3133 = vpop.permute.xlu0 %3132
      %3136 = vrot.lane.b32.xlu0 %v3096, 48
      %v3137 = vpop.permute.xlu0 %3136
      %3140 = vrot.lane.b32.xlu0 %v3087, 64
      %v3141 = vpop.permute.xlu0 %3140
      %3144 = vrot.lane.b32.xlu0 %v3097, 80
      %v3145 = vpop.permute.xlu0 %3144
      %3148 = vrot.lane.b32.xlu0 %v3094, 96
      %v3149 = vpop.permute.xlu0 %3148
      %3152 = vrot.lane.b32.xlu0 %v3098, 112
      %v3153 = vpop.permute.xlu0 %3152
      %v3155 = vsel %vm725, %v3005, %v3101
      %v3156 = vsel %vm727, %v3155, %v3105
      %v3157 = vsel %vm729, %v3156, %v3109
      %v3158 = vsel %vm731, %v3157, %v3113
      %v3159 = vsel %vm733, %v3158, %v3117
      %v3160 = vsel %vm735, %v3159, %v3121
      %v3161 = vsel %vm737, %v3160, %v3125
      %v3162 = vsel %vm725, %v3071, %v3129
      %v3163 = vsel %vm727, %v3162, %v3133
      %v3164 = vsel %vm729, %v3163, %v3137
      %v3165 = vsel %vm731, %v3164, %v3141
      %v3166 = vsel %vm733, %v3165, %v3145
      %v3167 = vsel %vm735, %v3166, %v3149
      %v3168 = vsel %vm737, %v3167, %v3153
      %v3171 = vrot.slane %v3161, 4
      %v3172 = vrot.slane %v3168, 4
      %3175 = vst [vmem:[#allocation5 + $0x40] sm:$0x30] %v3171
      %3176 = vst [vmem:[#allocation5 + $0x48] sm:$0x30] %v3172
      %v3177 = vld [vmem:[#allocation3] sm:$0xff]
      %v3178 = vld [vmem:[#allocation3 + $0x8] sm:$0xff]
      %v3179 = vld [vmem:[#allocation3 + $0x18] sm:$0xff]
      %v3180 = vld [vmem:[#allocation3 + $0x20] sm:$0xff]
      %3185 = vrot.lane.b32.xlu0 %v3177, 127
      %v3186 = vpop.permute.xlu0 %3185
      %3187 = vrot.lane.b32.xlu0 %v3178, 127
      %v3188 = vpop.permute.xlu0 %3187
      %3189 = vrot.lane.b32.xlu0 %v3179, 127
      %v3190 = vpop.permute.xlu0 %3189
      %3191 = vrot.lane.b32.xlu0 %v3180, 127
      %v3192 = vpop.permute.xlu0 %3191
      %v3197 = vcombine.high %v3186, 0.0
      %v3199 = vunpack.c.l.s4 1983009808
      %v3200 = vunpack.c.0.s8 %v3199
      %v3201 = vlaneseq
      %v3202 = vshrl.u32 %v3201, 7
      %v3203 = vsub.s32 %v3200, %v3202
      %v3204 = vrot.slane %v3186, %v3203
      %v3206 = vunpack.c.l.s4 1983009808
      %v3207 = vunpack.c.0.s8 %v3206
      %v3208 = vlaneseq
      %v3209 = vshrl.u32 %v3208, 7
      %v3210 = vsub.s32 %v3207, %v3209
      %v3211 = vrot.slane %v3197, %v3210
      %v3212 = vcombine.high %v3190, 0.0
      %v3214 = vunpack.c.l.s4 1983009808
      %v3215 = vunpack.c.0.s8 %v3214
      %v3216 = vlaneseq
      %v3217 = vshrl.u32 %v3216, 7
      %v3218 = vsub.s32 %v3215, %v3217
      %v3219 = vrot.slane %v3190, %v3218
      %v3221 = vunpack.c.l.s4 1983009808
      %v3222 = vunpack.c.0.s8 %v3221
      %v3223 = vlaneseq
      %v3224 = vshrl.u32 %v3223, 7
      %v3225 = vsub.s32 %v3222, %v3224
      %v3226 = vrot.slane %v3212, %v3225
      %v3227 = vcombine.low %v3204, %v3219
      %v3228 = vcombine.high %v3204, %v3219
      %v3230 = vunpack.c.l.s4 1934713408
      %v3231 = vunpack.c.0.s8 %v3230
      %v3232 = vlaneseq
      %v3233 = vshrl.u32 %v3232, 7
      %v3234 = vsub.s32 %v3231, %v3233
      %v3235 = vrot.slane %v3227, %v3234
      %v3237 = vunpack.c.l.s4 1934713408
      %v3238 = vunpack.c.0.s8 %v3237
      %v3239 = vlaneseq
      %v3240 = vshrl.u32 %v3239, 7
      %v3241 = vsub.s32 %v3238, %v3240
      %v3242 = vrot.slane %v3228, %v3241
      %v3243 = vcombine.low %v3211, %v3226
      %v3244 = vcombine.high %v3211, %v3226
      %v3246 = vunpack.c.l.s4 1934713408
      %v3247 = vunpack.c.0.s8 %v3246
      %v3248 = vlaneseq
      %v3249 = vshrl.u32 %v3248, 7
      %v3250 = vsub.s32 %v3247, %v3249
      %v3251 = vrot.slane %v3243, %v3250
      %v3253 = vunpack.c.l.s4 1934713408
      %v3254 = vunpack.c.0.s8 %v3253
      %v3255 = vlaneseq
      %v3256 = vshrl.u32 %v3255, 7
      %v3257 = vsub.s32 %v3254, %v3256
      %v3258 = vrot.slane %v3244, %v3257
      %v3259 = vcombine.high %v3235, 0.0
      %v3260 = vcombine.high %v3242, 0.0
      %v3261 = vcombine.high %v3251, 0.0
      %v3262 = vcombine.high %v3258, 0.0
      %v3263 = vcombine.high %v3188, 0.0
      %v3265 = vunpack.c.l.s4 1983009808
      %v3266 = vunpack.c.0.s8 %v3265
      %v3267 = vlaneseq
      %v3268 = vshrl.u32 %v3267, 7
      %v3269 = vsub.s32 %v3266, %v3268
      %v3270 = vrot.slane %v3188, %v3269
      %v3272 = vunpack.c.l.s4 1983009808
      %v3273 = vunpack.c.0.s8 %v3272
      %v3274 = vlaneseq
      %v3275 = vshrl.u32 %v3274, 7
      %v3276 = vsub.s32 %v3273, %v3275
      %v3277 = vrot.slane %v3263, %v3276
      %v3278 = vcombine.high %v3192, 0.0
      %v3280 = vunpack.c.l.s4 1983009808
      %v3281 = vunpack.c.0.s8 %v3280
      %v3282 = vlaneseq
      %v3283 = vshrl.u32 %v3282, 7
      %v3284 = vsub.s32 %v3281, %v3283
      %v3285 = vrot.slane %v3192, %v3284
      %v3287 = vunpack.c.l.s4 1983009808
      %v3288 = vunpack.c.0.s8 %v3287
      %v3289 = vlaneseq
      %v3290 = vshrl.u32 %v3289, 7
      %v3291 = vsub.s32 %v3288, %v3290
      %v3292 = vrot.slane %v3278, %v3291
      %v3293 = vcombine.low %v3270, %v3285
      %v3294 = vcombine.high %v3270, %v3285
      %v3296 = vunpack.c.l.s4 1934713408
      %v3297 = vunpack.c.0.s8 %v3296
      %v3298 = vlaneseq
      %v3299 = vshrl.u32 %v3298, 7
      %v3300 = vsub.s32 %v3297, %v3299
      %v3301 = vrot.slane %v3293, %v3300
      %v3303 = vunpack.c.l.s4 1934713408
      %v3304 = vunpack.c.0.s8 %v3303
      %v3305 = vlaneseq
      %v3306 = vshrl.u32 %v3305, 7
      %v3307 = vsub.s32 %v3304, %v3306
      %v3308 = vrot.slane %v3294, %v3307
      %v3309 = vcombine.low %v3277, %v3292
      %v3310 = vcombine.high %v3277, %v3292
      %v3312 = vunpack.c.l.s4 1934713408
      %v3313 = vunpack.c.0.s8 %v3312
      %v3314 = vlaneseq
      %v3315 = vshrl.u32 %v3314, 7
      %v3316 = vsub.s32 %v3313, %v3315
      %v3317 = vrot.slane %v3309, %v3316
      %v3319 = vunpack.c.l.s4 1934713408
      %v3320 = vunpack.c.0.s8 %v3319
      %v3321 = vlaneseq
      %v3322 = vshrl.u32 %v3321, 7
      %v3323 = vsub.s32 %v3320, %v3322
      %v3324 = vrot.slane %v3310, %v3323
      %v3325 = vcombine.high %v3301, 0.0
      %v3326 = vcombine.high %v3308, 0.0
      %v3327 = vcombine.high %v3317, 0.0
      %v3328 = vcombine.high %v3324, 0.0
      %3330 = vrot.lane.b32.xlu0 %v3259, 16
      %v3331 = vpop.permute.xlu0 %3330
      %3334 = vrot.lane.b32.xlu0 %v3242, 32
      %v3335 = vpop.permute.xlu0 %3334
      %3338 = vrot.lane.b32.xlu0 %v3260, 48
      %v3339 = vpop.permute.xlu0 %3338
      %3342 = vrot.lane.b32.xlu0 %v3251, 64
      %v3343 = vpop.permute.xlu0 %3342
      %3346 = vrot.lane.b32.xlu0 %v3261, 80
      %v3347 = vpop.permute.xlu0 %3346
      %3350 = vrot.lane.b32.xlu0 %v3258, 96
      %v3351 = vpop.permute.xlu0 %3350
      %3354 = vrot.lane.b32.xlu0 %v3262, 112
      %v3355 = vpop.permute.xlu0 %3354
      %3358 = vrot.lane.b32.xlu0 %v3325, 16
      %v3359 = vpop.permute.xlu0 %3358
      %3362 = vrot.lane.b32.xlu0 %v3308, 32
      %v3363 = vpop.permute.xlu0 %3362
      %3366 = vrot.lane.b32.xlu0 %v3326, 48
      %v3367 = vpop.permute.xlu0 %3366
      %3370 = vrot.lane.b32.xlu0 %v3317, 64
      %v3371 = vpop.permute.xlu0 %3370
      %3374 = vrot.lane.b32.xlu0 %v3327, 80
      %v3375 = vpop.permute.xlu0 %3374
      %3378 = vrot.lane.b32.xlu0 %v3324, 96
      %v3379 = vpop.permute.xlu0 %3378
      %3382 = vrot.lane.b32.xlu0 %v3328, 112
      %v3383 = vpop.permute.xlu0 %3382
      %v3385 = vsel %vm725, %v3235, %v3331
      %v3386 = vsel %vm727, %v3385, %v3335
      %v3387 = vsel %vm729, %v3386, %v3339
      %v3388 = vsel %vm731, %v3387, %v3343
      %v3389 = vsel %vm733, %v3388, %v3347
      %v3390 = vsel %vm735, %v3389, %v3351
      %v3391 = vsel %vm737, %v3390, %v3355
      %v3392 = vsel %vm725, %v3301, %v3359
      %v3393 = vsel %vm727, %v3392, %v3363
      %v3394 = vsel %vm729, %v3393, %v3367
      %v3395 = vsel %vm731, %v3394, %v3371
      %v3396 = vsel %vm733, %v3395, %v3375
      %v3397 = vsel %vm735, %v3396, %v3379
      %v3398 = vsel %vm737, %v3397, %v3383
      %v3401 = vrot.slane %v3391, 2
      %v3402 = vrot.slane %v3398, 2
      %3405 = vst [vmem:[#allocation5 + $0x40] sm:$0xc0] %v3401
      %3406 = vst [vmem:[#allocation5 + $0x48] sm:$0xc0] %v3402
      %v3407 = vld [vmem:[#allocation3] sm:$0xff]
      %v3408 = vld [vmem:[#allocation3 + $0x8] sm:$0xff]
      %v3409 = vld [vmem:[#allocation3 + $0x18] sm:$0xff]
      %v3410 = vld [vmem:[#allocation3 + $0x20] sm:$0xff]
      %3415 = vrot.lane.b32.xlu0 %v3407, 126
      %v3416 = vpop.permute.xlu0 %3415
      %3417 = vrot.lane.b32.xlu0 %v3408, 126
      %v3418 = vpop.permute.xlu0 %3417
      %3419 = vrot.lane.b32.xlu0 %v3409, 126
      %v3420 = vpop.permute.xlu0 %3419
      %3421 = vrot.lane.b32.xlu0 %v3410, 126
      %v3422 = vpop.permute.xlu0 %3421
      %v3427 = vcombine.high %v3416, 0.0
      %v3429 = vunpack.c.l.s4 1983009808
      %v3430 = vunpack.c.0.s8 %v3429
      %v3431 = vlaneseq
      %v3432 = vshrl.u32 %v3431, 7
      %v3433 = vsub.s32 %v3430, %v3432
      %v3434 = vrot.slane %v3416, %v3433
      %v3436 = vunpack.c.l.s4 1983009808
      %v3437 = vunpack.c.0.s8 %v3436
      %v3438 = vlaneseq
      %v3439 = vshrl.u32 %v3438, 7
      %v3440 = vsub.s32 %v3437, %v3439
      %v3441 = vrot.slane %v3427, %v3440
      %v3442 = vcombine.high %v3420, 0.0
      %v3444 = vunpack.c.l.s4 1983009808
      %v3445 = vunpack.c.0.s8 %v3444
      %v3446 = vlaneseq
      %v3447 = vshrl.u32 %v3446, 7
      %v3448 = vsub.s32 %v3445, %v3447
      %v3449 = vrot.slane %v3420, %v3448
      %v3451 = vunpack.c.l.s4 1983009808
      %v3452 = vunpack.c.0.s8 %v3451
      %v3453 = vlaneseq
      %v3454 = vshrl.u32 %v3453, 7
      %v3455 = vsub.s32 %v3452, %v3454
      %v3456 = vrot.slane %v3442, %v3455
      %v3457 = vcombine.low %v3434, %v3449
      %v3458 = vcombine.high %v3434, %v3449
      %v3460 = vunpack.c.l.s4 1934713408
      %v3461 = vunpack.c.0.s8 %v3460
      %v3462 = vlaneseq
      %v3463 = vshrl.u32 %v3462, 7
      %v3464 = vsub.s32 %v3461, %v3463
      %v3465 = vrot.slane %v3457, %v3464
      %v3467 = vunpack.c.l.s4 1934713408
      %v3468 = vunpack.c.0.s8 %v3467
      %v3469 = vlaneseq
      %v3470 = vshrl.u32 %v3469, 7
      %v3471 = vsub.s32 %v3468, %v3470
      %v3472 = vrot.slane %v3458, %v3471
      %v3473 = vcombine.low %v3441, %v3456
      %v3474 = vcombine.high %v3441, %v3456
      %v3476 = vunpack.c.l.s4 1934713408
      %v3477 = vunpack.c.0.s8 %v3476
      %v3478 = vlaneseq
      %v3479 = vshrl.u32 %v3478, 7
      %v3480 = vsub.s32 %v3477, %v3479
      %v3481 = vrot.slane %v3473, %v3480
      %v3483 = vunpack.c.l.s4 1934713408
      %v3484 = vunpack.c.0.s8 %v3483
      %v3485 = vlaneseq
      %v3486 = vshrl.u32 %v3485, 7
      %v3487 = vsub.s32 %v3484, %v3486
      %v3488 = vrot.slane %v3474, %v3487
      %v3489 = vcombine.high %v3465, 0.0
      %v3490 = vcombine.high %v3472, 0.0
      %v3491 = vcombine.high %v3481, 0.0
      %v3492 = vcombine.high %v3488, 0.0
      %v3493 = vcombine.high %v3418, 0.0
      %v3495 = vunpack.c.l.s4 1983009808
      %v3496 = vunpack.c.0.s8 %v3495
      %v3497 = vlaneseq
      %v3498 = vshrl.u32 %v3497, 7
      %v3499 = vsub.s32 %v3496, %v3498
      %v3500 = vrot.slane %v3418, %v3499
      %v3502 = vunpack.c.l.s4 1983009808
      %v3503 = vunpack.c.0.s8 %v3502
      %v3504 = vlaneseq
      %v3505 = vshrl.u32 %v3504, 7
      %v3506 = vsub.s32 %v3503, %v3505
      %v3507 = vrot.slane %v3493, %v3506
      %v3508 = vcombine.high %v3422, 0.0
      %v3510 = vunpack.c.l.s4 1983009808
      %v3511 = vunpack.c.0.s8 %v3510
      %v3512 = vlaneseq
      %v3513 = vshrl.u32 %v3512, 7
      %v3514 = vsub.s32 %v3511, %v3513
      %v3515 = vrot.slane %v3422, %v3514
      %v3517 = vunpack.c.l.s4 1983009808
      %v3518 = vunpack.c.0.s8 %v3517
      %v3519 = vlaneseq
      %v3520 = vshrl.u32 %v3519, 7
      %v3521 = vsub.s32 %v3518, %v3520
      %v3522 = vrot.slane %v3508, %v3521
      %v3523 = vcombine.low %v3500, %v3515
      %v3524 = vcombine.high %v3500, %v3515
      %v3526 = vunpack.c.l.s4 1934713408
      %v3527 = vunpack.c.0.s8 %v3526
      %v3528 = vlaneseq
      %v3529 = vshrl.u32 %v3528, 7
      %v3530 = vsub.s32 %v3527, %v3529
      %v3531 = vrot.slane %v3523, %v3530
      %v3533 = vunpack.c.l.s4 1934713408
      %v3534 = vunpack.c.0.s8 %v3533
      %v3535 = vlaneseq
      %v3536 = vshrl.u32 %v3535, 7
      %v3537 = vsub.s32 %v3534, %v3536
      %v3538 = vrot.slane %v3524, %v3537
      %v3539 = vcombine.low %v3507, %v3522
      %v3540 = vcombine.high %v3507, %v3522
      %v3542 = vunpack.c.l.s4 1934713408
      %v3543 = vunpack.c.0.s8 %v3542
      %v3544 = vlaneseq
      %v3545 = vshrl.u32 %v3544, 7
      %v3546 = vsub.s32 %v3543, %v3545
      %v3547 = vrot.slane %v3539, %v3546
      %v3549 = vunpack.c.l.s4 1934713408
      %v3550 = vunpack.c.0.s8 %v3549
      %v3551 = vlaneseq
      %v3552 = vshrl.u32 %v3551, 7
      %v3553 = vsub.s32 %v3550, %v3552
      %v3554 = vrot.slane %v3540, %v3553
      %v3555 = vcombine.high %v3531, 0.0
      %v3556 = vcombine.high %v3538, 0.0
      %v3557 = vcombine.high %v3547, 0.0
      %v3558 = vcombine.high %v3554, 0.0
      %3560 = vrot.lane.b32.xlu0 %v3489, 16
      %v3561 = vpop.permute.xlu0 %3560
      %3564 = vrot.lane.b32.xlu0 %v3472, 32
      %v3565 = vpop.permute.xlu0 %3564
      %3568 = vrot.lane.b32.xlu0 %v3490, 48
      %v3569 = vpop.permute.xlu0 %3568
      %3572 = vrot.lane.b32.xlu0 %v3481, 64
      %v3573 = vpop.permute.xlu0 %3572
      %3576 = vrot.lane.b32.xlu0 %v3491, 80
      %v3577 = vpop.permute.xlu0 %3576
      %3580 = vrot.lane.b32.xlu0 %v3488, 96
      %v3581 = vpop.permute.xlu0 %3580
      %3584 = vrot.lane.b32.xlu0 %v3492, 112
      %v3585 = vpop.permute.xlu0 %3584
      %3588 = vrot.lane.b32.xlu0 %v3555, 16
      %v3589 = vpop.permute.xlu0 %3588
      %3592 = vrot.lane.b32.xlu0 %v3538, 32
      %v3593 = vpop.permute.xlu0 %3592
      %3596 = vrot.lane.b32.xlu0 %v3556, 48
      %v3597 = vpop.permute.xlu0 %3596
      %3600 = vrot.lane.b32.xlu0 %v3547, 64
      %v3601 = vpop.permute.xlu0 %3600
      %3604 = vrot.lane.b32.xlu0 %v3557, 80
      %v3605 = vpop.permute.xlu0 %3604
      %3608 = vrot.lane.b32.xlu0 %v3554, 96
      %v3609 = vpop.permute.xlu0 %3608
      %3612 = vrot.lane.b32.xlu0 %v3558, 112
      %v3613 = vpop.permute.xlu0 %3612
      %v3615 = vsel %vm725, %v3465, %v3561
      %v3616 = vsel %vm727, %v3615, %v3565
      %v3617 = vsel %vm729, %v3616, %v3569
      %v3618 = vsel %vm731, %v3617, %v3573
      %v3619 = vsel %vm733, %v3618, %v3577
      %v3620 = vsel %vm735, %v3619, %v3581
      %v3621 = vsel %vm737, %v3620, %v3585
      %v3622 = vsel %vm725, %v3531, %v3589
      %v3623 = vsel %vm727, %v3622, %v3593
      %v3624 = vsel %vm729, %v3623, %v3597
      %v3625 = vsel %vm731, %v3624, %v3601
      %v3626 = vsel %vm733, %v3625, %v3605
      %v3627 = vsel %vm735, %v3626, %v3609
      %v3628 = vsel %vm737, %v3627, %v3613
      %3629 = vst [vmem:[#allocation5 + $0x50] sm:$0x3] %v3621
      %3630 = vst [vmem:[#allocation5 + $0x58] sm:$0x3] %v3628
      %v3631 = vld [vmem:[#allocation3 + $0x1] sm:$0xff]
      %v3632 = vld [vmem:[#allocation3 + $0x9] sm:$0xff]
      %v3633 = vld [vmem:[#allocation3 + $0x19] sm:$0xff]
      %v3634 = vld [vmem:[#allocation3 + $0x21] sm:$0xff]
      %v3635 = vcombine.high %v3631, 0.0
      %v3637 = vunpack.c.l.s4 1983009808
      %v3638 = vunpack.c.0.s8 %v3637
      %v3639 = vlaneseq
      %v3640 = vshrl.u32 %v3639, 7
      %v3641 = vsub.s32 %v3638, %v3640
      %v3642 = vrot.slane %v3631, %v3641
      %v3644 = vunpack.c.l.s4 1983009808
      %v3645 = vunpack.c.0.s8 %v3644
      %v3646 = vlaneseq
      %v3647 = vshrl.u32 %v3646, 7
      %v3648 = vsub.s32 %v3645, %v3647
      %v3649 = vrot.slane %v3635, %v3648
      %v3650 = vcombine.high %v3633, 0.0
      %v3652 = vunpack.c.l.s4 1983009808
      %v3653 = vunpack.c.0.s8 %v3652
      %v3654 = vlaneseq
      %v3655 = vshrl.u32 %v3654, 7
      %v3656 = vsub.s32 %v3653, %v3655
      %v3657 = vrot.slane %v3633, %v3656
      %v3659 = vunpack.c.l.s4 1983009808
      %v3660 = vunpack.c.0.s8 %v3659
      %v3661 = vlaneseq
      %v3662 = vshrl.u32 %v3661, 7
      %v3663 = vsub.s32 %v3660, %v3662
      %v3664 = vrot.slane %v3650, %v3663
      %v3665 = vcombine.low %v3642, %v3657
      %v3666 = vcombine.high %v3642, %v3657
      %v3668 = vunpack.c.l.s4 1934713408
      %v3669 = vunpack.c.0.s8 %v3668
      %v3670 = vlaneseq
      %v3671 = vshrl.u32 %v3670, 7
      %v3672 = vsub.s32 %v3669, %v3671
      %v3673 = vrot.slane %v3665, %v3672
      %v3675 = vunpack.c.l.s4 1934713408
      %v3676 = vunpack.c.0.s8 %v3675
      %v3677 = vlaneseq
      %v3678 = vshrl.u32 %v3677, 7
      %v3679 = vsub.s32 %v3676, %v3678
      %v3680 = vrot.slane %v3666, %v3679
      %v3681 = vcombine.low %v3649, %v3664
      %v3682 = vcombine.high %v3649, %v3664
      %v3684 = vunpack.c.l.s4 1934713408
      %v3685 = vunpack.c.0.s8 %v3684
      %v3686 = vlaneseq
      %v3687 = vshrl.u32 %v3686, 7
      %v3688 = vsub.s32 %v3685, %v3687
      %v3689 = vrot.slane %v3681, %v3688
      %v3691 = vunpack.c.l.s4 1934713408
      %v3692 = vunpack.c.0.s8 %v3691
      %v3693 = vlaneseq
      %v3694 = vshrl.u32 %v3693, 7
      %v3695 = vsub.s32 %v3692, %v3694
      %v3696 = vrot.slane %v3682, %v3695
      %v3697 = vcombine.high %v3673, 0.0
      %v3698 = vcombine.high %v3680, 0.0
      %v3699 = vcombine.high %v3689, 0.0
      %v3700 = vcombine.high %v3696, 0.0
      %v3701 = vcombine.high %v3632, 0.0
      %v3703 = vunpack.c.l.s4 1983009808
      %v3704 = vunpack.c.0.s8 %v3703
      %v3705 = vlaneseq
      %v3706 = vshrl.u32 %v3705, 7
      %v3707 = vsub.s32 %v3704, %v3706
      %v3708 = vrot.slane %v3632, %v3707
      %v3710 = vunpack.c.l.s4 1983009808
      %v3711 = vunpack.c.0.s8 %v3710
      %v3712 = vlaneseq
      %v3713 = vshrl.u32 %v3712, 7
      %v3714 = vsub.s32 %v3711, %v3713
      %v3715 = vrot.slane %v3701, %v3714
      %v3716 = vcombine.high %v3634, 0.0
      %v3718 = vunpack.c.l.s4 1983009808
      %v3719 = vunpack.c.0.s8 %v3718
      %v3720 = vlaneseq
      %v3721 = vshrl.u32 %v3720, 7
      %v3722 = vsub.s32 %v3719, %v3721
      %v3723 = vrot.slane %v3634, %v3722
      %v3725 = vunpack.c.l.s4 1983009808
      %v3726 = vunpack.c.0.s8 %v3725
      %v3727 = vlaneseq
      %v3728 = vshrl.u32 %v3727, 7
      %v3729 = vsub.s32 %v3726, %v3728
      %v3730 = vrot.slane %v3716, %v3729
      %v3731 = vcombine.low %v3708, %v3723
      %v3732 = vcombine.high %v3708, %v3723
      %v3734 = vunpack.c.l.s4 1934713408
      %v3735 = vunpack.c.0.s8 %v3734
      %v3736 = vlaneseq
      %v3737 = vshrl.u32 %v3736, 7
      %v3738 = vsub.s32 %v3735, %v3737
      %v3739 = vrot.slane %v3731, %v3738
      %v3741 = vunpack.c.l.s4 1934713408
      %v3742 = vunpack.c.0.s8 %v3741
      %v3743 = vlaneseq
      %v3744 = vshrl.u32 %v3743, 7
      %v3745 = vsub.s32 %v3742, %v3744
      %v3746 = vrot.slane %v3732, %v3745
      %v3747 = vcombine.low %v3715, %v3730
      %v3748 = vcombine.high %v3715, %v3730
      %v3750 = vunpack.c.l.s4 1934713408
      %v3751 = vunpack.c.0.s8 %v3750
      %v3752 = vlaneseq
      %v3753 = vshrl.u32 %v3752, 7
      %v3754 = vsub.s32 %v3751, %v3753
      %v3755 = vrot.slane %v3747, %v3754
      %v3757 = vunpack.c.l.s4 1934713408
      %v3758 = vunpack.c.0.s8 %v3757
      %v3759 = vlaneseq
      %v3760 = vshrl.u32 %v3759, 7
      %v3761 = vsub.s32 %v3758, %v3760
      %v3762 = vrot.slane %v3748, %v3761
      %v3763 = vcombine.high %v3739, 0.0
      %v3764 = vcombine.high %v3746, 0.0
      %v3765 = vcombine.high %v3755, 0.0
      %v3766 = vcombine.high %v3762, 0.0
      %3768 = vrot.lane.b32.xlu0 %v3697, 16
      %v3769 = vpop.permute.xlu0 %3768
      %3772 = vrot.lane.b32.xlu0 %v3680, 32
      %v3773 = vpop.permute.xlu0 %3772
      %3776 = vrot.lane.b32.xlu0 %v3698, 48
      %v3777 = vpop.permute.xlu0 %3776
      %3780 = vrot.lane.b32.xlu0 %v3689, 64
      %v3781 = vpop.permute.xlu0 %3780
      %3784 = vrot.lane.b32.xlu0 %v3699, 80
      %v3785 = vpop.permute.xlu0 %3784
      %3788 = vrot.lane.b32.xlu0 %v3696, 96
      %v3789 = vpop.permute.xlu0 %3788
      %3792 = vrot.lane.b32.xlu0 %v3700, 112
      %v3793 = vpop.permute.xlu0 %3792
      %3796 = vrot.lane.b32.xlu0 %v3763, 16
      %v3797 = vpop.permute.xlu0 %3796
      %3800 = vrot.lane.b32.xlu0 %v3746, 32
      %v3801 = vpop.permute.xlu0 %3800
      %3804 = vrot.lane.b32.xlu0 %v3764, 48
      %v3805 = vpop.permute.xlu0 %3804
      %3808 = vrot.lane.b32.xlu0 %v3755, 64
      %v3809 = vpop.permute.xlu0 %3808
      %3812 = vrot.lane.b32.xlu0 %v3765, 80
      %v3813 = vpop.permute.xlu0 %3812
      %3816 = vrot.lane.b32.xlu0 %v3762, 96
      %v3817 = vpop.permute.xlu0 %3816
      %3820 = vrot.lane.b32.xlu0 %v3766, 112
      %v3821 = vpop.permute.xlu0 %3820
      %v3823 = vsel %vm725, %v3673, %v3769
      %v3824 = vsel %vm727, %v3823, %v3773
      %v3825 = vsel %vm729, %v3824, %v3777
      %v3826 = vsel %vm731, %v3825, %v3781
      %v3827 = vsel %vm733, %v3826, %v3785
      %v3828 = vsel %vm735, %v3827, %v3789
      %v3829 = vsel %vm737, %v3828, %v3793
      %v3830 = vsel %vm725, %v3739, %v3797
      %v3831 = vsel %vm727, %v3830, %v3801
      %v3832 = vsel %vm729, %v3831, %v3805
      %v3833 = vsel %vm731, %v3832, %v3809
      %v3834 = vsel %vm733, %v3833, %v3813
      %v3835 = vsel %vm735, %v3834, %v3817
      %v3836 = vsel %vm737, %v3835, %v3821
      %v3839 = vrot.slane %v3829, 6
      %v3840 = vrot.slane %v3836, 6
      %3843 = vst [vmem:[#allocation5 + $0x50] sm:$0xc] %v3839
      %3844 = vst [vmem:[#allocation5 + $0x58] sm:$0xc] %v3840
      %v3845 = vld [vmem:[#allocation3 + $0x1] sm:$0xff]
      %v3846 = vld [vmem:[#allocation3 + $0x9] sm:$0xff]
      %v3847 = vld [vmem:[#allocation3 + $0x19] sm:$0xff]
      %v3848 = vld [vmem:[#allocation3 + $0x21] sm:$0xff]
      %3853 = vrot.lane.b32.xlu0 %v3845, 127
      %v3854 = vpop.permute.xlu0 %3853
      %3855 = vrot.lane.b32.xlu0 %v3846, 127
      %v3856 = vpop.permute.xlu0 %3855
      %3857 = vrot.lane.b32.xlu0 %v3847, 127
      %v3858 = vpop.permute.xlu0 %3857
      %3859 = vrot.lane.b32.xlu0 %v3848, 127
      %v3860 = vpop.permute.xlu0 %3859
      %v3865 = vcombine.high %v3854, 0.0
      %v3867 = vunpack.c.l.s4 1983009808
      %v3868 = vunpack.c.0.s8 %v3867
      %v3869 = vlaneseq
      %v3870 = vshrl.u32 %v3869, 7
      %v3871 = vsub.s32 %v3868, %v3870
      %v3872 = vrot.slane %v3854, %v3871
      %v3874 = vunpack.c.l.s4 1983009808
      %v3875 = vunpack.c.0.s8 %v3874
      %v3876 = vlaneseq
      %v3877 = vshrl.u32 %v3876, 7
      %v3878 = vsub.s32 %v3875, %v3877
      %v3879 = vrot.slane %v3865, %v3878
      %v3880 = vcombine.high %v3858, 0.0
      %v3882 = vunpack.c.l.s4 1983009808
      %v3883 = vunpack.c.0.s8 %v3882
      %v3884 = vlaneseq
      %v3885 = vshrl.u32 %v3884, 7
      %v3886 = vsub.s32 %v3883, %v3885
      %v3887 = vrot.slane %v3858, %v3886
      %v3889 = vunpack.c.l.s4 1983009808
      %v3890 = vunpack.c.0.s8 %v3889
      %v3891 = vlaneseq
      %v3892 = vshrl.u32 %v3891, 7
      %v3893 = vsub.s32 %v3890, %v3892
      %v3894 = vrot.slane %v3880, %v3893
      %v3895 = vcombine.low %v3872, %v3887
      %v3896 = vcombine.high %v3872, %v3887
      %v3898 = vunpack.c.l.s4 1934713408
      %v3899 = vunpack.c.0.s8 %v3898
      %v3900 = vlaneseq
      %v3901 = vshrl.u32 %v3900, 7
      %v3902 = vsub.s32 %v3899, %v3901
      %v3903 = vrot.slane %v3895, %v3902
      %v3905 = vunpack.c.l.s4 1934713408
      %v3906 = vunpack.c.0.s8 %v3905
      %v3907 = vlaneseq
      %v3908 = vshrl.u32 %v3907, 7
      %v3909 = vsub.s32 %v3906, %v3908
      %v3910 = vrot.slane %v3896, %v3909
      %v3911 = vcombine.low %v3879, %v3894
      %v3912 = vcombine.high %v3879, %v3894
      %v3914 = vunpack.c.l.s4 1934713408
      %v3915 = vunpack.c.0.s8 %v3914
      %v3916 = vlaneseq
      %v3917 = vshrl.u32 %v3916, 7
      %v3918 = vsub.s32 %v3915, %v3917
      %v3919 = vrot.slane %v3911, %v3918
      %v3921 = vunpack.c.l.s4 1934713408
      %v3922 = vunpack.c.0.s8 %v3921
      %v3923 = vlaneseq
      %v3924 = vshrl.u32 %v3923, 7
      %v3925 = vsub.s32 %v3922, %v3924
      %v3926 = vrot.slane %v3912, %v3925
      %v3927 = vcombine.high %v3903, 0.0
      %v3928 = vcombine.high %v3910, 0.0
      %v3929 = vcombine.high %v3919, 0.0
      %v3930 = vcombine.high %v3926, 0.0
      %v3931 = vcombine.high %v3856, 0.0
      %v3933 = vunpack.c.l.s4 1983009808
      %v3934 = vunpack.c.0.s8 %v3933
      %v3935 = vlaneseq
      %v3936 = vshrl.u32 %v3935, 7
      %v3937 = vsub.s32 %v3934, %v3936
      %v3938 = vrot.slane %v3856, %v3937
      %v3940 = vunpack.c.l.s4 1983009808
      %v3941 = vunpack.c.0.s8 %v3940
      %v3942 = vlaneseq
      %v3943 = vshrl.u32 %v3942, 7
      %v3944 = vsub.s32 %v3941, %v3943
      %v3945 = vrot.slane %v3931, %v3944
      %v3946 = vcombine.high %v3860, 0.0
      %v3948 = vunpack.c.l.s4 1983009808
      %v3949 = vunpack.c.0.s8 %v3948
      %v3950 = vlaneseq
      %v3951 = vshrl.u32 %v3950, 7
      %v3952 = vsub.s32 %v3949, %v3951
      %v3953 = vrot.slane %v3860, %v3952
      %v3955 = vunpack.c.l.s4 1983009808
      %v3956 = vunpack.c.0.s8 %v3955
      %v3957 = vlaneseq
      %v3958 = vshrl.u32 %v3957, 7
      %v3959 = vsub.s32 %v3956, %v3958
      %v3960 = vrot.slane %v3946, %v3959
      %v3961 = vcombine.low %v3938, %v3953
      %v3962 = vcombine.high %v3938, %v3953
      %v3964 = vunpack.c.l.s4 1934713408
      %v3965 = vunpack.c.0.s8 %v3964
      %v3966 = vlaneseq
      %v3967 = vshrl.u32 %v3966, 7
      %v3968 = vsub.s32 %v3965, %v3967
      %v3969 = vrot.slane %v3961, %v3968
      %v3971 = vunpack.c.l.s4 1934713408
      %v3972 = vunpack.c.0.s8 %v3971
      %v3973 = vlaneseq
      %v3974 = vshrl.u32 %v3973, 7
      %v3975 = vsub.s32 %v3972, %v3974
      %v3976 = vrot.slane %v3962, %v3975
      %v3977 = vcombine.low %v3945, %v3960
      %v3978 = vcombine.high %v3945, %v3960
      %v3980 = vunpack.c.l.s4 1934713408
      %v3981 = vunpack.c.0.s8 %v3980
      %v3982 = vlaneseq
      %v3983 = vshrl.u32 %v3982, 7
      %v3984 = vsub.s32 %v3981, %v3983
      %v3985 = vrot.slane %v3977, %v3984
      %v3987 = vunpack.c.l.s4 1934713408
      %v3988 = vunpack.c.0.s8 %v3987
      %v3989 = vlaneseq
      %v3990 = vshrl.u32 %v3989, 7
      %v3991 = vsub.s32 %v3988, %v3990
      %v3992 = vrot.slane %v3978, %v3991
      %v3993 = vcombine.high %v3969, 0.0
      %v3994 = vcombine.high %v3976, 0.0
      %v3995 = vcombine.high %v3985, 0.0
      %v3996 = vcombine.high %v3992, 0.0
      %3998 = vrot.lane.b32.xlu0 %v3927, 16
      %v3999 = vpop.permute.xlu0 %3998
      %4002 = vrot.lane.b32.xlu0 %v3910, 32
      %v4003 = vpop.permute.xlu0 %4002
      %4006 = vrot.lane.b32.xlu0 %v3928, 48
      %v4007 = vpop.permute.xlu0 %4006
      %4010 = vrot.lane.b32.xlu0 %v3919, 64
      %v4011 = vpop.permute.xlu0 %4010
      %4014 = vrot.lane.b32.xlu0 %v3929, 80
      %v4015 = vpop.permute.xlu0 %4014
      %4018 = vrot.lane.b32.xlu0 %v3926, 96
      %v4019 = vpop.permute.xlu0 %4018
      %4022 = vrot.lane.b32.xlu0 %v3930, 112
      %v4023 = vpop.permute.xlu0 %4022
      %4026 = vrot.lane.b32.xlu0 %v3993, 16
      %v4027 = vpop.permute.xlu0 %4026
      %4030 = vrot.lane.b32.xlu0 %v3976, 32
      %v4031 = vpop.permute.xlu0 %4030
      %4034 = vrot.lane.b32.xlu0 %v3994, 48
      %v4035 = vpop.permute.xlu0 %4034
      %4038 = vrot.lane.b32.xlu0 %v3985, 64
      %v4039 = vpop.permute.xlu0 %4038
      %4042 = vrot.lane.b32.xlu0 %v3995, 80
      %v4043 = vpop.permute.xlu0 %4042
      %4046 = vrot.lane.b32.xlu0 %v3992, 96
      %v4047 = vpop.permute.xlu0 %4046
      %4050 = vrot.lane.b32.xlu0 %v3996, 112
      %v4051 = vpop.permute.xlu0 %4050
      %v4053 = vsel %vm725, %v3903, %v3999
      %v4054 = vsel %vm727, %v4053, %v4003
      %v4055 = vsel %vm729, %v4054, %v4007
      %v4056 = vsel %vm731, %v4055, %v4011
      %v4057 = vsel %vm733, %v4056, %v4015
      %v4058 = vsel %vm735, %v4057, %v4019
      %v4059 = vsel %vm737, %v4058, %v4023
      %v4060 = vsel %vm725, %v3969, %v4027
      %v4061 = vsel %vm727, %v4060, %v4031
      %v4062 = vsel %vm729, %v4061, %v4035
      %v4063 = vsel %vm731, %v4062, %v4039
      %v4064 = vsel %vm733, %v4063, %v4043
      %v4065 = vsel %vm735, %v4064, %v4047
      %v4066 = vsel %vm737, %v4065, %v4051
      %v4069 = vrot.slane %v4059, 4
      %v4070 = vrot.slane %v4066, 4
      %4073 = vst [vmem:[#allocation5 + $0x50] sm:$0x30] %v4069
      %4074 = vst [vmem:[#allocation5 + $0x58] sm:$0x30] %v4070
      %v4075 = vld [vmem:[#allocation3 + $0x1] sm:$0xff]
      %v4076 = vld [vmem:[#allocation3 + $0x9] sm:$0xff]
      %v4077 = vld [vmem:[#allocation3 + $0x19] sm:$0xff]
      %v4078 = vld [vmem:[#allocation3 + $0x21] sm:$0xff]
      %4083 = vrot.lane.b32.xlu0 %v4075, 126
      %v4084 = vpop.permute.xlu0 %4083
      %4085 = vrot.lane.b32.xlu0 %v4076, 126
      %v4086 = vpop.permute.xlu0 %4085
      %4087 = vrot.lane.b32.xlu0 %v4077, 126
      %v4088 = vpop.permute.xlu0 %4087
      %4089 = vrot.lane.b32.xlu0 %v4078, 126
      %v4090 = vpop.permute.xlu0 %4089
      %v4095 = vcombine.high %v4084, 0.0
      %v4097 = vunpack.c.l.s4 1983009808
      %v4098 = vunpack.c.0.s8 %v4097
      %v4099 = vlaneseq
      %v4100 = vshrl.u32 %v4099, 7
      %v4101 = vsub.s32 %v4098, %v4100
      %v4102 = vrot.slane %v4084, %v4101
      %v4104 = vunpack.c.l.s4 1983009808
      %v4105 = vunpack.c.0.s8 %v4104
      %v4106 = vlaneseq
      %v4107 = vshrl.u32 %v4106, 7
      %v4108 = vsub.s32 %v4105, %v4107
      %v4109 = vrot.slane %v4095, %v4108
      %v4110 = vcombine.high %v4088, 0.0
      %v4112 = vunpack.c.l.s4 1983009808
      %v4113 = vunpack.c.0.s8 %v4112
      %v4114 = vlaneseq
      %v4115 = vshrl.u32 %v4114, 7
      %v4116 = vsub.s32 %v4113, %v4115
      %v4117 = vrot.slane %v4088, %v4116
      %v4119 = vunpack.c.l.s4 1983009808
      %v4120 = vunpack.c.0.s8 %v4119
      %v4121 = vlaneseq
      %v4122 = vshrl.u32 %v4121, 7
      %v4123 = vsub.s32 %v4120, %v4122
      %v4124 = vrot.slane %v4110, %v4123
      %v4125 = vcombine.low %v4102, %v4117
      %v4126 = vcombine.high %v4102, %v4117
      %v4128 = vunpack.c.l.s4 1934713408
      %v4129 = vunpack.c.0.s8 %v4128
      %v4130 = vlaneseq
      %v4131 = vshrl.u32 %v4130, 7
      %v4132 = vsub.s32 %v4129, %v4131
      %v4133 = vrot.slane %v4125, %v4132
      %v4135 = vunpack.c.l.s4 1934713408
      %v4136 = vunpack.c.0.s8 %v4135
      %v4137 = vlaneseq
      %v4138 = vshrl.u32 %v4137, 7
      %v4139 = vsub.s32 %v4136, %v4138
      %v4140 = vrot.slane %v4126, %v4139
      %v4141 = vcombine.low %v4109, %v4124
      %v4142 = vcombine.high %v4109, %v4124
      %v4144 = vunpack.c.l.s4 1934713408
      %v4145 = vunpack.c.0.s8 %v4144
      %v4146 = vlaneseq
      %v4147 = vshrl.u32 %v4146, 7
      %v4148 = vsub.s32 %v4145, %v4147
      %v4149 = vrot.slane %v4141, %v4148
      %v4151 = vunpack.c.l.s4 1934713408
      %v4152 = vunpack.c.0.s8 %v4151
      %v4153 = vlaneseq
      %v4154 = vshrl.u32 %v4153, 7
      %v4155 = vsub.s32 %v4152, %v4154
      %v4156 = vrot.slane %v4142, %v4155
      %v4157 = vcombine.high %v4133, 0.0
      %v4158 = vcombine.high %v4140, 0.0
      %v4159 = vcombine.high %v4149, 0.0
      %v4160 = vcombine.high %v4156, 0.0
      %v4161 = vcombine.high %v4086, 0.0
      %v4163 = vunpack.c.l.s4 1983009808
      %v4164 = vunpack.c.0.s8 %v4163
      %v4165 = vlaneseq
      %v4166 = vshrl.u32 %v4165, 7
      %v4167 = vsub.s32 %v4164, %v4166
      %v4168 = vrot.slane %v4086, %v4167
      %v4170 = vunpack.c.l.s4 1983009808
      %v4171 = vunpack.c.0.s8 %v4170
      %v4172 = vlaneseq
      %v4173 = vshrl.u32 %v4172, 7
      %v4174 = vsub.s32 %v4171, %v4173
      %v4175 = vrot.slane %v4161, %v4174
      %v4176 = vcombine.high %v4090, 0.0
      %v4178 = vunpack.c.l.s4 1983009808
      %v4179 = vunpack.c.0.s8 %v4178
      %v4180 = vlaneseq
      %v4181 = vshrl.u32 %v4180, 7
      %v4182 = vsub.s32 %v4179, %v4181
      %v4183 = vrot.slane %v4090, %v4182
      %v4185 = vunpack.c.l.s4 1983009808
      %v4186 = vunpack.c.0.s8 %v4185
      %v4187 = vlaneseq
      %v4188 = vshrl.u32 %v4187, 7
      %v4189 = vsub.s32 %v4186, %v4188
      %v4190 = vrot.slane %v4176, %v4189
      %v4191 = vcombine.low %v4168, %v4183
      %v4192 = vcombine.high %v4168, %v4183
      %v4194 = vunpack.c.l.s4 1934713408
      %v4195 = vunpack.c.0.s8 %v4194
      %v4196 = vlaneseq
      %v4197 = vshrl.u32 %v4196, 7
      %v4198 = vsub.s32 %v4195, %v4197
      %v4199 = vrot.slane %v4191, %v4198
      %v4201 = vunpack.c.l.s4 1934713408
      %v4202 = vunpack.c.0.s8 %v4201
      %v4203 = vlaneseq
      %v4204 = vshrl.u32 %v4203, 7
      %v4205 = vsub.s32 %v4202, %v4204
      %v4206 = vrot.slane %v4192, %v4205
      %v4207 = vcombine.low %v4175, %v4190
      %v4208 = vcombine.high %v4175, %v4190
      %v4210 = vunpack.c.l.s4 1934713408
      %v4211 = vunpack.c.0.s8 %v4210
      %v4212 = vlaneseq
      %v4213 = vshrl.u32 %v4212, 7
      %v4214 = vsub.s32 %v4211, %v4213
      %v4215 = vrot.slane %v4207, %v4214
      %v4217 = vunpack.c.l.s4 1934713408
      %v4218 = vunpack.c.0.s8 %v4217
      %v4219 = vlaneseq
      %v4220 = vshrl.u32 %v4219, 7
      %v4221 = vsub.s32 %v4218, %v4220
      %v4222 = vrot.slane %v4208, %v4221
      %v4223 = vcombine.high %v4199, 0.0
      %v4224 = vcombine.high %v4206, 0.0
      %v4225 = vcombine.high %v4215, 0.0
      %v4226 = vcombine.high %v4222, 0.0
      %4228 = vrot.lane.b32.xlu0 %v4157, 16
      %v4229 = vpop.permute.xlu0 %4228
      %4232 = vrot.lane.b32.xlu0 %v4140, 32
      %v4233 = vpop.permute.xlu0 %4232
      %4236 = vrot.lane.b32.xlu0 %v4158, 48
      %v4237 = vpop.permute.xlu0 %4236
      %4240 = vrot.lane.b32.xlu0 %v4149, 64
      %v4241 = vpop.permute.xlu0 %4240
      %4244 = vrot.lane.b32.xlu0 %v4159, 80
      %v4245 = vpop.permute.xlu0 %4244
      %4248 = vrot.lane.b32.xlu0 %v4156, 96
      %v4249 = vpop.permute.xlu0 %4248
      %4252 = vrot.lane.b32.xlu0 %v4160, 112
      %v4253 = vpop.permute.xlu0 %4252
      %4256 = vrot.lane.b32.xlu0 %v4223, 16
      %v4257 = vpop.permute.xlu0 %4256
      %4260 = vrot.lane.b32.xlu0 %v4206, 32
      %v4261 = vpop.permute.xlu0 %4260
      %4264 = vrot.lane.b32.xlu0 %v4224, 48
      %v4265 = vpop.permute.xlu0 %4264
      %4268 = vrot.lane.b32.xlu0 %v4215, 64
      %v4269 = vpop.permute.xlu0 %4268
      %4272 = vrot.lane.b32.xlu0 %v4225, 80
      %v4273 = vpop.permute.xlu0 %4272
      %4276 = vrot.lane.b32.xlu0 %v4222, 96
      %v4277 = vpop.permute.xlu0 %4276
      %4280 = vrot.lane.b32.xlu0 %v4226, 112
      %v4281 = vpop.permute.xlu0 %4280
      %v4283 = vsel %vm725, %v4133, %v4229
      %v4284 = vsel %vm727, %v4283, %v4233
      %v4285 = vsel %vm729, %v4284, %v4237
      %v4286 = vsel %vm731, %v4285, %v4241
      %v4287 = vsel %vm733, %v4286, %v4245
      %v4288 = vsel %vm735, %v4287, %v4249
      %v4289 = vsel %vm737, %v4288, %v4253
      %v4290 = vsel %vm725, %v4199, %v4257
      %v4291 = vsel %vm727, %v4290, %v4261
      %v4292 = vsel %vm729, %v4291, %v4265
      %v4293 = vsel %vm731, %v4292, %v4269
      %v4294 = vsel %vm733, %v4293, %v4273
      %v4295 = vsel %vm735, %v4294, %v4277
      %v4296 = vsel %vm737, %v4295, %v4281
      %v4299 = vrot.slane %v4289, 2
      %v4300 = vrot.slane %v4296, 2
      %4303 = vst [vmem:[#allocation5 + $0x50] sm:$0xc0] %v4299
      %4304 = vst [vmem:[#allocation5 + $0x58] sm:$0xc0] %v4300
      %v4305 = vld [vmem:[#allocation3 + $0x2] sm:$0xff]
      %v4306 = vld [vmem:[#allocation3 + $0xa] sm:$0xff]
      %v4307 = vld [vmem:[#allocation3 + $0x1a] sm:$0xff]
      %v4308 = vld [vmem:[#allocation3 + $0x22] sm:$0xff]
      %v4309 = vcombine.high %v4305, 0.0
      %v4311 = vunpack.c.l.s4 1983009808
      %v4312 = vunpack.c.0.s8 %v4311
      %v4313 = vlaneseq
      %v4314 = vshrl.u32 %v4313, 7
      %v4315 = vsub.s32 %v4312, %v4314
      %v4316 = vrot.slane %v4305, %v4315
      %v4318 = vunpack.c.l.s4 1983009808
      %v4319 = vunpack.c.0.s8 %v4318
      %v4320 = vlaneseq
      %v4321 = vshrl.u32 %v4320, 7
      %v4322 = vsub.s32 %v4319, %v4321
      %v4323 = vrot.slane %v4309, %v4322
      %v4324 = vcombine.high %v4307, 0.0
      %v4326 = vunpack.c.l.s4 1983009808
      %v4327 = vunpack.c.0.s8 %v4326
      %v4328 = vlaneseq
      %v4329 = vshrl.u32 %v4328, 7
      %v4330 = vsub.s32 %v4327, %v4329
      %v4331 = vrot.slane %v4307, %v4330
      %v4333 = vunpack.c.l.s4 1983009808
      %v4334 = vunpack.c.0.s8 %v4333
      %v4335 = vlaneseq
      %v4336 = vshrl.u32 %v4335, 7
      %v4337 = vsub.s32 %v4334, %v4336
      %v4338 = vrot.slane %v4324, %v4337
      %v4339 = vcombine.low %v4316, %v4331
      %v4340 = vcombine.high %v4316, %v4331
      %v4342 = vunpack.c.l.s4 1934713408
      %v4343 = vunpack.c.0.s8 %v4342
      %v4344 = vlaneseq
      %v4345 = vshrl.u32 %v4344, 7
      %v4346 = vsub.s32 %v4343, %v4345
      %v4347 = vrot.slane %v4339, %v4346
      %v4349 = vunpack.c.l.s4 1934713408
      %v4350 = vunpack.c.0.s8 %v4349
      %v4351 = vlaneseq
      %v4352 = vshrl.u32 %v4351, 7
      %v4353 = vsub.s32 %v4350, %v4352
      %v4354 = vrot.slane %v4340, %v4353
      %v4355 = vcombine.low %v4323, %v4338
      %v4356 = vcombine.high %v4323, %v4338
      %v4358 = vunpack.c.l.s4 1934713408
      %v4359 = vunpack.c.0.s8 %v4358
      %v4360 = vlaneseq
      %v4361 = vshrl.u32 %v4360, 7
      %v4362 = vsub.s32 %v4359, %v4361
      %v4363 = vrot.slane %v4355, %v4362
      %v4365 = vunpack.c.l.s4 1934713408
      %v4366 = vunpack.c.0.s8 %v4365
      %v4367 = vlaneseq
      %v4368 = vshrl.u32 %v4367, 7
      %v4369 = vsub.s32 %v4366, %v4368
      %v4370 = vrot.slane %v4356, %v4369
      %v4371 = vcombine.high %v4347, 0.0
      %v4372 = vcombine.high %v4354, 0.0
      %v4373 = vcombine.high %v4363, 0.0
      %v4374 = vcombine.high %v4370, 0.0
      %v4375 = vcombine.high %v4306, 0.0
      %v4377 = vunpack.c.l.s4 1983009808
      %v4378 = vunpack.c.0.s8 %v4377
      %v4379 = vlaneseq
      %v4380 = vshrl.u32 %v4379, 7
      %v4381 = vsub.s32 %v4378, %v4380
      %v4382 = vrot.slane %v4306, %v4381
      %v4384 = vunpack.c.l.s4 1983009808
      %v4385 = vunpack.c.0.s8 %v4384
      %v4386 = vlaneseq
      %v4387 = vshrl.u32 %v4386, 7
      %v4388 = vsub.s32 %v4385, %v4387
      %v4389 = vrot.slane %v4375, %v4388
      %v4390 = vcombine.high %v4308, 0.0
      %v4392 = vunpack.c.l.s4 1983009808
      %v4393 = vunpack.c.0.s8 %v4392
      %v4394 = vlaneseq
      %v4395 = vshrl.u32 %v4394, 7
      %v4396 = vsub.s32 %v4393, %v4395
      %v4397 = vrot.slane %v4308, %v4396
      %v4399 = vunpack.c.l.s4 1983009808
      %v4400 = vunpack.c.0.s8 %v4399
      %v4401 = vlaneseq
      %v4402 = vshrl.u32 %v4401, 7
      %v4403 = vsub.s32 %v4400, %v4402
      %v4404 = vrot.slane %v4390, %v4403
      %v4405 = vcombine.low %v4382, %v4397
      %v4406 = vcombine.high %v4382, %v4397
      %v4408 = vunpack.c.l.s4 1934713408
      %v4409 = vunpack.c.0.s8 %v4408
      %v4410 = vlaneseq
      %v4411 = vshrl.u32 %v4410, 7
      %v4412 = vsub.s32 %v4409, %v4411
      %v4413 = vrot.slane %v4405, %v4412
      %v4415 = vunpack.c.l.s4 1934713408
      %v4416 = vunpack.c.0.s8 %v4415
      %v4417 = vlaneseq
      %v4418 = vshrl.u32 %v4417, 7
      %v4419 = vsub.s32 %v4416, %v4418
      %v4420 = vrot.slane %v4406, %v4419
      %v4421 = vcombine.low %v4389, %v4404
      %v4422 = vcombine.high %v4389, %v4404
      %v4424 = vunpack.c.l.s4 1934713408
      %v4425 = vunpack.c.0.s8 %v4424
      %v4426 = vlaneseq
      %v4427 = vshrl.u32 %v4426, 7
      %v4428 = vsub.s32 %v4425, %v4427
      %v4429 = vrot.slane %v4421, %v4428
      %v4431 = vunpack.c.l.s4 1934713408
      %v4432 = vunpack.c.0.s8 %v4431
      %v4433 = vlaneseq
      %v4434 = vshrl.u32 %v4433, 7
      %v4435 = vsub.s32 %v4432, %v4434
      %v4436 = vrot.slane %v4422, %v4435
      %v4437 = vcombine.high %v4413, 0.0
      %v4438 = vcombine.high %v4420, 0.0
      %v4439 = vcombine.high %v4429, 0.0
      %v4440 = vcombine.high %v4436, 0.0
      %4442 = vrot.lane.b32.xlu0 %v4371, 16
      %v4443 = vpop.permute.xlu0 %4442
      %4446 = vrot.lane.b32.xlu0 %v4354, 32
      %v4447 = vpop.permute.xlu0 %4446
      %4450 = vrot.lane.b32.xlu0 %v4372, 48
      %v4451 = vpop.permute.xlu0 %4450
      %4454 = vrot.lane.b32.xlu0 %v4363, 64
      %v4455 = vpop.permute.xlu0 %4454
      %4458 = vrot.lane.b32.xlu0 %v4373, 80
      %v4459 = vpop.permute.xlu0 %4458
      %4462 = vrot.lane.b32.xlu0 %v4370, 96
      %v4463 = vpop.permute.xlu0 %4462
      %4466 = vrot.lane.b32.xlu0 %v4374, 112
      %v4467 = vpop.permute.xlu0 %4466
      %4470 = vrot.lane.b32.xlu0 %v4437, 16
      %v4471 = vpop.permute.xlu0 %4470
      %4474 = vrot.lane.b32.xlu0 %v4420, 32
      %v4475 = vpop.permute.xlu0 %4474
      %4478 = vrot.lane.b32.xlu0 %v4438, 48
      %v4479 = vpop.permute.xlu0 %4478
      %4482 = vrot.lane.b32.xlu0 %v4429, 64
      %v4483 = vpop.permute.xlu0 %4482
      %4486 = vrot.lane.b32.xlu0 %v4439, 80
      %v4487 = vpop.permute.xlu0 %4486
      %4490 = vrot.lane.b32.xlu0 %v4436, 96
      %v4491 = vpop.permute.xlu0 %4490
      %4494 = vrot.lane.b32.xlu0 %v4440, 112
      %v4495 = vpop.permute.xlu0 %4494
      %v4497 = vsel %vm725, %v4347, %v4443
      %v4498 = vsel %vm727, %v4497, %v4447
      %v4499 = vsel %vm729, %v4498, %v4451
      %v4500 = vsel %vm731, %v4499, %v4455
      %v4501 = vsel %vm733, %v4500, %v4459
      %v4502 = vsel %vm735, %v4501, %v4463
      %v4503 = vsel %vm737, %v4502, %v4467
      %v4504 = vsel %vm725, %v4413, %v4471
      %v4505 = vsel %vm727, %v4504, %v4475
      %v4506 = vsel %vm729, %v4505, %v4479
      %v4507 = vsel %vm731, %v4506, %v4483
      %v4508 = vsel %vm733, %v4507, %v4487
      %v4509 = vsel %vm735, %v4508, %v4491
      %v4510 = vsel %vm737, %v4509, %v4495
      %4511 = vst [vmem:[#allocation5 + $0x60] sm:$0x3] %v4503
      %4512 = vst [vmem:[#allocation5 + $0x68] sm:$0x3] %v4510
      %v4513 = vld [vmem:[#allocation3 + $0x2] sm:$0xff]
      %v4514 = vld [vmem:[#allocation3 + $0xa] sm:$0xff]
      %v4515 = vld [vmem:[#allocation3 + $0x1a] sm:$0xff]
      %v4516 = vld [vmem:[#allocation3 + $0x22] sm:$0xff]
      %4521 = vrot.lane.b32.xlu0 %v4513, 127
      %v4522 = vpop.permute.xlu0 %4521
      %4523 = vrot.lane.b32.xlu0 %v4514, 127
      %v4524 = vpop.permute.xlu0 %4523
      %4525 = vrot.lane.b32.xlu0 %v4515, 127
      %v4526 = vpop.permute.xlu0 %4525
      %4527 = vrot.lane.b32.xlu0 %v4516, 127
      %v4528 = vpop.permute.xlu0 %4527
      %v4533 = vcombine.high %v4522, 0.0
      %v4535 = vunpack.c.l.s4 1983009808
      %v4536 = vunpack.c.0.s8 %v4535
      %v4537 = vlaneseq
      %v4538 = vshrl.u32 %v4537, 7
      %v4539 = vsub.s32 %v4536, %v4538
      %v4540 = vrot.slane %v4522, %v4539
      %v4542 = vunpack.c.l.s4 1983009808
      %v4543 = vunpack.c.0.s8 %v4542
      %v4544 = vlaneseq
      %v4545 = vshrl.u32 %v4544, 7
      %v4546 = vsub.s32 %v4543, %v4545
      %v4547 = vrot.slane %v4533, %v4546
      %v4548 = vcombine.high %v4526, 0.0
      %v4550 = vunpack.c.l.s4 1983009808
      %v4551 = vunpack.c.0.s8 %v4550
      %v4552 = vlaneseq
      %v4553 = vshrl.u32 %v4552, 7
      %v4554 = vsub.s32 %v4551, %v4553
      %v4555 = vrot.slane %v4526, %v4554
      %v4557 = vunpack.c.l.s4 1983009808
      %v4558 = vunpack.c.0.s8 %v4557
      %v4559 = vlaneseq
      %v4560 = vshrl.u32 %v4559, 7
      %v4561 = vsub.s32 %v4558, %v4560
      %v4562 = vrot.slane %v4548, %v4561
      %v4563 = vcombine.low %v4540, %v4555
      %v4564 = vcombine.high %v4540, %v4555
      %v4566 = vunpack.c.l.s4 1934713408
      %v4567 = vunpack.c.0.s8 %v4566
      %v4568 = vlaneseq
      %v4569 = vshrl.u32 %v4568, 7
      %v4570 = vsub.s32 %v4567, %v4569
      %v4571 = vrot.slane %v4563, %v4570
      %v4573 = vunpack.c.l.s4 1934713408
      %v4574 = vunpack.c.0.s8 %v4573
      %v4575 = vlaneseq
      %v4576 = vshrl.u32 %v4575, 7
      %v4577 = vsub.s32 %v4574, %v4576
      %v4578 = vrot.slane %v4564, %v4577
      %v4579 = vcombine.low %v4547, %v4562
      %v4580 = vcombine.high %v4547, %v4562
      %v4582 = vunpack.c.l.s4 1934713408
      %v4583 = vunpack.c.0.s8 %v4582
      %v4584 = vlaneseq
      %v4585 = vshrl.u32 %v4584, 7
      %v4586 = vsub.s32 %v4583, %v4585
      %v4587 = vrot.slane %v4579, %v4586
      %v4589 = vunpack.c.l.s4 1934713408
      %v4590 = vunpack.c.0.s8 %v4589
      %v4591 = vlaneseq
      %v4592 = vshrl.u32 %v4591, 7
      %v4593 = vsub.s32 %v4590, %v4592
      %v4594 = vrot.slane %v4580, %v4593
      %v4595 = vcombine.high %v4571, 0.0
      %v4596 = vcombine.high %v4578, 0.0
      %v4597 = vcombine.high %v4587, 0.0
      %v4598 = vcombine.high %v4594, 0.0
      %v4599 = vcombine.high %v4524, 0.0
      %v4601 = vunpack.c.l.s4 1983009808
      %v4602 = vunpack.c.0.s8 %v4601
      %v4603 = vlaneseq
      %v4604 = vshrl.u32 %v4603, 7
      %v4605 = vsub.s32 %v4602, %v4604
      %v4606 = vrot.slane %v4524, %v4605
      %v4608 = vunpack.c.l.s4 1983009808
      %v4609 = vunpack.c.0.s8 %v4608
      %v4610 = vlaneseq
      %v4611 = vshrl.u32 %v4610, 7
      %v4612 = vsub.s32 %v4609, %v4611
      %v4613 = vrot.slane %v4599, %v4612
      %v4614 = vcombine.high %v4528, 0.0
      %v4616 = vunpack.c.l.s4 1983009808
      %v4617 = vunpack.c.0.s8 %v4616
      %v4618 = vlaneseq
      %v4619 = vshrl.u32 %v4618, 7
      %v4620 = vsub.s32 %v4617, %v4619
      %v4621 = vrot.slane %v4528, %v4620
      %v4623 = vunpack.c.l.s4 1983009808
      %v4624 = vunpack.c.0.s8 %v4623
      %v4625 = vlaneseq
      %v4626 = vshrl.u32 %v4625, 7
      %v4627 = vsub.s32 %v4624, %v4626
      %v4628 = vrot.slane %v4614, %v4627
      %v4629 = vcombine.low %v4606, %v4621
      %v4630 = vcombine.high %v4606, %v4621
      %v4632 = vunpack.c.l.s4 1934713408
      %v4633 = vunpack.c.0.s8 %v4632
      %v4634 = vlaneseq
      %v4635 = vshrl.u32 %v4634, 7
      %v4636 = vsub.s32 %v4633, %v4635
      %v4637 = vrot.slane %v4629, %v4636
      %v4639 = vunpack.c.l.s4 1934713408
      %v4640 = vunpack.c.0.s8 %v4639
      %v4641 = vlaneseq
      %v4642 = vshrl.u32 %v4641, 7
      %v4643 = vsub.s32 %v4640, %v4642
      %v4644 = vrot.slane %v4630, %v4643
      %v4645 = vcombine.low %v4613, %v4628
      %v4646 = vcombine.high %v4613, %v4628
      %v4648 = vunpack.c.l.s4 1934713408
      %v4649 = vunpack.c.0.s8 %v4648
      %v4650 = vlaneseq
      %v4651 = vshrl.u32 %v4650, 7
      %v4652 = vsub.s32 %v4649, %v4651
      %v4653 = vrot.slane %v4645, %v4652
      %v4655 = vunpack.c.l.s4 1934713408
      %v4656 = vunpack.c.0.s8 %v4655
      %v4657 = vlaneseq
      %v4658 = vshrl.u32 %v4657, 7
      %v4659 = vsub.s32 %v4656, %v4658
      %v4660 = vrot.slane %v4646, %v4659
      %v4661 = vcombine.high %v4637, 0.0
      %v4662 = vcombine.high %v4644, 0.0
      %v4663 = vcombine.high %v4653, 0.0
      %v4664 = vcombine.high %v4660, 0.0
      %4666 = vrot.lane.b32.xlu0 %v4595, 16
      %v4667 = vpop.permute.xlu0 %4666
      %4670 = vrot.lane.b32.xlu0 %v4578, 32
      %v4671 = vpop.permute.xlu0 %4670
      %4674 = vrot.lane.b32.xlu0 %v4596, 48
      %v4675 = vpop.permute.xlu0 %4674
      %4678 = vrot.lane.b32.xlu0 %v4587, 64
      %v4679 = vpop.permute.xlu0 %4678
      %4682 = vrot.lane.b32.xlu0 %v4597, 80
      %v4683 = vpop.permute.xlu0 %4682
      %4686 = vrot.lane.b32.xlu0 %v4594, 96
      %v4687 = vpop.permute.xlu0 %4686
      %4690 = vrot.lane.b32.xlu0 %v4598, 112
      %v4691 = vpop.permute.xlu0 %4690
      %4694 = vrot.lane.b32.xlu0 %v4661, 16
      %v4695 = vpop.permute.xlu0 %4694
      %4698 = vrot.lane.b32.xlu0 %v4644, 32
      %v4699 = vpop.permute.xlu0 %4698
      %4702 = vrot.lane.b32.xlu0 %v4662, 48
      %v4703 = vpop.permute.xlu0 %4702
      %4706 = vrot.lane.b32.xlu0 %v4653, 64
      %v4707 = vpop.permute.xlu0 %4706
      %4710 = vrot.lane.b32.xlu0 %v4663, 80
      %v4711 = vpop.permute.xlu0 %4710
      %4714 = vrot.lane.b32.xlu0 %v4660, 96
      %v4715 = vpop.permute.xlu0 %4714
      %4718 = vrot.lane.b32.xlu0 %v4664, 112
      %v4719 = vpop.permute.xlu0 %4718
      %v4721 = vsel %vm725, %v4571, %v4667
      %v4722 = vsel %vm727, %v4721, %v4671
      %v4723 = vsel %vm729, %v4722, %v4675
      %v4724 = vsel %vm731, %v4723, %v4679
      %v4725 = vsel %vm733, %v4724, %v4683
      %v4726 = vsel %vm735, %v4725, %v4687
      %v4727 = vsel %vm737, %v4726, %v4691
      %v4728 = vsel %vm725, %v4637, %v4695
      %v4729 = vsel %vm727, %v4728, %v4699
      %v4730 = vsel %vm729, %v4729, %v4703
      %v4731 = vsel %vm731, %v4730, %v4707
      %v4732 = vsel %vm733, %v4731, %v4711
      %v4733 = vsel %vm735, %v4732, %v4715
      %v4734 = vsel %vm737, %v4733, %v4719
      %v4737 = vrot.slane %v4727, 6
      %v4738 = vrot.slane %v4734, 6
      %4741 = vst [vmem:[#allocation5 + $0x60] sm:$0xc] %v4737
      %4742 = vst [vmem:[#allocation5 + $0x68] sm:$0xc] %v4738
      %v4743 = vld [vmem:[#allocation3 + $0x2] sm:$0xff]
      %v4744 = vld [vmem:[#allocation3 + $0xa] sm:$0xff]
      %v4745 = vld [vmem:[#allocation3 + $0x1a] sm:$0xff]
      %v4746 = vld [vmem:[#allocation3 + $0x22] sm:$0xff]
      %4751 = vrot.lane.b32.xlu0 %v4743, 126
      %v4752 = vpop.permute.xlu0 %4751
      %4753 = vrot.lane.b32.xlu0 %v4744, 126
      %v4754 = vpop.permute.xlu0 %4753
      %4755 = vrot.lane.b32.xlu0 %v4745, 126
      %v4756 = vpop.permute.xlu0 %4755
      %4757 = vrot.lane.b32.xlu0 %v4746, 126
      %v4758 = vpop.permute.xlu0 %4757
      %v4763 = vcombine.high %v4752, 0.0
      %v4765 = vunpack.c.l.s4 1983009808
      %v4766 = vunpack.c.0.s8 %v4765
      %v4767 = vlaneseq
      %v4768 = vshrl.u32 %v4767, 7
      %v4769 = vsub.s32 %v4766, %v4768
      %v4770 = vrot.slane %v4752, %v4769
      %v4772 = vunpack.c.l.s4 1983009808
      %v4773 = vunpack.c.0.s8 %v4772
      %v4774 = vlaneseq
      %v4775 = vshrl.u32 %v4774, 7
      %v4776 = vsub.s32 %v4773, %v4775
      %v4777 = vrot.slane %v4763, %v4776
      %v4778 = vcombine.high %v4756, 0.0
      %v4780 = vunpack.c.l.s4 1983009808
      %v4781 = vunpack.c.0.s8 %v4780
      %v4782 = vlaneseq
      %v4783 = vshrl.u32 %v4782, 7
      %v4784 = vsub.s32 %v4781, %v4783
      %v4785 = vrot.slane %v4756, %v4784
      %v4787 = vunpack.c.l.s4 1983009808
      %v4788 = vunpack.c.0.s8 %v4787
      %v4789 = vlaneseq
      %v4790 = vshrl.u32 %v4789, 7
      %v4791 = vsub.s32 %v4788, %v4790
      %v4792 = vrot.slane %v4778, %v4791
      %v4793 = vcombine.low %v4770, %v4785
      %v4794 = vcombine.high %v4770, %v4785
      %v4796 = vunpack.c.l.s4 1934713408
      %v4797 = vunpack.c.0.s8 %v4796
      %v4798 = vlaneseq
      %v4799 = vshrl.u32 %v4798, 7
      %v4800 = vsub.s32 %v4797, %v4799
      %v4801 = vrot.slane %v4793, %v4800
      %v4803 = vunpack.c.l.s4 1934713408
      %v4804 = vunpack.c.0.s8 %v4803
      %v4805 = vlaneseq
      %v4806 = vshrl.u32 %v4805, 7
      %v4807 = vsub.s32 %v4804, %v4806
      %v4808 = vrot.slane %v4794, %v4807
      %v4809 = vcombine.low %v4777, %v4792
      %v4810 = vcombine.high %v4777, %v4792
      %v4812 = vunpack.c.l.s4 1934713408
      %v4813 = vunpack.c.0.s8 %v4812
      %v4814 = vlaneseq
      %v4815 = vshrl.u32 %v4814, 7
      %v4816 = vsub.s32 %v4813, %v4815
      %v4817 = vrot.slane %v4809, %v4816
      %v4819 = vunpack.c.l.s4 1934713408
      %v4820 = vunpack.c.0.s8 %v4819
      %v4821 = vlaneseq
      %v4822 = vshrl.u32 %v4821, 7
      %v4823 = vsub.s32 %v4820, %v4822
      %v4824 = vrot.slane %v4810, %v4823
      %v4825 = vcombine.high %v4801, 0.0
      %v4826 = vcombine.high %v4808, 0.0
      %v4827 = vcombine.high %v4817, 0.0
      %v4828 = vcombine.high %v4824, 0.0
      %v4829 = vcombine.high %v4754, 0.0
      %v4831 = vunpack.c.l.s4 1983009808
      %v4832 = vunpack.c.0.s8 %v4831
      %v4833 = vlaneseq
      %v4834 = vshrl.u32 %v4833, 7
      %v4835 = vsub.s32 %v4832, %v4834
      %v4836 = vrot.slane %v4754, %v4835
      %v4838 = vunpack.c.l.s4 1983009808
      %v4839 = vunpack.c.0.s8 %v4838
      %v4840 = vlaneseq
      %v4841 = vshrl.u32 %v4840, 7
      %v4842 = vsub.s32 %v4839, %v4841
      %v4843 = vrot.slane %v4829, %v4842
      %v4844 = vcombine.high %v4758, 0.0
      %v4846 = vunpack.c.l.s4 1983009808
      %v4847 = vunpack.c.0.s8 %v4846
      %v4848 = vlaneseq
      %v4849 = vshrl.u32 %v4848, 7
      %v4850 = vsub.s32 %v4847, %v4849
      %v4851 = vrot.slane %v4758, %v4850
      %v4853 = vunpack.c.l.s4 1983009808
      %v4854 = vunpack.c.0.s8 %v4853
      %v4855 = vlaneseq
      %v4856 = vshrl.u32 %v4855, 7
      %v4857 = vsub.s32 %v4854, %v4856
      %v4858 = vrot.slane %v4844, %v4857
      %v4859 = vcombine.low %v4836, %v4851
      %v4860 = vcombine.high %v4836, %v4851
      %v4862 = vunpack.c.l.s4 1934713408
      %v4863 = vunpack.c.0.s8 %v4862
      %v4864 = vlaneseq
      %v4865 = vshrl.u32 %v4864, 7
      %v4866 = vsub.s32 %v4863, %v4865
      %v4867 = vrot.slane %v4859, %v4866
      %v4869 = vunpack.c.l.s4 1934713408
      %v4870 = vunpack.c.0.s8 %v4869
      %v4871 = vlaneseq
      %v4872 = vshrl.u32 %v4871, 7
      %v4873 = vsub.s32 %v4870, %v4872
      %v4874 = vrot.slane %v4860, %v4873
      %v4875 = vcombine.low %v4843, %v4858
      %v4876 = vcombine.high %v4843, %v4858
      %v4878 = vunpack.c.l.s4 1934713408
      %v4879 = vunpack.c.0.s8 %v4878
      %v4880 = vlaneseq
      %v4881 = vshrl.u32 %v4880, 7
      %v4882 = vsub.s32 %v4879, %v4881
      %v4883 = vrot.slane %v4875, %v4882
      %v4885 = vunpack.c.l.s4 1934713408
      %v4886 = vunpack.c.0.s8 %v4885
      %v4887 = vlaneseq
      %v4888 = vshrl.u32 %v4887, 7
      %v4889 = vsub.s32 %v4886, %v4888
      %v4890 = vrot.slane %v4876, %v4889
      %v4891 = vcombine.high %v4867, 0.0
      %v4892 = vcombine.high %v4874, 0.0
      %v4893 = vcombine.high %v4883, 0.0
      %v4894 = vcombine.high %v4890, 0.0
      %4896 = vrot.lane.b32.xlu0 %v4825, 16
      %v4897 = vpop.permute.xlu0 %4896
      %4900 = vrot.lane.b32.xlu0 %v4808, 32
      %v4901 = vpop.permute.xlu0 %4900
      %4904 = vrot.lane.b32.xlu0 %v4826, 48
      %v4905 = vpop.permute.xlu0 %4904
      %4908 = vrot.lane.b32.xlu0 %v4817, 64
      %v4909 = vpop.permute.xlu0 %4908
      %4912 = vrot.lane.b32.xlu0 %v4827, 80
      %v4913 = vpop.permute.xlu0 %4912
      %4916 = vrot.lane.b32.xlu0 %v4824, 96
      %v4917 = vpop.permute.xlu0 %4916
      %4920 = vrot.lane.b32.xlu0 %v4828, 112
      %v4921 = vpop.permute.xlu0 %4920
      %4924 = vrot.lane.b32.xlu0 %v4891, 16
      %v4925 = vpop.permute.xlu0 %4924
      %4928 = vrot.lane.b32.xlu0 %v4874, 32
      %v4929 = vpop.permute.xlu0 %4928
      %4932 = vrot.lane.b32.xlu0 %v4892, 48
      %v4933 = vpop.permute.xlu0 %4932
      %4936 = vrot.lane.b32.xlu0 %v4883, 64
      %v4937 = vpop.permute.xlu0 %4936
      %4940 = vrot.lane.b32.xlu0 %v4893, 80
      %v4941 = vpop.permute.xlu0 %4940
      %4944 = vrot.lane.b32.xlu0 %v4890, 96
      %v4945 = vpop.permute.xlu0 %4944
      %4948 = vrot.lane.b32.xlu0 %v4894, 112
      %v4949 = vpop.permute.xlu0 %4948
      %v4951 = vsel %vm725, %v4801, %v4897
      %v4952 = vsel %vm727, %v4951, %v4901
      %v4953 = vsel %vm729, %v4952, %v4905
      %v4954 = vsel %vm731, %v4953, %v4909
      %v4955 = vsel %vm733, %v4954, %v4913
      %v4956 = vsel %vm735, %v4955, %v4917
      %v4957 = vsel %vm737, %v4956, %v4921
      %v4958 = vsel %vm725, %v4867, %v4925
      %v4959 = vsel %vm727, %v4958, %v4929
      %v4960 = vsel %vm729, %v4959, %v4933
      %v4961 = vsel %vm731, %v4960, %v4937
      %v4962 = vsel %vm733, %v4961, %v4941
      %v4963 = vsel %vm735, %v4962, %v4945
      %v4964 = vsel %vm737, %v4963, %v4949
      %v4967 = vrot.slane %v4957, 4
      %v4968 = vrot.slane %v4964, 4
      %4971 = vst [vmem:[#allocation5 + $0x60] sm:$0x30] %v4967
      %4972 = vst [vmem:[#allocation5 + $0x68] sm:$0x30] %v4968
      %v4973 = vld [vmem:[%s3] sm:$0x3]
      %v4974 = vld [vmem:[#allocation5] sm:$0xff]
      %v4975 = vld [vmem:[#allocation5 + $0x8] sm:$0xff]
      %v4976 = vld [vmem:[#allocation5 + $0x10] sm:$0xff]
      %v4977 = vld [vmem:[#allocation5 + $0x18] sm:$0xff]
      %v4978 = vld [vmem:[#allocation5 + $0x20] sm:$0xff]
      %v4979 = vld [vmem:[#allocation5 + $0x28] sm:$0xff]
      %v4980 = vld [vmem:[#allocation5 + $0x30] sm:$0xff]
      %v4981 = vld [vmem:[#allocation5 + $0x38] sm:$0xff]
      %v4982 = vld [vmem:[#allocation5 + $0x40] sm:$0xff]
      %v4983 = vld [vmem:[#allocation5 + $0x48] sm:$0xff]
      %v4984 = vld [vmem:[#allocation5 + $0x50] sm:$0xff]
      %v4985 = vld [vmem:[#allocation5 + $0x58] sm:$0xff]
      %v4986 = vld [vmem:[#allocation5 + $0x60] sm:$0x3f]
      %v4987 = vld [vmem:[#allocation5 + $0x68] sm:$0x3f]
      %v4988 = vld [vmem:[%s4] sm:$0x3]
      %4990 = vset.pattern.permute.xlu0 0
      %4991 = vperm.xlu0 %4990, %v4988
      %v4992 = vpop.permute.xlu0 %4991
      %vm4994 = vcmask 441344
      %v4996 = vsel %vm4994, %v4973, 0
      %vm4998 = vcmask 1045504
      %v5000 = vsel %vm4998, %v4986, 0
      %v5003 = vsel %vm4998, %v4987, 0
      %5005 = vmatprep.subr.mxu0 %v4975
      %5006 = vmatpush1.msra.mxu0 %v4974
      %5007 = vmatprep.subr.mxu0 %v4977
      %5008 = vmatpush1.msra.mxu0 %v4976
      %5009 = vmatprep.subr.mxu0 %v4979
      %5010 = vmatpush1.msra.mxu0 %v4978
      %5011 = vmatprep.subr.mxu0 %v4981
      %5012 = vmatpush1.msra.mxu0 %v4980
      %5013 = vmatprep.subr.mxu0 %v4983
      %5014 = vmatpush1.msra.mxu0 %v4982
      %5015 = vmatprep.subr.mxu0 %v4985
      %5016 = vmatpush1.msra.mxu0 %v4984
      %5017 = vmatprep.subr.mxu0 %v5003
      %5018 = vmatpush1.msra.mxu0 %v5000
      %5019 = vmatprep.subr.mxu0 0.0
      %5020 = vmatpush1.msra.mxu0 0.0
      %5021 = vmatprep.subr.mxu0 0.0
      %5022 = vmatpush1.msra.mxu0 0.0
      %5023 = vmatprep.subr.mxu0 0.0
      %5024 = vmatpush1.msra.mxu0 0.0
      %5025 = vmatprep.subr.mxu0 0.0
      %5026 = vmatpush1.msra.mxu0 0.0
      %5027 = vmatprep.subr.mxu0 0.0
      %5028 = vmatpush1.msra.mxu0 0.0
      %5029 = vmatprep.subr.mxu0 0.0
      %5030 = vmatpush1.msra.mxu0 0.0
      %5031 = vmatprep.subr.mxu0 0.0
      %5032 = vmatpush1.msra.mxu0 0.0
      %5033 = vmatprep.subr.mxu0 0.0
      %5034 = vmatpush1.msra.mxu0 0.0
      %5035 = vmatprep.subr.mxu0 0.0
      %5036 = vmatpush1.msra.mxu0 0.0
      %5037 = vmatprep.subr.mxu0 0.0
      %5038 = vmatpush1.msra.mxu0 0.0
      %5039 = vmatprep.subr.mxu0 0.0
      %5040 = vmatpush1.msra.mxu0 0.0
      %5041 = vmatprep.subr.mxu0 0.0
      %5042 = vmatpush1.msra.mxu0 0.0
      %5043 = vmatprep.subr.mxu0 0.0
      %5044 = vmatpush1.msra.mxu0 0.0
      %5045 = vmatprep.subr.mxu0 0.0
      %5046 = vmatpush1.msra.mxu0 0.0
      %5047 = vmatprep.subr.mxu0 0.0
      %5048 = vmatpush1.msra.mxu0 0.0
      %5049 = vmatprep.subr.mxu0 0.0
      %5050 = vmatpush1.msra.mxu0 0.0
      %5051 = vmatprep.subr.mxu0 0.0
      %5052 = vmatpush1.msra.mxu0 0.0
      %5053 = vmatprep.subr.mxu0 0.0
      %5054 = vmatpush1.msra.mxu0 0.0
      %5055 = vmatprep.subr.mxu0 0.0
      %5056 = vmatpush1.msra.mxu0 0.0
      %5057 = vmatprep.subr.mxu0 0.0
      %5058 = vmatpush1.msra.mxu0 0.0
      %5059 = vmatprep.subr.mxu0 0.0
      %5060 = vmatpush1.msra.mxu0 0.0
      %5061 = vmatprep.subr.mxu0 0.0
      %5062 = vmatpush1.msra.mxu0 0.0
      %5063 = vmatprep.subr.mxu0 0.0
      %5064 = vmatpush1.msra.mxu0 0.0
      %5065 = vmatprep.subr.mxu0 0.0
      %5066 = vmatpush1.msra.mxu0 0.0
      %5067 = vmatprep.subr.mxu0 0.0
      %5068 = vmatpush1.msra.mxu0 0.0
      %5069 = vmatprep.mubr.f32.mxu0 0.0
      %5070 = vmatmul.mubr.f32.gmra.mrb[0].mxu0 %v4996
      %v5071 = vpop.f32.mrb[0].mxu0
      %v5072 = vadd.f32 %v4992, %v5071
      %v5073 = vpop.f32.mrb[0].mxu0
      %v5074 = vadd.f32 %v4992, %v5073
      %5075 = vdwg.mxu0
      %v5076 = vmax.f32 %v5072, 0.0
      %v5077 = vmax.f32 %v5074, 0.0
      %5078 = vst.msk [vmem:[#allocation4] sm:$0xff] %vm280, 0.0
      %5079 = vst.msk [vmem:[#allocation4 + $0x8] sm:$0xff] %vm280, 0.0
      %5080 = vst.msk [vmem:[#allocation4 + $0x10] sm:$0x3] %vm283, 0.0
      %5081 = vst.msk [vmem:[#allocation4 + $0x18] sm:$0xff] %vm280, 0.0
      %5082 = vst.msk [vmem:[#allocation4 + $0x20] sm:$0xff] %vm280, 0.0
      %5083 = vst.msk [vmem:[#allocation4 + $0x28] sm:$0x3] %vm283, 0.0
      %5085 = vrot.lane.b32.xlu0 %v5076, 112
      %v5086 = vpop.permute.xlu0 %5085
      %5088 = vrot.lane.b32.xlu0 %v5076, 96
      %v5089 = vpop.permute.xlu0 %5088
      %5091 = vrot.lane.b32.xlu0 %v5076, 80
      %v5092 = vpop.permute.xlu0 %5091
      %5094 = vrot.lane.b32.xlu0 %v5076, 64
      %v5095 = vpop.permute.xlu0 %5094
      %5097 = vrot.lane.b32.xlu0 %v5076, 48
      %v5098 = vpop.permute.xlu0 %5097
      %5100 = vrot.lane.b32.xlu0 %v5076, 32
      %v5101 = vpop.permute.xlu0 %5100
      %5103 = vrot.lane.b32.xlu0 %v5076, 16
      %v5104 = vpop.permute.xlu0 %5103
      %5107 = vrot.lane.b32.xlu0 %v5077, 112
      %v5108 = vpop.permute.xlu0 %5107
      %5110 = vrot.lane.b32.xlu0 %v5077, 96
      %v5111 = vpop.permute.xlu0 %5110
      %5113 = vrot.lane.b32.xlu0 %v5077, 80
      %v5114 = vpop.permute.xlu0 %5113
      %5116 = vrot.lane.b32.xlu0 %v5077, 64
      %v5117 = vpop.permute.xlu0 %5116
      %5119 = vrot.lane.b32.xlu0 %v5077, 48
      %v5120 = vpop.permute.xlu0 %5119
      %5122 = vrot.lane.b32.xlu0 %v5077, 32
      %v5123 = vpop.permute.xlu0 %5122
      %5125 = vrot.lane.b32.xlu0 %v5077, 16
      %v5126 = vpop.permute.xlu0 %5125
      %v5128 = vcombine.low %v5076, %v5089
      %v5130 = vunpack.c.l.s4 1983009808
      %v5131 = vunpack.c.0.s8 %v5130
      %v5132 = vlaneseq
      %v5133 = vshrl.u32 %v5132, 7
      %v5134 = vsub.s32 %v5131, %v5133
      %v5135 = vrot.slane %v5128, %v5134
      %v5136 = vcombine.low %v5086, %v5092
      %v5138 = vunpack.c.l.s4 1983009808
      %v5139 = vunpack.c.0.s8 %v5138
      %v5140 = vlaneseq
      %v5141 = vshrl.u32 %v5140, 7
      %v5142 = vsub.s32 %v5139, %v5141
      %v5143 = vrot.slane %v5136, %v5142
      %v5144 = vcombine.low %v5095, %v5101
      %v5146 = vunpack.c.l.s4 1983009808
      %v5147 = vunpack.c.0.s8 %v5146
      %v5148 = vlaneseq
      %v5149 = vshrl.u32 %v5148, 7
      %v5150 = vsub.s32 %v5147, %v5149
      %v5151 = vrot.slane %v5144, %v5150
      %v5152 = vcombine.low %v5098, %v5104
      %v5154 = vunpack.c.l.s4 1983009808
      %v5155 = vunpack.c.0.s8 %v5154
      %v5156 = vlaneseq
      %v5157 = vshrl.u32 %v5156, 7
      %v5158 = vsub.s32 %v5155, %v5157
      %v5159 = vrot.slane %v5152, %v5158
      %v5160 = vcombine.low %v5135, %v5143
      %v5162 = vunpack.c.l.s4 1934713408
      %v5163 = vunpack.c.0.s8 %v5162
      %v5164 = vlaneseq
      %v5165 = vshrl.u32 %v5164, 7
      %v5166 = vsub.s32 %v5163, %v5165
      %v5167 = vrot.slane %v5160, %v5166
      %v5168 = vcombine.low %v5151, %v5159
      %v5170 = vunpack.c.l.s4 1934713408
      %v5171 = vunpack.c.0.s8 %v5170
      %v5172 = vlaneseq
      %v5173 = vshrl.u32 %v5172, 7
      %v5174 = vsub.s32 %v5171, %v5173
      %v5175 = vrot.slane %v5168, %v5174
      %v5176 = vcombine.low %v5167, %v5175
      %v5177 = vcombine.high %v5167, %v5175
      %v5178 = vcombine.low %v5077, %v5111
      %v5180 = vunpack.c.l.s4 1983009808
      %v5181 = vunpack.c.0.s8 %v5180
      %v5182 = vlaneseq
      %v5183 = vshrl.u32 %v5182, 7
      %v5184 = vsub.s32 %v5181, %v5183
      %v5185 = vrot.slane %v5178, %v5184
      %v5186 = vcombine.low %v5108, %v5114
      %v5188 = vunpack.c.l.s4 1983009808
      %v5189 = vunpack.c.0.s8 %v5188
      %v5190 = vlaneseq
      %v5191 = vshrl.u32 %v5190, 7
      %v5192 = vsub.s32 %v5189, %v5191
      %v5193 = vrot.slane %v5186, %v5192
      %v5194 = vcombine.low %v5117, %v5123
      %v5196 = vunpack.c.l.s4 1983009808
      %v5197 = vunpack.c.0.s8 %v5196
      %v5198 = vlaneseq
      %v5199 = vshrl.u32 %v5198, 7
      %v5200 = vsub.s32 %v5197, %v5199
      %v5201 = vrot.slane %v5194, %v5200
      %v5202 = vcombine.low %v5120, %v5126
      %v5204 = vunpack.c.l.s4 1983009808
      %v5205 = vunpack.c.0.s8 %v5204
      %v5206 = vlaneseq
      %v5207 = vshrl.u32 %v5206, 7
      %v5208 = vsub.s32 %v5205, %v5207
      %v5209 = vrot.slane %v5202, %v5208
      %v5210 = vcombine.low %v5185, %v5193
      %v5212 = vunpack.c.l.s4 1934713408
      %v5213 = vunpack.c.0.s8 %v5212
      %v5214 = vlaneseq
      %v5215 = vshrl.u32 %v5214, 7
      %v5216 = vsub.s32 %v5213, %v5215
      %v5217 = vrot.slane %v5210, %v5216
      %v5218 = vcombine.low %v5201, %v5209
      %v5220 = vunpack.c.l.s4 1934713408
      %v5221 = vunpack.c.0.s8 %v5220
      %v5222 = vlaneseq
      %v5223 = vshrl.u32 %v5222, 7
      %v5224 = vsub.s32 %v5221, %v5223
      %v5225 = vrot.slane %v5218, %v5224
      %v5226 = vcombine.low %v5217, %v5225
      %v5227 = vcombine.high %v5217, %v5225
      %5232 = vrot.lane.b32.xlu0 %v5176, 1
      %v5233 = vpop.permute.xlu0 %5232
      %5234 = vrot.lane.b32.xlu0 %v5226, 1
      %v5235 = vpop.permute.xlu0 %5234
      %5236 = vrot.lane.b32.xlu0 %v5177, 1
      %v5237 = vpop.permute.xlu0 %5236
      %5238 = vrot.lane.b32.xlu0 %v5227, 1
      %v5239 = vpop.permute.xlu0 %5238
      %5244 = vst.msk [vmem:[#allocation4 + $0x1] sm:$0xff] %vm516, %v5233
      %5245 = vst.msk [vmem:[#allocation4 + $0x9] sm:$0xff] %vm516, %v5235
      %5246 = vst.msk [vmem:[#allocation4 + $0x19] sm:$0xff] %vm516, %v5237
      %5247 = vst.msk [vmem:[#allocation4 + $0x21] sm:$0xff] %vm516, %v5239
      %v5248 = vld [vmem:[#allocation4] sm:$0xff]
      %v5249 = vld [vmem:[#allocation4 + $0x8] sm:$0xff]
      %v5250 = vld [vmem:[#allocation4 + $0x18] sm:$0xff]
      %v5251 = vld [vmem:[#allocation4 + $0x20] sm:$0xff]
      %v5252 = vcombine.high %v5248, 0.0
      %v5254 = vunpack.c.l.s4 1983009808
      %v5255 = vunpack.c.0.s8 %v5254
      %v5256 = vlaneseq
      %v5257 = vshrl.u32 %v5256, 7
      %v5258 = vsub.s32 %v5255, %v5257
      %v5259 = vrot.slane %v5248, %v5258
      %v5261 = vunpack.c.l.s4 1983009808
      %v5262 = vunpack.c.0.s8 %v5261
      %v5263 = vlaneseq
      %v5264 = vshrl.u32 %v5263, 7
      %v5265 = vsub.s32 %v5262, %v5264
      %v5266 = vrot.slane %v5252, %v5265
      %v5267 = vcombine.high %v5250, 0.0
      %v5269 = vunpack.c.l.s4 1983009808
      %v5270 = vunpack.c.0.s8 %v5269
      %v5271 = vlaneseq
      %v5272 = vshrl.u32 %v5271, 7
      %v5273 = vsub.s32 %v5270, %v5272
      %v5274 = vrot.slane %v5250, %v5273
      %v5276 = vunpack.c.l.s4 1983009808
      %v5277 = vunpack.c.0.s8 %v5276
      %v5278 = vlaneseq
      %v5279 = vshrl.u32 %v5278, 7
      %v5280 = vsub.s32 %v5277, %v5279
      %v5281 = vrot.slane %v5267, %v5280
      %v5282 = vcombine.low %v5259, %v5274
      %v5283 = vcombine.high %v5259, %v5274
      %v5285 = vunpack.c.l.s4 1934713408
      %v5286 = vunpack.c.0.s8 %v5285
      %v5287 = vlaneseq
      %v5288 = vshrl.u32 %v5287, 7
      %v5289 = vsub.s32 %v5286, %v5288
      %v5290 = vrot.slane %v5282, %v5289
      %v5292 = vunpack.c.l.s4 1934713408
      %v5293 = vunpack.c.0.s8 %v5292
      %v5294 = vlaneseq
      %v5295 = vshrl.u32 %v5294, 7
      %v5296 = vsub.s32 %v5293, %v5295
      %v5297 = vrot.slane %v5283, %v5296
      %v5298 = vcombine.low %v5266, %v5281
      %v5299 = vcombine.high %v5266, %v5281
      %v5301 = vunpack.c.l.s4 1934713408
      %v5302 = vunpack.c.0.s8 %v5301
      %v5303 = vlaneseq
      %v5304 = vshrl.u32 %v5303, 7
      %v5305 = vsub.s32 %v5302, %v5304
      %v5306 = vrot.slane %v5298, %v5305
      %v5308 = vunpack.c.l.s4 1934713408
      %v5309 = vunpack.c.0.s8 %v5308
      %v5310 = vlaneseq
      %v5311 = vshrl.u32 %v5310, 7
      %v5312 = vsub.s32 %v5309, %v5311
      %v5313 = vrot.slane %v5299, %v5312
      %v5314 = vcombine.high %v5290, 0.0
      %v5315 = vcombine.high %v5297, 0.0
      %v5316 = vcombine.high %v5306, 0.0
      %v5317 = vcombine.high %v5313, 0.0
      %v5318 = vcombine.high %v5249, 0.0
      %v5320 = vunpack.c.l.s4 1983009808
      %v5321 = vunpack.c.0.s8 %v5320
      %v5322 = vlaneseq
      %v5323 = vshrl.u32 %v5322, 7
      %v5324 = vsub.s32 %v5321, %v5323
      %v5325 = vrot.slane %v5249, %v5324
      %v5327 = vunpack.c.l.s4 1983009808
      %v5328 = vunpack.c.0.s8 %v5327
      %v5329 = vlaneseq
      %v5330 = vshrl.u32 %v5329, 7
      %v5331 = vsub.s32 %v5328, %v5330
      %v5332 = vrot.slane %v5318, %v5331
      %v5333 = vcombine.high %v5251, 0.0
      %v5335 = vunpack.c.l.s4 1983009808
      %v5336 = vunpack.c.0.s8 %v5335
      %v5337 = vlaneseq
      %v5338 = vshrl.u32 %v5337, 7
      %v5339 = vsub.s32 %v5336, %v5338
      %v5340 = vrot.slane %v5251, %v5339
      %v5342 = vunpack.c.l.s4 1983009808
      %v5343 = vunpack.c.0.s8 %v5342
      %v5344 = vlaneseq
      %v5345 = vshrl.u32 %v5344, 7
      %v5346 = vsub.s32 %v5343, %v5345
      %v5347 = vrot.slane %v5333, %v5346
      %v5348 = vcombine.low %v5325, %v5340
      %v5349 = vcombine.high %v5325, %v5340
      %v5351 = vunpack.c.l.s4 1934713408
      %v5352 = vunpack.c.0.s8 %v5351
      %v5353 = vlaneseq
      %v5354 = vshrl.u32 %v5353, 7
      %v5355 = vsub.s32 %v5352, %v5354
      %v5356 = vrot.slane %v5348, %v5355
      %v5358 = vunpack.c.l.s4 1934713408
      %v5359 = vunpack.c.0.s8 %v5358
      %v5360 = vlaneseq
      %v5361 = vshrl.u32 %v5360, 7
      %v5362 = vsub.s32 %v5359, %v5361
      %v5363 = vrot.slane %v5349, %v5362
      %v5364 = vcombine.low %v5332, %v5347
      %v5365 = vcombine.high %v5332, %v5347
      %v5367 = vunpack.c.l.s4 1934713408
      %v5368 = vunpack.c.0.s8 %v5367
      %v5369 = vlaneseq
      %v5370 = vshrl.u32 %v5369, 7
      %v5371 = vsub.s32 %v5368, %v5370
      %v5372 = vrot.slane %v5364, %v5371
      %v5374 = vunpack.c.l.s4 1934713408
      %v5375 = vunpack.c.0.s8 %v5374
      %v5376 = vlaneseq
      %v5377 = vshrl.u32 %v5376, 7
      %v5378 = vsub.s32 %v5375, %v5377
      %v5379 = vrot.slane %v5365, %v5378
      %v5380 = vcombine.high %v5356, 0.0
      %v5381 = vcombine.high %v5363, 0.0
      %v5382 = vcombine.high %v5372, 0.0
      %v5383 = vcombine.high %v5379, 0.0
      %5385 = vrot.lane.b32.xlu0 %v5314, 16
      %v5386 = vpop.permute.xlu0 %5385
      %5389 = vrot.lane.b32.xlu0 %v5297, 32
      %v5390 = vpop.permute.xlu0 %5389
      %5393 = vrot.lane.b32.xlu0 %v5315, 48
      %v5394 = vpop.permute.xlu0 %5393
      %5397 = vrot.lane.b32.xlu0 %v5306, 64
      %v5398 = vpop.permute.xlu0 %5397
      %5401 = vrot.lane.b32.xlu0 %v5316, 80
      %v5402 = vpop.permute.xlu0 %5401
      %5405 = vrot.lane.b32.xlu0 %v5313, 96
      %v5406 = vpop.permute.xlu0 %5405
      %5409 = vrot.lane.b32.xlu0 %v5317, 112
      %v5410 = vpop.permute.xlu0 %5409
      %5413 = vrot.lane.b32.xlu0 %v5380, 16
      %v5414 = vpop.permute.xlu0 %5413
      %5417 = vrot.lane.b32.xlu0 %v5363, 32
      %v5418 = vpop.permute.xlu0 %5417
      %5421 = vrot.lane.b32.xlu0 %v5381, 48
      %v5422 = vpop.permute.xlu0 %5421
      %5425 = vrot.lane.b32.xlu0 %v5372, 64
      %v5426 = vpop.permute.xlu0 %5425
      %5429 = vrot.lane.b32.xlu0 %v5382, 80
      %v5430 = vpop.permute.xlu0 %5429
      %5433 = vrot.lane.b32.xlu0 %v5379, 96
      %v5434 = vpop.permute.xlu0 %5433
      %5437 = vrot.lane.b32.xlu0 %v5383, 112
      %v5438 = vpop.permute.xlu0 %5437
      %v5440 = vsel %vm725, %v5290, %v5386
      %v5441 = vsel %vm727, %v5440, %v5390
      %v5442 = vsel %vm729, %v5441, %v5394
      %v5443 = vsel %vm731, %v5442, %v5398
      %v5444 = vsel %vm733, %v5443, %v5402
      %v5445 = vsel %vm735, %v5444, %v5406
      %v5446 = vsel %vm737, %v5445, %v5410
      %v5447 = vsel %vm725, %v5356, %v5414
      %v5448 = vsel %vm727, %v5447, %v5418
      %v5449 = vsel %vm729, %v5448, %v5422
      %v5450 = vsel %vm731, %v5449, %v5426
      %v5451 = vsel %vm733, %v5450, %v5430
      %v5452 = vsel %vm735, %v5451, %v5434
      %v5453 = vsel %vm737, %v5452, %v5438
      %v5456 = vrot.slane %v5446, 2
      %v5457 = vrot.slane %v5453, 2
      %5460 = vst [vmem:[#allocation5 + $0x60] sm:$0xc0] %v5456
      %5461 = vst [vmem:[#allocation5 + $0x68] sm:$0xc0] %v5457
      %v5462 = vld [vmem:[#allocation4] sm:$0xff]
      %v5463 = vld [vmem:[#allocation4 + $0x8] sm:$0xff]
      %v5464 = vld [vmem:[#allocation4 + $0x18] sm:$0xff]
      %v5465 = vld [vmem:[#allocation4 + $0x20] sm:$0xff]
      %5470 = vrot.lane.b32.xlu0 %v5462, 127
      %v5471 = vpop.permute.xlu0 %5470
      %5472 = vrot.lane.b32.xlu0 %v5463, 127
      %v5473 = vpop.permute.xlu0 %5472
      %5474 = vrot.lane.b32.xlu0 %v5464, 127
      %v5475 = vpop.permute.xlu0 %5474
      %5476 = vrot.lane.b32.xlu0 %v5465, 127
      %v5477 = vpop.permute.xlu0 %5476
      %v5482 = vcombine.high %v5471, 0.0
      %v5484 = vunpack.c.l.s4 1983009808
      %v5485 = vunpack.c.0.s8 %v5484
      %v5486 = vlaneseq
      %v5487 = vshrl.u32 %v5486, 7
      %v5488 = vsub.s32 %v5485, %v5487
      %v5489 = vrot.slane %v5471, %v5488
      %v5491 = vunpack.c.l.s4 1983009808
      %v5492 = vunpack.c.0.s8 %v5491
      %v5493 = vlaneseq
      %v5494 = vshrl.u32 %v5493, 7
      %v5495 = vsub.s32 %v5492, %v5494
      %v5496 = vrot.slane %v5482, %v5495
      %v5497 = vcombine.high %v5475, 0.0
      %v5499 = vunpack.c.l.s4 1983009808
      %v5500 = vunpack.c.0.s8 %v5499
      %v5501 = vlaneseq
      %v5502 = vshrl.u32 %v5501, 7
      %v5503 = vsub.s32 %v5500, %v5502
      %v5504 = vrot.slane %v5475, %v5503
      %v5506 = vunpack.c.l.s4 1983009808
      %v5507 = vunpack.c.0.s8 %v5506
      %v5508 = vlaneseq
      %v5509 = vshrl.u32 %v5508, 7
      %v5510 = vsub.s32 %v5507, %v5509
      %v5511 = vrot.slane %v5497, %v5510
      %v5512 = vcombine.low %v5489, %v5504
      %v5513 = vcombine.high %v5489, %v5504
      %v5515 = vunpack.c.l.s4 1934713408
      %v5516 = vunpack.c.0.s8 %v5515
      %v5517 = vlaneseq
      %v5518 = vshrl.u32 %v5517, 7
      %v5519 = vsub.s32 %v5516, %v5518
      %v5520 = vrot.slane %v5512, %v5519
      %v5522 = vunpack.c.l.s4 1934713408
      %v5523 = vunpack.c.0.s8 %v5522
      %v5524 = vlaneseq
      %v5525 = vshrl.u32 %v5524, 7
      %v5526 = vsub.s32 %v5523, %v5525
      %v5527 = vrot.slane %v5513, %v5526
      %v5528 = vcombine.low %v5496, %v5511
      %v5529 = vcombine.high %v5496, %v5511
      %v5531 = vunpack.c.l.s4 1934713408
      %v5532 = vunpack.c.0.s8 %v5531
      %v5533 = vlaneseq
      %v5534 = vshrl.u32 %v5533, 7
      %v5535 = vsub.s32 %v5532, %v5534
      %v5536 = vrot.slane %v5528, %v5535
      %v5538 = vunpack.c.l.s4 1934713408
      %v5539 = vunpack.c.0.s8 %v5538
      %v5540 = vlaneseq
      %v5541 = vshrl.u32 %v5540, 7
      %v5542 = vsub.s32 %v5539, %v5541
      %v5543 = vrot.slane %v5529, %v5542
      %v5544 = vcombine.high %v5520, 0.0
      %v5545 = vcombine.high %v5527, 0.0
      %v5546 = vcombine.high %v5536, 0.0
      %v5547 = vcombine.high %v5543, 0.0
      %v5548 = vcombine.high %v5473, 0.0
      %v5550 = vunpack.c.l.s4 1983009808
      %v5551 = vunpack.c.0.s8 %v5550
      %v5552 = vlaneseq
      %v5553 = vshrl.u32 %v5552, 7
      %v5554 = vsub.s32 %v5551, %v5553
      %v5555 = vrot.slane %v5473, %v5554
      %v5557 = vunpack.c.l.s4 1983009808
      %v5558 = vunpack.c.0.s8 %v5557
      %v5559 = vlaneseq
      %v5560 = vshrl.u32 %v5559, 7
      %v5561 = vsub.s32 %v5558, %v5560
      %v5562 = vrot.slane %v5548, %v5561
      %v5563 = vcombine.high %v5477, 0.0
      %v5565 = vunpack.c.l.s4 1983009808
      %v5566 = vunpack.c.0.s8 %v5565
      %v5567 = vlaneseq
      %v5568 = vshrl.u32 %v5567, 7
      %v5569 = vsub.s32 %v5566, %v5568
      %v5570 = vrot.slane %v5477, %v5569
      %v5572 = vunpack.c.l.s4 1983009808
      %v5573 = vunpack.c.0.s8 %v5572
      %v5574 = vlaneseq
      %v5575 = vshrl.u32 %v5574, 7
      %v5576 = vsub.s32 %v5573, %v5575
      %v5577 = vrot.slane %v5563, %v5576
      %v5578 = vcombine.low %v5555, %v5570
      %v5579 = vcombine.high %v5555, %v5570
      %v5581 = vunpack.c.l.s4 1934713408
      %v5582 = vunpack.c.0.s8 %v5581
      %v5583 = vlaneseq
      %v5584 = vshrl.u32 %v5583, 7
      %v5585 = vsub.s32 %v5582, %v5584
      %v5586 = vrot.slane %v5578, %v5585
      %v5588 = vunpack.c.l.s4 1934713408
      %v5589 = vunpack.c.0.s8 %v5588
      %v5590 = vlaneseq
      %v5591 = vshrl.u32 %v5590, 7
      %v5592 = vsub.s32 %v5589, %v5591
      %v5593 = vrot.slane %v5579, %v5592
      %v5594 = vcombine.low %v5562, %v5577
      %v5595 = vcombine.high %v5562, %v5577
      %v5597 = vunpack.c.l.s4 1934713408
      %v5598 = vunpack.c.0.s8 %v5597
      %v5599 = vlaneseq
      %v5600 = vshrl.u32 %v5599, 7
      %v5601 = vsub.s32 %v5598, %v5600
      %v5602 = vrot.slane %v5594, %v5601
      %v5604 = vunpack.c.l.s4 1934713408
      %v5605 = vunpack.c.0.s8 %v5604
      %v5606 = vlaneseq
      %v5607 = vshrl.u32 %v5606, 7
      %v5608 = vsub.s32 %v5605, %v5607
      %v5609 = vrot.slane %v5595, %v5608
      %v5610 = vcombine.high %v5586, 0.0
      %v5611 = vcombine.high %v5593, 0.0
      %v5612 = vcombine.high %v5602, 0.0
      %v5613 = vcombine.high %v5609, 0.0
      %5615 = vrot.lane.b32.xlu0 %v5544, 16
      %v5616 = vpop.permute.xlu0 %5615
      %5619 = vrot.lane.b32.xlu0 %v5527, 32
      %v5620 = vpop.permute.xlu0 %5619
      %5623 = vrot.lane.b32.xlu0 %v5545, 48
      %v5624 = vpop.permute.xlu0 %5623
      %5627 = vrot.lane.b32.xlu0 %v5536, 64
      %v5628 = vpop.permute.xlu0 %5627
      %5631 = vrot.lane.b32.xlu0 %v5546, 80
      %v5632 = vpop.permute.xlu0 %5631
      %5635 = vrot.lane.b32.xlu0 %v5543, 96
      %v5636 = vpop.permute.xlu0 %5635
      %5639 = vrot.lane.b32.xlu0 %v5547, 112
      %v5640 = vpop.permute.xlu0 %5639
      %5643 = vrot.lane.b32.xlu0 %v5610, 16
      %v5644 = vpop.permute.xlu0 %5643
      %5647 = vrot.lane.b32.xlu0 %v5593, 32
      %v5648 = vpop.permute.xlu0 %5647
      %5651 = vrot.lane.b32.xlu0 %v5611, 48
      %v5652 = vpop.permute.xlu0 %5651
      %5655 = vrot.lane.b32.xlu0 %v5602, 64
      %v5656 = vpop.permute.xlu0 %5655
      %5659 = vrot.lane.b32.xlu0 %v5612, 80
      %v5660 = vpop.permute.xlu0 %5659
      %5663 = vrot.lane.b32.xlu0 %v5609, 96
      %v5664 = vpop.permute.xlu0 %5663
      %5667 = vrot.lane.b32.xlu0 %v5613, 112
      %v5668 = vpop.permute.xlu0 %5667
      %v5670 = vsel %vm725, %v5520, %v5616
      %v5671 = vsel %vm727, %v5670, %v5620
      %v5672 = vsel %vm729, %v5671, %v5624
      %v5673 = vsel %vm731, %v5672, %v5628
      %v5674 = vsel %vm733, %v5673, %v5632
      %v5675 = vsel %vm735, %v5674, %v5636
      %v5676 = vsel %vm737, %v5675, %v5640
      %v5677 = vsel %vm725, %v5586, %v5644
      %v5678 = vsel %vm727, %v5677, %v5648
      %v5679 = vsel %vm729, %v5678, %v5652
      %v5680 = vsel %vm731, %v5679, %v5656
      %v5681 = vsel %vm733, %v5680, %v5660
      %v5682 = vsel %vm735, %v5681, %v5664
      %v5683 = vsel %vm737, %v5682, %v5668
      %5684 = vst [vmem:[#allocation5 + $0x70] sm:$0x3] %v5676
      %5685 = vst [vmem:[#allocation5 + $0x78] sm:$0x3] %v5683
      %v5686 = vld [vmem:[#allocation4] sm:$0xff]
      %v5687 = vld [vmem:[#allocation4 + $0x8] sm:$0xff]
      %v5688 = vld [vmem:[#allocation4 + $0x18] sm:$0xff]
      %v5689 = vld [vmem:[#allocation4 + $0x20] sm:$0xff]
      %5694 = vrot.lane.b32.xlu0 %v5686, 126
      %v5695 = vpop.permute.xlu0 %5694
      %5696 = vrot.lane.b32.xlu0 %v5687, 126
      %v5697 = vpop.permute.xlu0 %5696
      %5698 = vrot.lane.b32.xlu0 %v5688, 126
      %v5699 = vpop.permute.xlu0 %5698
      %5700 = vrot.lane.b32.xlu0 %v5689, 126
      %v5701 = vpop.permute.xlu0 %5700
      %v5706 = vcombine.high %v5695, 0.0
      %v5708 = vunpack.c.l.s4 1983009808
      %v5709 = vunpack.c.0.s8 %v5708
      %v5710 = vlaneseq
      %v5711 = vshrl.u32 %v5710, 7
      %v5712 = vsub.s32 %v5709, %v5711
      %v5713 = vrot.slane %v5695, %v5712
      %v5715 = vunpack.c.l.s4 1983009808
      %v5716 = vunpack.c.0.s8 %v5715
      %v5717 = vlaneseq
      %v5718 = vshrl.u32 %v5717, 7
      %v5719 = vsub.s32 %v5716, %v5718
      %v5720 = vrot.slane %v5706, %v5719
      %v5721 = vcombine.high %v5699, 0.0
      %v5723 = vunpack.c.l.s4 1983009808
      %v5724 = vunpack.c.0.s8 %v5723
      %v5725 = vlaneseq
      %v5726 = vshrl.u32 %v5725, 7
      %v5727 = vsub.s32 %v5724, %v5726
      %v5728 = vrot.slane %v5699, %v5727
      %v5730 = vunpack.c.l.s4 1983009808
      %v5731 = vunpack.c.0.s8 %v5730
      %v5732 = vlaneseq
      %v5733 = vshrl.u32 %v5732, 7
      %v5734 = vsub.s32 %v5731, %v5733
      %v5735 = vrot.slane %v5721, %v5734
      %v5736 = vcombine.low %v5713, %v5728
      %v5737 = vcombine.high %v5713, %v5728
      %v5739 = vunpack.c.l.s4 1934713408
      %v5740 = vunpack.c.0.s8 %v5739
      %v5741 = vlaneseq
      %v5742 = vshrl.u32 %v5741, 7
      %v5743 = vsub.s32 %v5740, %v5742
      %v5744 = vrot.slane %v5736, %v5743
      %v5746 = vunpack.c.l.s4 1934713408
      %v5747 = vunpack.c.0.s8 %v5746
      %v5748 = vlaneseq
      %v5749 = vshrl.u32 %v5748, 7
      %v5750 = vsub.s32 %v5747, %v5749
      %v5751 = vrot.slane %v5737, %v5750
      %v5752 = vcombine.low %v5720, %v5735
      %v5753 = vcombine.high %v5720, %v5735
      %v5755 = vunpack.c.l.s4 1934713408
      %v5756 = vunpack.c.0.s8 %v5755
      %v5757 = vlaneseq
      %v5758 = vshrl.u32 %v5757, 7
      %v5759 = vsub.s32 %v5756, %v5758
      %v5760 = vrot.slane %v5752, %v5759
      %v5762 = vunpack.c.l.s4 1934713408
      %v5763 = vunpack.c.0.s8 %v5762
      %v5764 = vlaneseq
      %v5765 = vshrl.u32 %v5764, 7
      %v5766 = vsub.s32 %v5763, %v5765
      %v5767 = vrot.slane %v5753, %v5766
      %v5768 = vcombine.high %v5744, 0.0
      %v5769 = vcombine.high %v5751, 0.0
      %v5770 = vcombine.high %v5760, 0.0
      %v5771 = vcombine.high %v5767, 0.0
      %v5772 = vcombine.high %v5697, 0.0
      %v5774 = vunpack.c.l.s4 1983009808
      %v5775 = vunpack.c.0.s8 %v5774
      %v5776 = vlaneseq
      %v5777 = vshrl.u32 %v5776, 7
      %v5778 = vsub.s32 %v5775, %v5777
      %v5779 = vrot.slane %v5697, %v5778
      %v5781 = vunpack.c.l.s4 1983009808
      %v5782 = vunpack.c.0.s8 %v5781
      %v5783 = vlaneseq
      %v5784 = vshrl.u32 %v5783, 7
      %v5785 = vsub.s32 %v5782, %v5784
      %v5786 = vrot.slane %v5772, %v5785
      %v5787 = vcombine.high %v5701, 0.0
      %v5789 = vunpack.c.l.s4 1983009808
      %v5790 = vunpack.c.0.s8 %v5789
      %v5791 = vlaneseq
      %v5792 = vshrl.u32 %v5791, 7
      %v5793 = vsub.s32 %v5790, %v5792
      %v5794 = vrot.slane %v5701, %v5793
      %v5796 = vunpack.c.l.s4 1983009808
      %v5797 = vunpack.c.0.s8 %v5796
      %v5798 = vlaneseq
      %v5799 = vshrl.u32 %v5798, 7
      %v5800 = vsub.s32 %v5797, %v5799
      %v5801 = vrot.slane %v5787, %v5800
      %v5802 = vcombine.low %v5779, %v5794
      %v5803 = vcombine.high %v5779, %v5794
      %v5805 = vunpack.c.l.s4 1934713408
      %v5806 = vunpack.c.0.s8 %v5805
      %v5807 = vlaneseq
      %v5808 = vshrl.u32 %v5807, 7
      %v5809 = vsub.s32 %v5806, %v5808
      %v5810 = vrot.slane %v5802, %v5809
      %v5812 = vunpack.c.l.s4 1934713408
      %v5813 = vunpack.c.0.s8 %v5812
      %v5814 = vlaneseq
      %v5815 = vshrl.u32 %v5814, 7
      %v5816 = vsub.s32 %v5813, %v5815
      %v5817 = vrot.slane %v5803, %v5816
      %v5818 = vcombine.low %v5786, %v5801
      %v5819 = vcombine.high %v5786, %v5801
      %v5821 = vunpack.c.l.s4 1934713408
      %v5822 = vunpack.c.0.s8 %v5821
      %v5823 = vlaneseq
      %v5824 = vshrl.u32 %v5823, 7
      %v5825 = vsub.s32 %v5822, %v5824
      %v5826 = vrot.slane %v5818, %v5825
      %v5828 = vunpack.c.l.s4 1934713408
      %v5829 = vunpack.c.0.s8 %v5828
      %v5830 = vlaneseq
      %v5831 = vshrl.u32 %v5830, 7
      %v5832 = vsub.s32 %v5829, %v5831
      %v5833 = vrot.slane %v5819, %v5832
      %v5834 = vcombine.high %v5810, 0.0
      %v5835 = vcombine.high %v5817, 0.0
      %v5836 = vcombine.high %v5826, 0.0
      %v5837 = vcombine.high %v5833, 0.0
      %5839 = vrot.lane.b32.xlu0 %v5768, 16
      %v5840 = vpop.permute.xlu0 %5839
      %5843 = vrot.lane.b32.xlu0 %v5751, 32
      %v5844 = vpop.permute.xlu0 %5843
      %5847 = vrot.lane.b32.xlu0 %v5769, 48
      %v5848 = vpop.permute.xlu0 %5847
      %5851 = vrot.lane.b32.xlu0 %v5760, 64
      %v5852 = vpop.permute.xlu0 %5851
      %5855 = vrot.lane.b32.xlu0 %v5770, 80
      %v5856 = vpop.permute.xlu0 %5855
      %5859 = vrot.lane.b32.xlu0 %v5767, 96
      %v5860 = vpop.permute.xlu0 %5859
      %5863 = vrot.lane.b32.xlu0 %v5771, 112
      %v5864 = vpop.permute.xlu0 %5863
      %5867 = vrot.lane.b32.xlu0 %v5834, 16
      %v5868 = vpop.permute.xlu0 %5867
      %5871 = vrot.lane.b32.xlu0 %v5817, 32
      %v5872 = vpop.permute.xlu0 %5871
      %5875 = vrot.lane.b32.xlu0 %v5835, 48
      %v5876 = vpop.permute.xlu0 %5875
      %5879 = vrot.lane.b32.xlu0 %v5826, 64
      %v5880 = vpop.permute.xlu0 %5879
      %5883 = vrot.lane.b32.xlu0 %v5836, 80
      %v5884 = vpop.permute.xlu0 %5883
      %5887 = vrot.lane.b32.xlu0 %v5833, 96
      %v5888 = vpop.permute.xlu0 %5887
      %5891 = vrot.lane.b32.xlu0 %v5837, 112
      %v5892 = vpop.permute.xlu0 %5891
      %v5894 = vsel %vm725, %v5744, %v5840
      %v5895 = vsel %vm727, %v5894, %v5844
      %v5896 = vsel %vm729, %v5895, %v5848
      %v5897 = vsel %vm731, %v5896, %v5852
      %v5898 = vsel %vm733, %v5897, %v5856
      %v5899 = vsel %vm735, %v5898, %v5860
      %v5900 = vsel %vm737, %v5899, %v5864
      %v5901 = vsel %vm725, %v5810, %v5868
      %v5902 = vsel %vm727, %v5901, %v5872
      %v5903 = vsel %vm729, %v5902, %v5876
      %v5904 = vsel %vm731, %v5903, %v5880
      %v5905 = vsel %vm733, %v5904, %v5884
      %v5906 = vsel %vm735, %v5905, %v5888
      %v5907 = vsel %vm737, %v5906, %v5892
      %v5910 = vrot.slane %v5900, 6
      %v5911 = vrot.slane %v5907, 6
      %5914 = vst [vmem:[#allocation5 + $0x70] sm:$0xc] %v5910
      %5915 = vst [vmem:[#allocation5 + $0x78] sm:$0xc] %v5911
      %v5916 = vld [vmem:[#allocation4 + $0x1] sm:$0xff]
      %v5917 = vld [vmem:[#allocation4 + $0x9] sm:$0xff]
      %v5918 = vld [vmem:[#allocation4 + $0x19] sm:$0xff]
      %v5919 = vld [vmem:[#allocation4 + $0x21] sm:$0xff]
      %v5920 = vcombine.high %v5916, 0.0
      %v5922 = vunpack.c.l.s4 1983009808
      %v5923 = vunpack.c.0.s8 %v5922
      %v5924 = vlaneseq
      %v5925 = vshrl.u32 %v5924, 7
      %v5926 = vsub.s32 %v5923, %v5925
      %v5927 = vrot.slane %v5916, %v5926
      %v5929 = vunpack.c.l.s4 1983009808
      %v5930 = vunpack.c.0.s8 %v5929
      %v5931 = vlaneseq
      %v5932 = vshrl.u32 %v5931, 7
      %v5933 = vsub.s32 %v5930, %v5932
      %v5934 = vrot.slane %v5920, %v5933
      %v5935 = vcombine.high %v5918, 0.0
      %v5937 = vunpack.c.l.s4 1983009808
      %v5938 = vunpack.c.0.s8 %v5937
      %v5939 = vlaneseq
      %v5940 = vshrl.u32 %v5939, 7
      %v5941 = vsub.s32 %v5938, %v5940
      %v5942 = vrot.slane %v5918, %v5941
      %v5944 = vunpack.c.l.s4 1983009808
      %v5945 = vunpack.c.0.s8 %v5944
      %v5946 = vlaneseq
      %v5947 = vshrl.u32 %v5946, 7
      %v5948 = vsub.s32 %v5945, %v5947
      %v5949 = vrot.slane %v5935, %v5948
      %v5950 = vcombine.low %v5927, %v5942
      %v5951 = vcombine.high %v5927, %v5942
      %v5953 = vunpack.c.l.s4 1934713408
      %v5954 = vunpack.c.0.s8 %v5953
      %v5955 = vlaneseq
      %v5956 = vshrl.u32 %v5955, 7
      %v5957 = vsub.s32 %v5954, %v5956
      %v5958 = vrot.slane %v5950, %v5957
      %v5960 = vunpack.c.l.s4 1934713408
      %v5961 = vunpack.c.0.s8 %v5960
      %v5962 = vlaneseq
      %v5963 = vshrl.u32 %v5962, 7
      %v5964 = vsub.s32 %v5961, %v5963
      %v5965 = vrot.slane %v5951, %v5964
      %v5966 = vcombine.low %v5934, %v5949
      %v5967 = vcombine.high %v5934, %v5949
      %v5969 = vunpack.c.l.s4 1934713408
      %v5970 = vunpack.c.0.s8 %v5969
      %v5971 = vlaneseq
      %v5972 = vshrl.u32 %v5971, 7
      %v5973 = vsub.s32 %v5970, %v5972
      %v5974 = vrot.slane %v5966, %v5973
      %v5976 = vunpack.c.l.s4 1934713408
      %v5977 = vunpack.c.0.s8 %v5976
      %v5978 = vlaneseq
      %v5979 = vshrl.u32 %v5978, 7
      %v5980 = vsub.s32 %v5977, %v5979
      %v5981 = vrot.slane %v5967, %v5980
      %v5982 = vcombine.high %v5958, 0.0
      %v5983 = vcombine.high %v5965, 0.0
      %v5984 = vcombine.high %v5974, 0.0
      %v5985 = vcombine.high %v5981, 0.0
      %v5986 = vcombine.high %v5917, 0.0
      %v5988 = vunpack.c.l.s4 1983009808
      %v5989 = vunpack.c.0.s8 %v5988
      %v5990 = vlaneseq
      %v5991 = vshrl.u32 %v5990, 7
      %v5992 = vsub.s32 %v5989, %v5991
      %v5993 = vrot.slane %v5917, %v5992
      %v5995 = vunpack.c.l.s4 1983009808
      %v5996 = vunpack.c.0.s8 %v5995
      %v5997 = vlaneseq
      %v5998 = vshrl.u32 %v5997, 7
      %v5999 = vsub.s32 %v5996, %v5998
      %v6000 = vrot.slane %v5986, %v5999
      %v6001 = vcombine.high %v5919, 0.0
      %v6003 = vunpack.c.l.s4 1983009808
      %v6004 = vunpack.c.0.s8 %v6003
      %v6005 = vlaneseq
      %v6006 = vshrl.u32 %v6005, 7
      %v6007 = vsub.s32 %v6004, %v6006
      %v6008 = vrot.slane %v5919, %v6007
      %v6010 = vunpack.c.l.s4 1983009808
      %v6011 = vunpack.c.0.s8 %v6010
      %v6012 = vlaneseq
      %v6013 = vshrl.u32 %v6012, 7
      %v6014 = vsub.s32 %v6011, %v6013
      %v6015 = vrot.slane %v6001, %v6014
      %v6016 = vcombine.low %v5993, %v6008
      %v6017 = vcombine.high %v5993, %v6008
      %v6019 = vunpack.c.l.s4 1934713408
      %v6020 = vunpack.c.0.s8 %v6019
      %v6021 = vlaneseq
      %v6022 = vshrl.u32 %v6021, 7
      %v6023 = vsub.s32 %v6020, %v6022
      %v6024 = vrot.slane %v6016, %v6023
      %v6026 = vunpack.c.l.s4 1934713408
      %v6027 = vunpack.c.0.s8 %v6026
      %v6028 = vlaneseq
      %v6029 = vshrl.u32 %v6028, 7
      %v6030 = vsub.s32 %v6027, %v6029
      %v6031 = vrot.slane %v6017, %v6030
      %v6032 = vcombine.low %v6000, %v6015
      %v6033 = vcombine.high %v6000, %v6015
      %v6035 = vunpack.c.l.s4 1934713408
      %v6036 = vunpack.c.0.s8 %v6035
      %v6037 = vlaneseq
      %v6038 = vshrl.u32 %v6037, 7
      %v6039 = vsub.s32 %v6036, %v6038
      %v6040 = vrot.slane %v6032, %v6039
      %v6042 = vunpack.c.l.s4 1934713408
      %v6043 = vunpack.c.0.s8 %v6042
      %v6044 = vlaneseq
      %v6045 = vshrl.u32 %v6044, 7
      %v6046 = vsub.s32 %v6043, %v6045
      %v6047 = vrot.slane %v6033, %v6046
      %v6048 = vcombine.high %v6024, 0.0
      %v6049 = vcombine.high %v6031, 0.0
      %v6050 = vcombine.high %v6040, 0.0
      %v6051 = vcombine.high %v6047, 0.0
      %6053 = vrot.lane.b32.xlu0 %v5982, 16
      %v6054 = vpop.permute.xlu0 %6053
      %6057 = vrot.lane.b32.xlu0 %v5965, 32
      %v6058 = vpop.permute.xlu0 %6057
      %6061 = vrot.lane.b32.xlu0 %v5983, 48
      %v6062 = vpop.permute.xlu0 %6061
      %6065 = vrot.lane.b32.xlu0 %v5974, 64
      %v6066 = vpop.permute.xlu0 %6065
      %6069 = vrot.lane.b32.xlu0 %v5984, 80
      %v6070 = vpop.permute.xlu0 %6069
      %6073 = vrot.lane.b32.xlu0 %v5981, 96
      %v6074 = vpop.permute.xlu0 %6073
      %6077 = vrot.lane.b32.xlu0 %v5985, 112
      %v6078 = vpop.permute.xlu0 %6077
      %6081 = vrot.lane.b32.xlu0 %v6048, 16
      %v6082 = vpop.permute.xlu0 %6081
      %6085 = vrot.lane.b32.xlu0 %v6031, 32
      %v6086 = vpop.permute.xlu0 %6085
      %6089 = vrot.lane.b32.xlu0 %v6049, 48
      %v6090 = vpop.permute.xlu0 %6089
      %6093 = vrot.lane.b32.xlu0 %v6040, 64
      %v6094 = vpop.permute.xlu0 %6093
      %6097 = vrot.lane.b32.xlu0 %v6050, 80
      %v6098 = vpop.permute.xlu0 %6097
      %6101 = vrot.lane.b32.xlu0 %v6047, 96
      %v6102 = vpop.permute.xlu0 %6101
      %6105 = vrot.lane.b32.xlu0 %v6051, 112
      %v6106 = vpop.permute.xlu0 %6105
      %v6108 = vsel %vm725, %v5958, %v6054
      %v6109 = vsel %vm727, %v6108, %v6058
      %v6110 = vsel %vm729, %v6109, %v6062
      %v6111 = vsel %vm731, %v6110, %v6066
      %v6112 = vsel %vm733, %v6111, %v6070
      %v6113 = vsel %vm735, %v6112, %v6074
      %v6114 = vsel %vm737, %v6113, %v6078
      %v6115 = vsel %vm725, %v6024, %v6082
      %v6116 = vsel %vm727, %v6115, %v6086
      %v6117 = vsel %vm729, %v6116, %v6090
      %v6118 = vsel %vm731, %v6117, %v6094
      %v6119 = vsel %vm733, %v6118, %v6098
      %v6120 = vsel %vm735, %v6119, %v6102
      %v6121 = vsel %vm737, %v6120, %v6106
      %v6124 = vrot.slane %v6114, 4
      %v6125 = vrot.slane %v6121, 4
      %6128 = vst [vmem:[#allocation5 + $0x70] sm:$0x30] %v6124
      %6129 = vst [vmem:[#allocation5 + $0x78] sm:$0x30] %v6125
      %v6130 = vld [vmem:[#allocation4 + $0x1] sm:$0xff]
      %v6131 = vld [vmem:[#allocation4 + $0x9] sm:$0xff]
      %v6132 = vld [vmem:[#allocation4 + $0x19] sm:$0xff]
      %v6133 = vld [vmem:[#allocation4 + $0x21] sm:$0xff]
      %6138 = vrot.lane.b32.xlu0 %v6130, 127
      %v6139 = vpop.permute.xlu0 %6138
      %6140 = vrot.lane.b32.xlu0 %v6131, 127
      %v6141 = vpop.permute.xlu0 %6140
      %6142 = vrot.lane.b32.xlu0 %v6132, 127
      %v6143 = vpop.permute.xlu0 %6142
      %6144 = vrot.lane.b32.xlu0 %v6133, 127
      %v6145 = vpop.permute.xlu0 %6144
      %v6150 = vcombine.high %v6139, 0.0
      %v6152 = vunpack.c.l.s4 1983009808
      %v6153 = vunpack.c.0.s8 %v6152
      %v6154 = vlaneseq
      %v6155 = vshrl.u32 %v6154, 7
      %v6156 = vsub.s32 %v6153, %v6155
      %v6157 = vrot.slane %v6139, %v6156
      %v6159 = vunpack.c.l.s4 1983009808
      %v6160 = vunpack.c.0.s8 %v6159
      %v6161 = vlaneseq
      %v6162 = vshrl.u32 %v6161, 7
      %v6163 = vsub.s32 %v6160, %v6162
      %v6164 = vrot.slane %v6150, %v6163
      %v6165 = vcombine.high %v6143, 0.0
      %v6167 = vunpack.c.l.s4 1983009808
      %v6168 = vunpack.c.0.s8 %v6167
      %v6169 = vlaneseq
      %v6170 = vshrl.u32 %v6169, 7
      %v6171 = vsub.s32 %v6168, %v6170
      %v6172 = vrot.slane %v6143, %v6171
      %v6174 = vunpack.c.l.s4 1983009808
      %v6175 = vunpack.c.0.s8 %v6174
      %v6176 = vlaneseq
      %v6177 = vshrl.u32 %v6176, 7
      %v6178 = vsub.s32 %v6175, %v6177
      %v6179 = vrot.slane %v6165, %v6178
      %v6180 = vcombine.low %v6157, %v6172
      %v6181 = vcombine.high %v6157, %v6172
      %v6183 = vunpack.c.l.s4 1934713408
      %v6184 = vunpack.c.0.s8 %v6183
      %v6185 = vlaneseq
      %v6186 = vshrl.u32 %v6185, 7
      %v6187 = vsub.s32 %v6184, %v6186
      %v6188 = vrot.slane %v6180, %v6187
      %v6190 = vunpack.c.l.s4 1934713408
      %v6191 = vunpack.c.0.s8 %v6190
      %v6192 = vlaneseq
      %v6193 = vshrl.u32 %v6192, 7
      %v6194 = vsub.s32 %v6191, %v6193
      %v6195 = vrot.slane %v6181, %v6194
      %v6196 = vcombine.low %v6164, %v6179
      %v6197 = vcombine.high %v6164, %v6179
      %v6199 = vunpack.c.l.s4 1934713408
      %v6200 = vunpack.c.0.s8 %v6199
      %v6201 = vlaneseq
      %v6202 = vshrl.u32 %v6201, 7
      %v6203 = vsub.s32 %v6200, %v6202
      %v6204 = vrot.slane %v6196, %v6203
      %v6206 = vunpack.c.l.s4 1934713408
      %v6207 = vunpack.c.0.s8 %v6206
      %v6208 = vlaneseq
      %v6209 = vshrl.u32 %v6208, 7
      %v6210 = vsub.s32 %v6207, %v6209
      %v6211 = vrot.slane %v6197, %v6210
      %v6212 = vcombine.high %v6188, 0.0
      %v6213 = vcombine.high %v6195, 0.0
      %v6214 = vcombine.high %v6204, 0.0
      %v6215 = vcombine.high %v6211, 0.0
      %v6216 = vcombine.high %v6141, 0.0
      %v6218 = vunpack.c.l.s4 1983009808
      %v6219 = vunpack.c.0.s8 %v6218
      %v6220 = vlaneseq
      %v6221 = vshrl.u32 %v6220, 7
      %v6222 = vsub.s32 %v6219, %v6221
      %v6223 = vrot.slane %v6141, %v6222
      %v6225 = vunpack.c.l.s4 1983009808
      %v6226 = vunpack.c.0.s8 %v6225
      %v6227 = vlaneseq
      %v6228 = vshrl.u32 %v6227, 7
      %v6229 = vsub.s32 %v6226, %v6228
      %v6230 = vrot.slane %v6216, %v6229
      %v6231 = vcombine.high %v6145, 0.0
      %v6233 = vunpack.c.l.s4 1983009808
      %v6234 = vunpack.c.0.s8 %v6233
      %v6235 = vlaneseq
      %v6236 = vshrl.u32 %v6235, 7
      %v6237 = vsub.s32 %v6234, %v6236
      %v6238 = vrot.slane %v6145, %v6237
      %v6240 = vunpack.c.l.s4 1983009808
      %v6241 = vunpack.c.0.s8 %v6240
      %v6242 = vlaneseq
      %v6243 = vshrl.u32 %v6242, 7
      %v6244 = vsub.s32 %v6241, %v6243
      %v6245 = vrot.slane %v6231, %v6244
      %v6246 = vcombine.low %v6223, %v6238
      %v6247 = vcombine.high %v6223, %v6238
      %v6249 = vunpack.c.l.s4 1934713408
      %v6250 = vunpack.c.0.s8 %v6249
      %v6251 = vlaneseq
      %v6252 = vshrl.u32 %v6251, 7
      %v6253 = vsub.s32 %v6250, %v6252
      %v6254 = vrot.slane %v6246, %v6253
      %v6256 = vunpack.c.l.s4 1934713408
      %v6257 = vunpack.c.0.s8 %v6256
      %v6258 = vlaneseq
      %v6259 = vshrl.u32 %v6258, 7
      %v6260 = vsub.s32 %v6257, %v6259
      %v6261 = vrot.slane %v6247, %v6260
      %v6262 = vcombine.low %v6230, %v6245
      %v6263 = vcombine.high %v6230, %v6245
      %v6265 = vunpack.c.l.s4 1934713408
      %v6266 = vunpack.c.0.s8 %v6265
      %v6267 = vlaneseq
      %v6268 = vshrl.u32 %v6267, 7
      %v6269 = vsub.s32 %v6266, %v6268
      %v6270 = vrot.slane %v6262, %v6269
      %v6272 = vunpack.c.l.s4 1934713408
      %v6273 = vunpack.c.0.s8 %v6272
      %v6274 = vlaneseq
      %v6275 = vshrl.u32 %v6274, 7
      %v6276 = vsub.s32 %v6273, %v6275
      %v6277 = vrot.slane %v6263, %v6276
      %v6278 = vcombine.high %v6254, 0.0
      %v6279 = vcombine.high %v6261, 0.0
      %v6280 = vcombine.high %v6270, 0.0
      %v6281 = vcombine.high %v6277, 0.0
      %6283 = vrot.lane.b32.xlu0 %v6212, 16
      %v6284 = vpop.permute.xlu0 %6283
      %6287 = vrot.lane.b32.xlu0 %v6195, 32
      %v6288 = vpop.permute.xlu0 %6287
      %6291 = vrot.lane.b32.xlu0 %v6213, 48
      %v6292 = vpop.permute.xlu0 %6291
      %6295 = vrot.lane.b32.xlu0 %v6204, 64
      %v6296 = vpop.permute.xlu0 %6295
      %6299 = vrot.lane.b32.xlu0 %v6214, 80
      %v6300 = vpop.permute.xlu0 %6299
      %6303 = vrot.lane.b32.xlu0 %v6211, 96
      %v6304 = vpop.permute.xlu0 %6303
      %6307 = vrot.lane.b32.xlu0 %v6215, 112
      %v6308 = vpop.permute.xlu0 %6307
      %6311 = vrot.lane.b32.xlu0 %v6278, 16
      %v6312 = vpop.permute.xlu0 %6311
      %6315 = vrot.lane.b32.xlu0 %v6261, 32
      %v6316 = vpop.permute.xlu0 %6315
      %6319 = vrot.lane.b32.xlu0 %v6279, 48
      %v6320 = vpop.permute.xlu0 %6319
      %6323 = vrot.lane.b32.xlu0 %v6270, 64
      %v6324 = vpop.permute.xlu0 %6323
      %6327 = vrot.lane.b32.xlu0 %v6280, 80
      %v6328 = vpop.permute.xlu0 %6327
      %6331 = vrot.lane.b32.xlu0 %v6277, 96
      %v6332 = vpop.permute.xlu0 %6331
      %6335 = vrot.lane.b32.xlu0 %v6281, 112
      %v6336 = vpop.permute.xlu0 %6335
      %v6338 = vsel %vm725, %v6188, %v6284
      %v6339 = vsel %vm727, %v6338, %v6288
      %v6340 = vsel %vm729, %v6339, %v6292
      %v6341 = vsel %vm731, %v6340, %v6296
      %v6342 = vsel %vm733, %v6341, %v6300
      %v6343 = vsel %vm735, %v6342, %v6304
      %v6344 = vsel %vm737, %v6343, %v6308
      %v6345 = vsel %vm725, %v6254, %v6312
      %v6346 = vsel %vm727, %v6345, %v6316
      %v6347 = vsel %vm729, %v6346, %v6320
      %v6348 = vsel %vm731, %v6347, %v6324
      %v6349 = vsel %vm733, %v6348, %v6328
      %v6350 = vsel %vm735, %v6349, %v6332
      %v6351 = vsel %vm737, %v6350, %v6336
      %v6354 = vrot.slane %v6344, 2
      %v6355 = vrot.slane %v6351, 2
      %6358 = vst [vmem:[#allocation5 + $0x70] sm:$0xc0] %v6354
      %6359 = vst [vmem:[#allocation5 + $0x78] sm:$0xc0] %v6355
      %v6360 = vld [vmem:[#allocation4 + $0x1] sm:$0xff]
      %v6361 = vld [vmem:[#allocation4 + $0x9] sm:$0xff]
      %v6362 = vld [vmem:[#allocation4 + $0x19] sm:$0xff]
      %v6363 = vld [vmem:[#allocation4 + $0x21] sm:$0xff]
      %6368 = vrot.lane.b32.xlu0 %v6360, 126
      %v6369 = vpop.permute.xlu0 %6368
      %6370 = vrot.lane.b32.xlu0 %v6361, 126
      %v6371 = vpop.permute.xlu0 %6370
      %6372 = vrot.lane.b32.xlu0 %v6362, 126
      %v6373 = vpop.permute.xlu0 %6372
      %6374 = vrot.lane.b32.xlu0 %v6363, 126
      %v6375 = vpop.permute.xlu0 %6374
      %v6380 = vcombine.high %v6369, 0.0
      %v6382 = vunpack.c.l.s4 1983009808
      %v6383 = vunpack.c.0.s8 %v6382
      %v6384 = vlaneseq
      %v6385 = vshrl.u32 %v6384, 7
      %v6386 = vsub.s32 %v6383, %v6385
      %v6387 = vrot.slane %v6369, %v6386
      %v6389 = vunpack.c.l.s4 1983009808
      %v6390 = vunpack.c.0.s8 %v6389
      %v6391 = vlaneseq
      %v6392 = vshrl.u32 %v6391, 7
      %v6393 = vsub.s32 %v6390, %v6392
      %v6394 = vrot.slane %v6380, %v6393
      %v6395 = vcombine.high %v6373, 0.0
      %v6397 = vunpack.c.l.s4 1983009808
      %v6398 = vunpack.c.0.s8 %v6397
      %v6399 = vlaneseq
      %v6400 = vshrl.u32 %v6399, 7
      %v6401 = vsub.s32 %v6398, %v6400
      %v6402 = vrot.slane %v6373, %v6401
      %v6404 = vunpack.c.l.s4 1983009808
      %v6405 = vunpack.c.0.s8 %v6404
      %v6406 = vlaneseq
      %v6407 = vshrl.u32 %v6406, 7
      %v6408 = vsub.s32 %v6405, %v6407
      %v6409 = vrot.slane %v6395, %v6408
      %v6410 = vcombine.low %v6387, %v6402
      %v6411 = vcombine.high %v6387, %v6402
      %v6413 = vunpack.c.l.s4 1934713408
      %v6414 = vunpack.c.0.s8 %v6413
      %v6415 = vlaneseq
      %v6416 = vshrl.u32 %v6415, 7
      %v6417 = vsub.s32 %v6414, %v6416
      %v6418 = vrot.slane %v6410, %v6417
      %v6420 = vunpack.c.l.s4 1934713408
      %v6421 = vunpack.c.0.s8 %v6420
      %v6422 = vlaneseq
      %v6423 = vshrl.u32 %v6422, 7
      %v6424 = vsub.s32 %v6421, %v6423
      %v6425 = vrot.slane %v6411, %v6424
      %v6426 = vcombine.low %v6394, %v6409
      %v6427 = vcombine.high %v6394, %v6409
      %v6429 = vunpack.c.l.s4 1934713408
      %v6430 = vunpack.c.0.s8 %v6429
      %v6431 = vlaneseq
      %v6432 = vshrl.u32 %v6431, 7
      %v6433 = vsub.s32 %v6430, %v6432
      %v6434 = vrot.slane %v6426, %v6433
      %v6436 = vunpack.c.l.s4 1934713408
      %v6437 = vunpack.c.0.s8 %v6436
      %v6438 = vlaneseq
      %v6439 = vshrl.u32 %v6438, 7
      %v6440 = vsub.s32 %v6437, %v6439
      %v6441 = vrot.slane %v6427, %v6440
      %v6442 = vcombine.high %v6418, 0.0
      %v6443 = vcombine.high %v6425, 0.0
      %v6444 = vcombine.high %v6434, 0.0
      %v6445 = vcombine.high %v6441, 0.0
      %v6446 = vcombine.high %v6371, 0.0
      %v6448 = vunpack.c.l.s4 1983009808
      %v6449 = vunpack.c.0.s8 %v6448
      %v6450 = vlaneseq
      %v6451 = vshrl.u32 %v6450, 7
      %v6452 = vsub.s32 %v6449, %v6451
      %v6453 = vrot.slane %v6371, %v6452
      %v6455 = vunpack.c.l.s4 1983009808
      %v6456 = vunpack.c.0.s8 %v6455
      %v6457 = vlaneseq
      %v6458 = vshrl.u32 %v6457, 7
      %v6459 = vsub.s32 %v6456, %v6458
      %v6460 = vrot.slane %v6446, %v6459
      %v6461 = vcombine.high %v6375, 0.0
      %v6463 = vunpack.c.l.s4 1983009808
      %v6464 = vunpack.c.0.s8 %v6463
      %v6465 = vlaneseq
      %v6466 = vshrl.u32 %v6465, 7
      %v6467 = vsub.s32 %v6464, %v6466
      %v6468 = vrot.slane %v6375, %v6467
      %v6470 = vunpack.c.l.s4 1983009808
      %v6471 = vunpack.c.0.s8 %v6470
      %v6472 = vlaneseq
      %v6473 = vshrl.u32 %v6472, 7
      %v6474 = vsub.s32 %v6471, %v6473
      %v6475 = vrot.slane %v6461, %v6474
      %v6476 = vcombine.low %v6453, %v6468
      %v6477 = vcombine.high %v6453, %v6468
      %v6479 = vunpack.c.l.s4 1934713408
      %v6480 = vunpack.c.0.s8 %v6479
      %v6481 = vlaneseq
      %v6482 = vshrl.u32 %v6481, 7
      %v6483 = vsub.s32 %v6480, %v6482
      %v6484 = vrot.slane %v6476, %v6483
      %v6486 = vunpack.c.l.s4 1934713408
      %v6487 = vunpack.c.0.s8 %v6486
      %v6488 = vlaneseq
      %v6489 = vshrl.u32 %v6488, 7
      %v6490 = vsub.s32 %v6487, %v6489
      %v6491 = vrot.slane %v6477, %v6490
      %v6492 = vcombine.low %v6460, %v6475
      %v6493 = vcombine.high %v6460, %v6475
      %v6495 = vunpack.c.l.s4 1934713408
      %v6496 = vunpack.c.0.s8 %v6495
      %v6497 = vlaneseq
      %v6498 = vshrl.u32 %v6497, 7
      %v6499 = vsub.s32 %v6496, %v6498
      %v6500 = vrot.slane %v6492, %v6499
      %v6502 = vunpack.c.l.s4 1934713408
      %v6503 = vunpack.c.0.s8 %v6502
      %v6504 = vlaneseq
      %v6505 = vshrl.u32 %v6504, 7
      %v6506 = vsub.s32 %v6503, %v6505
      %v6507 = vrot.slane %v6493, %v6506
      %v6508 = vcombine.high %v6484, 0.0
      %v6509 = vcombine.high %v6491, 0.0
      %v6510 = vcombine.high %v6500, 0.0
      %v6511 = vcombine.high %v6507, 0.0
      %6513 = vrot.lane.b32.xlu0 %v6442, 16
      %v6514 = vpop.permute.xlu0 %6513
      %6517 = vrot.lane.b32.xlu0 %v6425, 32
      %v6518 = vpop.permute.xlu0 %6517
      %6521 = vrot.lane.b32.xlu0 %v6443, 48
      %v6522 = vpop.permute.xlu0 %6521
      %6525 = vrot.lane.b32.xlu0 %v6434, 64
      %v6526 = vpop.permute.xlu0 %6525
      %6529 = vrot.lane.b32.xlu0 %v6444, 80
      %v6530 = vpop.permute.xlu0 %6529
      %6533 = vrot.lane.b32.xlu0 %v6441, 96
      %v6534 = vpop.permute.xlu0 %6533
      %6537 = vrot.lane.b32.xlu0 %v6445, 112
      %v6538 = vpop.permute.xlu0 %6537
      %6541 = vrot.lane.b32.xlu0 %v6508, 16
      %v6542 = vpop.permute.xlu0 %6541
      %6545 = vrot.lane.b32.xlu0 %v6491, 32
      %v6546 = vpop.permute.xlu0 %6545
      %6549 = vrot.lane.b32.xlu0 %v6509, 48
      %v6550 = vpop.permute.xlu0 %6549
      %6553 = vrot.lane.b32.xlu0 %v6500, 64
      %v6554 = vpop.permute.xlu0 %6553
      %6557 = vrot.lane.b32.xlu0 %v6510, 80
      %v6558 = vpop.permute.xlu0 %6557
      %6561 = vrot.lane.b32.xlu0 %v6507, 96
      %v6562 = vpop.permute.xlu0 %6561
      %6565 = vrot.lane.b32.xlu0 %v6511, 112
      %v6566 = vpop.permute.xlu0 %6565
      %v6568 = vsel %vm725, %v6418, %v6514
      %v6569 = vsel %vm727, %v6568, %v6518
      %v6570 = vsel %vm729, %v6569, %v6522
      %v6571 = vsel %vm731, %v6570, %v6526
      %v6572 = vsel %vm733, %v6571, %v6530
      %v6573 = vsel %vm735, %v6572, %v6534
      %v6574 = vsel %vm737, %v6573, %v6538
      %v6575 = vsel %vm725, %v6484, %v6542
      %v6576 = vsel %vm727, %v6575, %v6546
      %v6577 = vsel %vm729, %v6576, %v6550
      %v6578 = vsel %vm731, %v6577, %v6554
      %v6579 = vsel %vm733, %v6578, %v6558
      %v6580 = vsel %vm735, %v6579, %v6562
      %v6581 = vsel %vm737, %v6580, %v6566
      %6582 = vst [vmem:[#allocation5 + $0x80] sm:$0x3] %v6574
      %6583 = vst [vmem:[#allocation5 + $0x88] sm:$0x3] %v6581
      %v6584 = vld [vmem:[#allocation4 + $0x2] sm:$0xff]
      %v6585 = vld [vmem:[#allocation4 + $0xa] sm:$0xff]
      %v6586 = vld [vmem:[#allocation4 + $0x1a] sm:$0xff]
      %v6587 = vld [vmem:[#allocation4 + $0x22] sm:$0xff]
      %v6588 = vcombine.high %v6584, 0.0
      %v6590 = vunpack.c.l.s4 1983009808
      %v6591 = vunpack.c.0.s8 %v6590
      %v6592 = vlaneseq
      %v6593 = vshrl.u32 %v6592, 7
      %v6594 = vsub.s32 %v6591, %v6593
      %v6595 = vrot.slane %v6584, %v6594
      %v6597 = vunpack.c.l.s4 1983009808
      %v6598 = vunpack.c.0.s8 %v6597
      %v6599 = vlaneseq
      %v6600 = vshrl.u32 %v6599, 7
      %v6601 = vsub.s32 %v6598, %v6600
      %v6602 = vrot.slane %v6588, %v6601
      %v6603 = vcombine.high %v6586, 0.0
      %v6605 = vunpack.c.l.s4 1983009808
      %v6606 = vunpack.c.0.s8 %v6605
      %v6607 = vlaneseq
      %v6608 = vshrl.u32 %v6607, 7
      %v6609 = vsub.s32 %v6606, %v6608
      %v6610 = vrot.slane %v6586, %v6609
      %v6612 = vunpack.c.l.s4 1983009808
      %v6613 = vunpack.c.0.s8 %v6612
      %v6614 = vlaneseq
      %v6615 = vshrl.u32 %v6614, 7
      %v6616 = vsub.s32 %v6613, %v6615
      %v6617 = vrot.slane %v6603, %v6616
      %v6618 = vcombine.low %v6595, %v6610
      %v6619 = vcombine.high %v6595, %v6610
      %v6621 = vunpack.c.l.s4 1934713408
      %v6622 = vunpack.c.0.s8 %v6621
      %v6623 = vlaneseq
      %v6624 = vshrl.u32 %v6623, 7
      %v6625 = vsub.s32 %v6622, %v6624
      %v6626 = vrot.slane %v6618, %v6625
      %v6628 = vunpack.c.l.s4 1934713408
      %v6629 = vunpack.c.0.s8 %v6628
      %v6630 = vlaneseq
      %v6631 = vshrl.u32 %v6630, 7
      %v6632 = vsub.s32 %v6629, %v6631
      %v6633 = vrot.slane %v6619, %v6632
      %v6634 = vcombine.low %v6602, %v6617
      %v6635 = vcombine.high %v6602, %v6617
      %v6637 = vunpack.c.l.s4 1934713408
      %v6638 = vunpack.c.0.s8 %v6637
      %v6639 = vlaneseq
      %v6640 = vshrl.u32 %v6639, 7
      %v6641 = vsub.s32 %v6638, %v6640
      %v6642 = vrot.slane %v6634, %v6641
      %v6644 = vunpack.c.l.s4 1934713408
      %v6645 = vunpack.c.0.s8 %v6644
      %v6646 = vlaneseq
      %v6647 = vshrl.u32 %v6646, 7
      %v6648 = vsub.s32 %v6645, %v6647
      %v6649 = vrot.slane %v6635, %v6648
      %v6650 = vcombine.high %v6626, 0.0
      %v6651 = vcombine.high %v6633, 0.0
      %v6652 = vcombine.high %v6642, 0.0
      %v6653 = vcombine.high %v6649, 0.0
      %v6654 = vcombine.high %v6585, 0.0
      %v6656 = vunpack.c.l.s4 1983009808
      %v6657 = vunpack.c.0.s8 %v6656
      %v6658 = vlaneseq
      %v6659 = vshrl.u32 %v6658, 7
      %v6660 = vsub.s32 %v6657, %v6659
      %v6661 = vrot.slane %v6585, %v6660
      %v6663 = vunpack.c.l.s4 1983009808
      %v6664 = vunpack.c.0.s8 %v6663
      %v6665 = vlaneseq
      %v6666 = vshrl.u32 %v6665, 7
      %v6667 = vsub.s32 %v6664, %v6666
      %v6668 = vrot.slane %v6654, %v6667
      %v6669 = vcombine.high %v6587, 0.0
      %v6671 = vunpack.c.l.s4 1983009808
      %v6672 = vunpack.c.0.s8 %v6671
      %v6673 = vlaneseq
      %v6674 = vshrl.u32 %v6673, 7
      %v6675 = vsub.s32 %v6672, %v6674
      %v6676 = vrot.slane %v6587, %v6675
      %v6678 = vunpack.c.l.s4 1983009808
      %v6679 = vunpack.c.0.s8 %v6678
      %v6680 = vlaneseq
      %v6681 = vshrl.u32 %v6680, 7
      %v6682 = vsub.s32 %v6679, %v6681
      %v6683 = vrot.slane %v6669, %v6682
      %v6684 = vcombine.low %v6661, %v6676
      %v6685 = vcombine.high %v6661, %v6676
      %v6687 = vunpack.c.l.s4 1934713408
      %v6688 = vunpack.c.0.s8 %v6687
      %v6689 = vlaneseq
      %v6690 = vshrl.u32 %v6689, 7
      %v6691 = vsub.s32 %v6688, %v6690
      %v6692 = vrot.slane %v6684, %v6691
      %v6694 = vunpack.c.l.s4 1934713408
      %v6695 = vunpack.c.0.s8 %v6694
      %v6696 = vlaneseq
      %v6697 = vshrl.u32 %v6696, 7
      %v6698 = vsub.s32 %v6695, %v6697
      %v6699 = vrot.slane %v6685, %v6698
      %v6700 = vcombine.low %v6668, %v6683
      %v6701 = vcombine.high %v6668, %v6683
      %v6703 = vunpack.c.l.s4 1934713408
      %v6704 = vunpack.c.0.s8 %v6703
      %v6705 = vlaneseq
      %v6706 = vshrl.u32 %v6705, 7
      %v6707 = vsub.s32 %v6704, %v6706
      %v6708 = vrot.slane %v6700, %v6707
      %v6710 = vunpack.c.l.s4 1934713408
      %v6711 = vunpack.c.0.s8 %v6710
      %v6712 = vlaneseq
      %v6713 = vshrl.u32 %v6712, 7
      %v6714 = vsub.s32 %v6711, %v6713
      %v6715 = vrot.slane %v6701, %v6714
      %v6716 = vcombine.high %v6692, 0.0
      %v6717 = vcombine.high %v6699, 0.0
      %v6718 = vcombine.high %v6708, 0.0
      %v6719 = vcombine.high %v6715, 0.0
      %6721 = vrot.lane.b32.xlu0 %v6650, 16
      %v6722 = vpop.permute.xlu0 %6721
      %6725 = vrot.lane.b32.xlu0 %v6633, 32
      %v6726 = vpop.permute.xlu0 %6725
      %6729 = vrot.lane.b32.xlu0 %v6651, 48
      %v6730 = vpop.permute.xlu0 %6729
      %6733 = vrot.lane.b32.xlu0 %v6642, 64
      %v6734 = vpop.permute.xlu0 %6733
      %6737 = vrot.lane.b32.xlu0 %v6652, 80
      %v6738 = vpop.permute.xlu0 %6737
      %6741 = vrot.lane.b32.xlu0 %v6649, 96
      %v6742 = vpop.permute.xlu0 %6741
      %6745 = vrot.lane.b32.xlu0 %v6653, 112
      %v6746 = vpop.permute.xlu0 %6745
      %6749 = vrot.lane.b32.xlu0 %v6716, 16
      %v6750 = vpop.permute.xlu0 %6749
      %6753 = vrot.lane.b32.xlu0 %v6699, 32
      %v6754 = vpop.permute.xlu0 %6753
      %6757 = vrot.lane.b32.xlu0 %v6717, 48
      %v6758 = vpop.permute.xlu0 %6757
      %6761 = vrot.lane.b32.xlu0 %v6708, 64
      %v6762 = vpop.permute.xlu0 %6761
      %6765 = vrot.lane.b32.xlu0 %v6718, 80
      %v6766 = vpop.permute.xlu0 %6765
      %6769 = vrot.lane.b32.xlu0 %v6715, 96
      %v6770 = vpop.permute.xlu0 %6769
      %6773 = vrot.lane.b32.xlu0 %v6719, 112
      %v6774 = vpop.permute.xlu0 %6773
      %v6776 = vsel %vm725, %v6626, %v6722
      %v6777 = vsel %vm727, %v6776, %v6726
      %v6778 = vsel %vm729, %v6777, %v6730
      %v6779 = vsel %vm731, %v6778, %v6734
      %v6780 = vsel %vm733, %v6779, %v6738
      %v6781 = vsel %vm735, %v6780, %v6742
      %v6782 = vsel %vm737, %v6781, %v6746
      %v6783 = vsel %vm725, %v6692, %v6750
      %v6784 = vsel %vm727, %v6783, %v6754
      %v6785 = vsel %vm729, %v6784, %v6758
      %v6786 = vsel %vm731, %v6785, %v6762
      %v6787 = vsel %vm733, %v6786, %v6766
      %v6788 = vsel %vm735, %v6787, %v6770
      %v6789 = vsel %vm737, %v6788, %v6774
      %v6792 = vrot.slane %v6782, 6
      %v6793 = vrot.slane %v6789, 6
      %6796 = vst [vmem:[#allocation5 + $0x80] sm:$0xc] %v6792
      %6797 = vst [vmem:[#allocation5 + $0x88] sm:$0xc] %v6793
      %v6798 = vld [vmem:[#allocation4 + $0x2] sm:$0xff]
      %v6799 = vld [vmem:[#allocation4 + $0xa] sm:$0xff]
      %v6800 = vld [vmem:[#allocation4 + $0x1a] sm:$0xff]
      %v6801 = vld [vmem:[#allocation4 + $0x22] sm:$0xff]
      %6806 = vrot.lane.b32.xlu0 %v6798, 127
      %v6807 = vpop.permute.xlu0 %6806
      %6808 = vrot.lane.b32.xlu0 %v6799, 127
      %v6809 = vpop.permute.xlu0 %6808
      %6810 = vrot.lane.b32.xlu0 %v6800, 127
      %v6811 = vpop.permute.xlu0 %6810
      %6812 = vrot.lane.b32.xlu0 %v6801, 127
      %v6813 = vpop.permute.xlu0 %6812
      %v6818 = vcombine.high %v6807, 0.0
      %v6820 = vunpack.c.l.s4 1983009808
      %v6821 = vunpack.c.0.s8 %v6820
      %v6822 = vlaneseq
      %v6823 = vshrl.u32 %v6822, 7
      %v6824 = vsub.s32 %v6821, %v6823
      %v6825 = vrot.slane %v6807, %v6824
      %v6827 = vunpack.c.l.s4 1983009808
      %v6828 = vunpack.c.0.s8 %v6827
      %v6829 = vlaneseq
      %v6830 = vshrl.u32 %v6829, 7
      %v6831 = vsub.s32 %v6828, %v6830
      %v6832 = vrot.slane %v6818, %v6831
      %v6833 = vcombine.high %v6811, 0.0
      %v6835 = vunpack.c.l.s4 1983009808
      %v6836 = vunpack.c.0.s8 %v6835
      %v6837 = vlaneseq
      %v6838 = vshrl.u32 %v6837, 7
      %v6839 = vsub.s32 %v6836, %v6838
      %v6840 = vrot.slane %v6811, %v6839
      %v6842 = vunpack.c.l.s4 1983009808
      %v6843 = vunpack.c.0.s8 %v6842
      %v6844 = vlaneseq
      %v6845 = vshrl.u32 %v6844, 7
      %v6846 = vsub.s32 %v6843, %v6845
      %v6847 = vrot.slane %v6833, %v6846
      %v6848 = vcombine.low %v6825, %v6840
      %v6849 = vcombine.high %v6825, %v6840
      %v6851 = vunpack.c.l.s4 1934713408
      %v6852 = vunpack.c.0.s8 %v6851
      %v6853 = vlaneseq
      %v6854 = vshrl.u32 %v6853, 7
      %v6855 = vsub.s32 %v6852, %v6854
      %v6856 = vrot.slane %v6848, %v6855
      %v6858 = vunpack.c.l.s4 1934713408
      %v6859 = vunpack.c.0.s8 %v6858
      %v6860 = vlaneseq
      %v6861 = vshrl.u32 %v6860, 7
      %v6862 = vsub.s32 %v6859, %v6861
      %v6863 = vrot.slane %v6849, %v6862
      %v6864 = vcombine.low %v6832, %v6847
      %v6865 = vcombine.high %v6832, %v6847
      %v6867 = vunpack.c.l.s4 1934713408
      %v6868 = vunpack.c.0.s8 %v6867
      %v6869 = vlaneseq
      %v6870 = vshrl.u32 %v6869, 7
      %v6871 = vsub.s32 %v6868, %v6870
      %v6872 = vrot.slane %v6864, %v6871
      %v6874 = vunpack.c.l.s4 1934713408
      %v6875 = vunpack.c.0.s8 %v6874
      %v6876 = vlaneseq
      %v6877 = vshrl.u32 %v6876, 7
      %v6878 = vsub.s32 %v6875, %v6877
      %v6879 = vrot.slane %v6865, %v6878
      %v6880 = vcombine.high %v6856, 0.0
      %v6881 = vcombine.high %v6863, 0.0
      %v6882 = vcombine.high %v6872, 0.0
      %v6883 = vcombine.high %v6879, 0.0
      %v6884 = vcombine.high %v6809, 0.0
      %v6886 = vunpack.c.l.s4 1983009808
      %v6887 = vunpack.c.0.s8 %v6886
      %v6888 = vlaneseq
      %v6889 = vshrl.u32 %v6888, 7
      %v6890 = vsub.s32 %v6887, %v6889
      %v6891 = vrot.slane %v6809, %v6890
      %v6893 = vunpack.c.l.s4 1983009808
      %v6894 = vunpack.c.0.s8 %v6893
      %v6895 = vlaneseq
      %v6896 = vshrl.u32 %v6895, 7
      %v6897 = vsub.s32 %v6894, %v6896
      %v6898 = vrot.slane %v6884, %v6897
      %v6899 = vcombine.high %v6813, 0.0
      %v6901 = vunpack.c.l.s4 1983009808
      %v6902 = vunpack.c.0.s8 %v6901
      %v6903 = vlaneseq
      %v6904 = vshrl.u32 %v6903, 7
      %v6905 = vsub.s32 %v6902, %v6904
      %v6906 = vrot.slane %v6813, %v6905
      %v6908 = vunpack.c.l.s4 1983009808
      %v6909 = vunpack.c.0.s8 %v6908
      %v6910 = vlaneseq
      %v6911 = vshrl.u32 %v6910, 7
      %v6912 = vsub.s32 %v6909, %v6911
      %v6913 = vrot.slane %v6899, %v6912
      %v6914 = vcombine.low %v6891, %v6906
      %v6915 = vcombine.high %v6891, %v6906
      %v6917 = vunpack.c.l.s4 1934713408
      %v6918 = vunpack.c.0.s8 %v6917
      %v6919 = vlaneseq
      %v6920 = vshrl.u32 %v6919, 7
      %v6921 = vsub.s32 %v6918, %v6920
      %v6922 = vrot.slane %v6914, %v6921
      %v6924 = vunpack.c.l.s4 1934713408
      %v6925 = vunpack.c.0.s8 %v6924
      %v6926 = vlaneseq
      %v6927 = vshrl.u32 %v6926, 7
      %v6928 = vsub.s32 %v6925, %v6927
      %v6929 = vrot.slane %v6915, %v6928
      %v6930 = vcombine.low %v6898, %v6913
      %v6931 = vcombine.high %v6898, %v6913
      %v6933 = vunpack.c.l.s4 1934713408
      %v6934 = vunpack.c.0.s8 %v6933
      %v6935 = vlaneseq
      %v6936 = vshrl.u32 %v6935, 7
      %v6937 = vsub.s32 %v6934, %v6936
      %v6938 = vrot.slane %v6930, %v6937
      %v6940 = vunpack.c.l.s4 1934713408
      %v6941 = vunpack.c.0.s8 %v6940
      %v6942 = vlaneseq
      %v6943 = vshrl.u32 %v6942, 7
      %v6944 = vsub.s32 %v6941, %v6943
      %v6945 = vrot.slane %v6931, %v6944
      %v6946 = vcombine.high %v6922, 0.0
      %v6947 = vcombine.high %v6929, 0.0
      %v6948 = vcombine.high %v6938, 0.0
      %v6949 = vcombine.high %v6945, 0.0
      %6951 = vrot.lane.b32.xlu0 %v6880, 16
      %v6952 = vpop.permute.xlu0 %6951
      %6955 = vrot.lane.b32.xlu0 %v6863, 32
      %v6956 = vpop.permute.xlu0 %6955
      %6959 = vrot.lane.b32.xlu0 %v6881, 48
      %v6960 = vpop.permute.xlu0 %6959
      %6963 = vrot.lane.b32.xlu0 %v6872, 64
      %v6964 = vpop.permute.xlu0 %6963
      %6967 = vrot.lane.b32.xlu0 %v6882, 80
      %v6968 = vpop.permute.xlu0 %6967
      %6971 = vrot.lane.b32.xlu0 %v6879, 96
      %v6972 = vpop.permute.xlu0 %6971
      %6975 = vrot.lane.b32.xlu0 %v6883, 112
      %v6976 = vpop.permute.xlu0 %6975
      %6979 = vrot.lane.b32.xlu0 %v6946, 16
      %v6980 = vpop.permute.xlu0 %6979
      %6983 = vrot.lane.b32.xlu0 %v6929, 32
      %v6984 = vpop.permute.xlu0 %6983
      %6987 = vrot.lane.b32.xlu0 %v6947, 48
      %v6988 = vpop.permute.xlu0 %6987
      %6991 = vrot.lane.b32.xlu0 %v6938, 64
      %v6992 = vpop.permute.xlu0 %6991
      %6995 = vrot.lane.b32.xlu0 %v6948, 80
      %v6996 = vpop.permute.xlu0 %6995
      %6999 = vrot.lane.b32.xlu0 %v6945, 96
      %v7000 = vpop.permute.xlu0 %6999
      %7003 = vrot.lane.b32.xlu0 %v6949, 112
      %v7004 = vpop.permute.xlu0 %7003
      %v7006 = vsel %vm725, %v6856, %v6952
      %v7007 = vsel %vm727, %v7006, %v6956
      %v7008 = vsel %vm729, %v7007, %v6960
      %v7009 = vsel %vm731, %v7008, %v6964
      %v7010 = vsel %vm733, %v7009, %v6968
      %v7011 = vsel %vm735, %v7010, %v6972
      %v7012 = vsel %vm737, %v7011, %v6976
      %v7013 = vsel %vm725, %v6922, %v6980
      %v7014 = vsel %vm727, %v7013, %v6984
      %v7015 = vsel %vm729, %v7014, %v6988
      %v7016 = vsel %vm731, %v7015, %v6992
      %v7017 = vsel %vm733, %v7016, %v6996
      %v7018 = vsel %vm735, %v7017, %v7000
      %v7019 = vsel %vm737, %v7018, %v7004
      %v7022 = vrot.slane %v7012, 4
      %v7023 = vrot.slane %v7019, 4
      %7026 = vst [vmem:[#allocation5 + $0x80] sm:$0x30] %v7022
      %7027 = vst [vmem:[#allocation5 + $0x88] sm:$0x30] %v7023
      %v7028 = vld [vmem:[#allocation4 + $0x2] sm:$0xff]
      %v7029 = vld [vmem:[#allocation4 + $0xa] sm:$0xff]
      %v7030 = vld [vmem:[#allocation4 + $0x1a] sm:$0xff]
      %v7031 = vld [vmem:[#allocation4 + $0x22] sm:$0xff]
      %7036 = vrot.lane.b32.xlu0 %v7028, 126
      %v7037 = vpop.permute.xlu0 %7036
      %7038 = vrot.lane.b32.xlu0 %v7029, 126
      %v7039 = vpop.permute.xlu0 %7038
      %7040 = vrot.lane.b32.xlu0 %v7030, 126
      %v7041 = vpop.permute.xlu0 %7040
      %7042 = vrot.lane.b32.xlu0 %v7031, 126
      %v7043 = vpop.permute.xlu0 %7042
      %v7048 = vcombine.high %v7037, 0.0
      %v7050 = vunpack.c.l.s4 1983009808
      %v7051 = vunpack.c.0.s8 %v7050
      %v7052 = vlaneseq
      %v7053 = vshrl.u32 %v7052, 7
      %v7054 = vsub.s32 %v7051, %v7053
      %v7055 = vrot.slane %v7037, %v7054
      %v7057 = vunpack.c.l.s4 1983009808
      %v7058 = vunpack.c.0.s8 %v7057
      %v7059 = vlaneseq
      %v7060 = vshrl.u32 %v7059, 7
      %v7061 = vsub.s32 %v7058, %v7060
      %v7062 = vrot.slane %v7048, %v7061
      %v7063 = vcombine.high %v7041, 0.0
      %v7065 = vunpack.c.l.s4 1983009808
      %v7066 = vunpack.c.0.s8 %v7065
      %v7067 = vlaneseq
      %v7068 = vshrl.u32 %v7067, 7
      %v7069 = vsub.s32 %v7066, %v7068
      %v7070 = vrot.slane %v7041, %v7069
      %v7072 = vunpack.c.l.s4 1983009808
      %v7073 = vunpack.c.0.s8 %v7072
      %v7074 = vlaneseq
      %v7075 = vshrl.u32 %v7074, 7
      %v7076 = vsub.s32 %v7073, %v7075
      %v7077 = vrot.slane %v7063, %v7076
      %v7078 = vcombine.low %v7055, %v7070
      %v7079 = vcombine.high %v7055, %v7070
      %v7081 = vunpack.c.l.s4 1934713408
      %v7082 = vunpack.c.0.s8 %v7081
      %v7083 = vlaneseq
      %v7084 = vshrl.u32 %v7083, 7
      %v7085 = vsub.s32 %v7082, %v7084
      %v7086 = vrot.slane %v7078, %v7085
      %v7088 = vunpack.c.l.s4 1934713408
      %v7089 = vunpack.c.0.s8 %v7088
      %v7090 = vlaneseq
      %v7091 = vshrl.u32 %v7090, 7
      %v7092 = vsub.s32 %v7089, %v7091
      %v7093 = vrot.slane %v7079, %v7092
      %v7094 = vcombine.low %v7062, %v7077
      %v7095 = vcombine.high %v7062, %v7077
      %v7097 = vunpack.c.l.s4 1934713408
      %v7098 = vunpack.c.0.s8 %v7097
      %v7099 = vlaneseq
      %v7100 = vshrl.u32 %v7099, 7
      %v7101 = vsub.s32 %v7098, %v7100
      %v7102 = vrot.slane %v7094, %v7101
      %v7104 = vunpack.c.l.s4 1934713408
      %v7105 = vunpack.c.0.s8 %v7104
      %v7106 = vlaneseq
      %v7107 = vshrl.u32 %v7106, 7
      %v7108 = vsub.s32 %v7105, %v7107
      %v7109 = vrot.slane %v7095, %v7108
      %v7110 = vcombine.high %v7086, 0.0
      %v7111 = vcombine.high %v7093, 0.0
      %v7112 = vcombine.high %v7102, 0.0
      %v7113 = vcombine.high %v7109, 0.0
      %v7114 = vcombine.high %v7039, 0.0
      %v7116 = vunpack.c.l.s4 1983009808
      %v7117 = vunpack.c.0.s8 %v7116
      %v7118 = vlaneseq
      %v7119 = vshrl.u32 %v7118, 7
      %v7120 = vsub.s32 %v7117, %v7119
      %v7121 = vrot.slane %v7039, %v7120
      %v7123 = vunpack.c.l.s4 1983009808
      %v7124 = vunpack.c.0.s8 %v7123
      %v7125 = vlaneseq
      %v7126 = vshrl.u32 %v7125, 7
      %v7127 = vsub.s32 %v7124, %v7126
      %v7128 = vrot.slane %v7114, %v7127
      %v7129 = vcombine.high %v7043, 0.0
      %v7131 = vunpack.c.l.s4 1983009808
      %v7132 = vunpack.c.0.s8 %v7131
      %v7133 = vlaneseq
      %v7134 = vshrl.u32 %v7133, 7
      %v7135 = vsub.s32 %v7132, %v7134
      %v7136 = vrot.slane %v7043, %v7135
      %v7138 = vunpack.c.l.s4 1983009808
      %v7139 = vunpack.c.0.s8 %v7138
      %v7140 = vlaneseq
      %v7141 = vshrl.u32 %v7140, 7
      %v7142 = vsub.s32 %v7139, %v7141
      %v7143 = vrot.slane %v7129, %v7142
      %v7144 = vcombine.low %v7121, %v7136
      %v7145 = vcombine.high %v7121, %v7136
      %v7147 = vunpack.c.l.s4 1934713408
      %v7148 = vunpack.c.0.s8 %v7147
      %v7149 = vlaneseq
      %v7150 = vshrl.u32 %v7149, 7
      %v7151 = vsub.s32 %v7148, %v7150
      %v7152 = vrot.slane %v7144, %v7151
      %v7154 = vunpack.c.l.s4 1934713408
      %v7155 = vunpack.c.0.s8 %v7154
      %v7156 = vlaneseq
      %v7157 = vshrl.u32 %v7156, 7
      %v7158 = vsub.s32 %v7155, %v7157
      %v7159 = vrot.slane %v7145, %v7158
      %v7160 = vcombine.low %v7128, %v7143
      %v7161 = vcombine.high %v7128, %v7143
      %v7163 = vunpack.c.l.s4 1934713408
      %v7164 = vunpack.c.0.s8 %v7163
      %v7165 = vlaneseq
      %v7166 = vshrl.u32 %v7165, 7
      %v7167 = vsub.s32 %v7164, %v7166
      %v7168 = vrot.slane %v7160, %v7167
      %v7170 = vunpack.c.l.s4 1934713408
      %v7171 = vunpack.c.0.s8 %v7170
      %v7172 = vlaneseq
      %v7173 = vshrl.u32 %v7172, 7
      %v7174 = vsub.s32 %v7171, %v7173
      %v7175 = vrot.slane %v7161, %v7174
      %v7176 = vcombine.high %v7152, 0.0
      %v7177 = vcombine.high %v7159, 0.0
      %v7178 = vcombine.high %v7168, 0.0
      %v7179 = vcombine.high %v7175, 0.0
      %7181 = vrot.lane.b32.xlu0 %v7110, 16
      %v7182 = vpop.permute.xlu0 %7181
      %7185 = vrot.lane.b32.xlu0 %v7093, 32
      %v7186 = vpop.permute.xlu0 %7185
      %7189 = vrot.lane.b32.xlu0 %v7111, 48
      %v7190 = vpop.permute.xlu0 %7189
      %7193 = vrot.lane.b32.xlu0 %v7102, 64
      %v7194 = vpop.permute.xlu0 %7193
      %7197 = vrot.lane.b32.xlu0 %v7112, 80
      %v7198 = vpop.permute.xlu0 %7197
      %7201 = vrot.lane.b32.xlu0 %v7109, 96
      %v7202 = vpop.permute.xlu0 %7201
      %7205 = vrot.lane.b32.xlu0 %v7113, 112
      %v7206 = vpop.permute.xlu0 %7205
      %7209 = vrot.lane.b32.xlu0 %v7176, 16
      %v7210 = vpop.permute.xlu0 %7209
      %7213 = vrot.lane.b32.xlu0 %v7159, 32
      %v7214 = vpop.permute.xlu0 %7213
      %7217 = vrot.lane.b32.xlu0 %v7177, 48
      %v7218 = vpop.permute.xlu0 %7217
      %7221 = vrot.lane.b32.xlu0 %v7168, 64
      %v7222 = vpop.permute.xlu0 %7221
      %7225 = vrot.lane.b32.xlu0 %v7178, 80
      %v7226 = vpop.permute.xlu0 %7225
      %7229 = vrot.lane.b32.xlu0 %v7175, 96
      %v7230 = vpop.permute.xlu0 %7229
      %7233 = vrot.lane.b32.xlu0 %v7179, 112
      %v7234 = vpop.permute.xlu0 %7233
      %v7236 = vsel %vm725, %v7086, %v7182
      %v7237 = vsel %vm727, %v7236, %v7186
      %v7238 = vsel %vm729, %v7237, %v7190
      %v7239 = vsel %vm731, %v7238, %v7194
      %v7240 = vsel %vm733, %v7239, %v7198
      %v7241 = vsel %vm735, %v7240, %v7202
      %v7242 = vsel %vm737, %v7241, %v7206
      %v7243 = vsel %vm725, %v7152, %v7210
      %v7244 = vsel %vm727, %v7243, %v7214
      %v7245 = vsel %vm729, %v7244, %v7218
      %v7246 = vsel %vm731, %v7245, %v7222
      %v7247 = vsel %vm733, %v7246, %v7226
      %v7248 = vsel %vm735, %v7247, %v7230
      %v7249 = vsel %vm737, %v7248, %v7234
      %v7252 = vrot.slane %v7242, 2
      %v7253 = vrot.slane %v7249, 2
      %7256 = vst [vmem:[#allocation5 + $0x80] sm:$0xc0] %v7252
      %7257 = vst [vmem:[#allocation5 + $0x88] sm:$0xc0] %v7253
      %v7258 = vld [vmem:[%s5] sm:$0xf]
      %v7259 = vld [vmem:[#allocation5] sm:$0xff]
      %v7260 = vld [vmem:[#allocation5 + $0x8] sm:$0xff]
      %v7261 = vld [vmem:[#allocation5 + $0x10] sm:$0xff]
      %v7262 = vld [vmem:[#allocation5 + $0x18] sm:$0xff]
      %v7263 = vld [vmem:[#allocation5 + $0x20] sm:$0xff]
      %v7264 = vld [vmem:[#allocation5 + $0x28] sm:$0xff]
      %v7265 = vld [vmem:[#allocation5 + $0x30] sm:$0xff]
      %v7266 = vld [vmem:[#allocation5 + $0x38] sm:$0xff]
      %v7267 = vld [vmem:[#allocation5 + $0x40] sm:$0xff]
      %v7268 = vld [vmem:[#allocation5 + $0x48] sm:$0xff]
      %v7269 = vld [vmem:[#allocation5 + $0x50] sm:$0xff]
      %v7270 = vld [vmem:[#allocation5 + $0x58] sm:$0xff]
      %v7271 = vld [vmem:[#allocation5 + $0x60] sm:$0xff]
      %v7272 = vld [vmem:[#allocation5 + $0x68] sm:$0xff]
      %v7273 = vld [vmem:[#allocation5 + $0x70] sm:$0xff]
      %v7274 = vld [vmem:[#allocation5 + $0x78] sm:$0xff]
      %v7275 = vld [vmem:[#allocation5 + $0x80] sm:$0xff]
      %v7276 = vld [vmem:[#allocation5 + $0x88] sm:$0xff]
      %v7277 = vld [vmem:[%s6] sm:$0xf]
      %7279 = vset.pattern.permute.xlu0 0
      %7280 = vperm.xlu0 %7279, %v7277
      %v7281 = vpop.permute.xlu0 %7280
      %vm7283 = vcmask 588800
      %v7285 = vsel %vm7283, %v7258, 0
      %7287 = vmatprep.subr.mxu0 %v7260
      %7288 = vmatpush1.msra.mxu0 %v7259
      %7289 = vmatprep.subr.mxu0 %v7262
      %7290 = vmatpush1.msra.mxu0 %v7261
      %7291 = vmatprep.subr.mxu0 %v7264
      %7292 = vmatpush1.msra.mxu0 %v7263
      %7293 = vmatprep.subr.mxu0 %v7266
      %7294 = vmatpush1.msra.mxu0 %v7265
      %7295 = vmatprep.subr.mxu0 %v7268
      %7296 = vmatpush1.msra.mxu0 %v7267
      %7297 = vmatprep.subr.mxu0 %v7270
      %7298 = vmatpush1.msra.mxu0 %v7269
      %7299 = vmatprep.subr.mxu0 %v7272
      %7300 = vmatpush1.msra.mxu0 %v7271
      %7301 = vmatprep.subr.mxu0 %v7274
      %7302 = vmatpush1.msra.mxu0 %v7273
      %7303 = vmatprep.subr.mxu0 %v7276
      %7304 = vmatpush1.msra.mxu0 %v7275
      %7305 = vmatprep.subr.mxu0 0.0
      %7306 = vmatpush1.msra.mxu0 0.0
      %7307 = vmatprep.subr.mxu0 0.0
      %7308 = vmatpush1.msra.mxu0 0.0
      %7309 = vmatprep.subr.mxu0 0.0
      %7310 = vmatpush1.msra.mxu0 0.0
      %7311 = vmatprep.subr.mxu0 0.0
      %7312 = vmatpush1.msra.mxu0 0.0
      %7313 = vmatprep.subr.mxu0 0.0
      %7314 = vmatpush1.msra.mxu0 0.0
      %7315 = vmatprep.subr.mxu0 0.0
      %7316 = vmatpush1.msra.mxu0 0.0
      %7317 = vmatprep.subr.mxu0 0.0
      %7318 = vmatpush1.msra.mxu0 0.0
      %7319 = vmatprep.subr.mxu0 0.0
      %7320 = vmatpush1.msra.mxu0 0.0
      %7321 = vmatprep.subr.mxu0 0.0
      %7322 = vmatpush1.msra.mxu0 0.0
      %7323 = vmatprep.subr.mxu0 0.0
      %7324 = vmatpush1.msra.mxu0 0.0
      %7325 = vmatprep.subr.mxu0 0.0
      %7326 = vmatpush1.msra.mxu0 0.0
      %7327 = vmatprep.subr.mxu0 0.0
      %7328 = vmatpush1.msra.mxu0 0.0
      %7329 = vmatprep.subr.mxu0 0.0
      %7330 = vmatpush1.msra.mxu0 0.0
      %7331 = vmatprep.subr.mxu0 0.0
      %7332 = vmatpush1.msra.mxu0 0.0
      %7333 = vmatprep.subr.mxu0 0.0
      %7334 = vmatpush1.msra.mxu0 0.0
      %7335 = vmatprep.subr.mxu0 0.0
      %7336 = vmatpush1.msra.mxu0 0.0
      %7337 = vmatprep.subr.mxu0 0.0
      %7338 = vmatpush1.msra.mxu0 0.0
      %7339 = vmatprep.subr.mxu0 0.0
      %7340 = vmatpush1.msra.mxu0 0.0
      %7341 = vmatprep.subr.mxu0 0.0
      %7342 = vmatpush1.msra.mxu0 0.0
      %7343 = vmatprep.subr.mxu0 0.0
      %7344 = vmatpush1.msra.mxu0 0.0
      %7345 = vmatprep.subr.mxu0 0.0
      %7346 = vmatpush1.msra.mxu0 0.0
      %7347 = vmatprep.subr.mxu0 0.0
      %7348 = vmatpush1.msra.mxu0 0.0
      %7349 = vmatprep.subr.mxu0 0.0
      %7350 = vmatpush1.msra.mxu0 0.0
      %7351 = vmatprep.mubr.f32.mxu0 0.0
      %7352 = vmatmul.mubr.f32.gmra.mrb[0].mxu0 %v7285
      %v7353 = vpop.f32.mrb[0].mxu0
      %v7354 = vadd.f32 %v7281, %v7353
      %v7355 = vpop.f32.mrb[0].mxu0
      %v7356 = vadd.f32 %v7281, %v7355
      %7357 = vdwg.mxu0
      %v7358 = vmax.f32 %v7354, 0.0
      %v7359 = vmax.f32 %v7356, 0.0
      %v7360 = vcombine.high %v279, %v279
      %v7362 = vadd.f32 %v7358, %v279
      %v7363 = vadd.f32 %v7359, %v7360
      %v7366 = vcombine.low %v7362, %v7363
      %7368 = vst [vmem:[%s278] sm:$0xff] %v7366
      %p7369 = scmp.lt.s32.totalorder %s18, 1
      %s7370 = scalar_select %p7369, %s18, 1
      %s7371 = smul.addr %s7370, 2
      %s7372 = smul.addr %s7371, 4
      %s7373 = scalar_lea.vmem %s7, %s7372
      // Predicated region
      $region49: #{dcr_block.1} parent=47 // pred_check
        %p7374 = pneg %p188
      $region50: #{dcr_block.1} parent=47 // pred_check_branch
        %7376 = sbr.rel (%p7374) target = $region52
      $region51: #{dcr_block.1} parent=47 // pred_region
        _
      $region52: #{dcr_block.1} parent=47 // pred_fallthru
        _
    $region48: #{dcr_block.1} parent=5 // pred_fallthru
      _
    %p7377 = scmp.le.s32.totalorder 2, %s13
    // Predicated region
    $region53: #{dcr_block.1} parent=5 // pred_check
      %p7378 = pneg %p7377
    $region54: #{dcr_block.1} parent=5 // pred_check_branch
      %7380 = sbr.rel (%p7378) target = $region56
    $region55: #{dcr_block.1} parent=5 // pred_region
      %s7381 = ssub.s32 %s13, 2
      // Predicated region
      $region57: #{dcr_block.1} parent=55 // pred_check
        %p7382 = pneg %p194
      $region58: #{dcr_block.1} parent=55 // pred_check_branch
        %7384 = sbr.rel (%p7382) target = $region60
      $region59: #{dcr_block.1} parent=55 // pred_region
        %p7385 = scmp.lt.s32.totalorder %s19, 1
        %s7386 = scalar_select %p7385, %s19, 1
        %s7387 = smul.addr %s7386, 2
        %s7388 = smul.addr %s7387, 4
        %s7389 = scalar_lea.vmem %s7, %s7388
      $region60: #{dcr_block.1} parent=55 // pred_fallthru
        _
    $region56: #{dcr_block.1} parent=5 // pred_fallthru
      _
  $region6: #{dcr_block.1} parent=0 // loop_footer
    %s17 = sadd.s32 1, %s13
  $region7: #{dcr_block.1} parent=0 // loop_footer_branch
    %12 = sbr.rel target = $region3
  $region8: #{dcr_block.1} parent=0 // loop_exit
    _

</llo_original>
